<compile_context>
chip_gen: v6e
topology: v6e:2x2x1
jax: 0.10.0
libtpu: 0.0.40
codegen_flags: <defaults>
</compile_context>

<pallas_src>
import math
from functools import partial

import jax
import jax.numpy as jnp
from jax.experimental import pallas as pl
from jax.experimental.pallas import tpu as pltpu


# ----------------------------------------------------------------------------
# Static helpers (Python ints / static shapes only).
# ----------------------------------------------------------------------------
_SINGLE_BUFFER_WEIGHT_BYTES = 4 * 1024 * 1024   # above this, single-buffer weights


def _round_up(x, m):
    return ((x + m - 1) // m) * m


def _vmem_budget_bytes():
    """~75% of physical VMEM (per-core); 64 MiB fallback if the query fails."""
    try:
        cap = int(pltpu.get_tpu_info().vmem_capacity_bytes)
    except Exception:
        cap = 64 * 1024 * 1024
    return (cap * 3) // 4


def _batch_tile_candidates(Bp, cap=256):
    """Multiples of 8 that divide Bp, largest first (capped at the MXU M dim)."""
    start = min(Bp, cap)
    cands = [t for t in range(start, 0, -8) if Bp % t == 0]
    if not cands:
        cands = [8]
    # v7x megacore: prefer >= 2 batch tiles (one per TensorCore) when each tile
    # still keeps the MXU M dimension reasonably full.
    if cands[0] == Bp and Bp >= 128:
        half = Bp // 2
        if half in cands:
            cands.remove(half)
            cands.insert(0, half)
    return cands


def _choose_tiling(T, Bp, Ep, Hp, L, fixed_weight_bytes, gi_itemsize, budget,
                   max_time_chunk_cap=128):
    """Pick (Bt, Tc) so that resident weights + pipelined activation blocks +
    scratches fit the VMEM budget. All activation blocks are f32 (4B)."""
    for Bt in _batch_tile_candidates(Bp):
        # h scratch (f32) + double-buffered h0 input block + h_last output block
        fixed = fixed_weight_bytes + 5 * L * Bt * Hp * 4
        # per time step: 2x x-block + 2x y-block (double-buffered) + gi scratch row
        per_tc = Bt * (2 * Ep * 4 + 2 * Hp * 4 + 3 * Hp * gi_itemsize)
        avail = budget - fixed
        if avail >= per_tc:
            Tc = int(min(max_time_chunk_cap, max(T, 1), avail // per_tc))
            return Bt, max(Tc, 1)
    return 8, 1


# ----------------------------------------------------------------------------
# Fused multi-layer GRU kernel.
# ----------------------------------------------------------------------------
def _make_fused_gru_kernel(nlayers, Tc, Bt, Hp, T_valid, T_pad, unroll):
    """Kernel ref order:
       x, (wih_t, whh_t, b_gi, b_hn) * nlayers, h0 | y, h_last | gi_scratch, h_scratch
    """
    needs_mask = (T_pad != T_valid)   # time axis was padded -> freeze h past T

    def kernel(*refs):
        x_ref = refs[0]
        layer_refs = refs[1:1 + 4 * nlayers]
        h0_ref = refs[1 + 4 * nlayers]
        y_ref = refs[2 + 4 * nlayers]
        hlast_ref = refs[3 + 4 * nlayers]
        gi_ref = refs[4 + 4 * nlayers]       # (Tc*Bt, 3Hp) compute-dtype scratch
        h_ref = refs[5 + 4 * nlayers]        # (L, Bt, Hp)  f32 carried hidden

        c = pl.program_id(1)                 # time-chunk index (sequential axis)

        @pl.when(c == 0)
        def _():
            h_ref[...] = h0_ref[...].astype(jnp.float32)

        for l in range(nlayers):
            wih_ref, whh_ref, bgi_ref, bhn_ref = layer_refs[4 * l:4 * (l + 1)]
            w_dtype = wih_ref.dtype

            # ---- Hoisted input projection for the whole time chunk (one big
            #      MXU matmul). Layer 0 reads the embedded chunk; layers > 0
            #      read the previous layer's chunk output, still in VMEM.
            xin = x_ref[...] if l == 0 else y_ref[...]          # (Tc, Bt, Din_p)
            xin = xin.reshape(Tc * Bt, xin.shape[-1])           # sublane merge, free
            gi_ref[...] = (
                jnp.dot(xin.astype(w_dtype), wih_ref[...],
                        preferred_element_type=jnp.float32)
                + bgi_ref[...]
            ).astype(gi_ref.dtype)

            # Hoisted out of the recurrence (JAX does not CSE broadcasts/loads).
            bhn = bhn_ref[...]                                  # (1, Hp) f32

            # ---- Sequential recurrence: only h @ Whh^T + gate math per step.
            def step(t, h):
                gh = jnp.dot(h.astype(w_dtype), whh_ref[...],
                             preferred_element_type=jnp.float32)   # (Bt, 3Hp) f32
                row = pl.multiple_of(t * Bt, Bt)
                gi_t = gi_ref[pl.ds(row, Bt), :].astype(jnp.float32)
                # PyTorch GRU gate order r, z, n (lane-aligned Hp-wide slices);
                # gate math stays f32 (safe on v5e, cheap everywhere).
                r = jax.nn.sigmoid(gi_t[:, 0 * Hp:1 * Hp] + gh[:, 0 * Hp:1 * Hp])
                z = jax.nn.sigmoid(gi_t[:, 1 * Hp:2 * Hp] + gh[:, 1 * Hp:2 * Hp])
                n = jnp.tanh(gi_t[:, 2 * Hp:3 * Hp]
                             + r * (gh[:, 2 * Hp:3 * Hp] + bhn))
                h_new = (1.0 - z) * n + z * h
                y_ref[t] = h_new.astype(y_ref.dtype)
                if needs_mask:
                    # Padded tail timesteps are NOT inert (biases/W_hh still
                    # move h): freeze the carried state past the true length.
                    h_new = jnp.where(c * Tc + t < T_valid, h_new, h)
                return h_new

            h_ref[l] = jax.lax.fori_loop(0, Tc, step, h_ref[l], unroll=unroll)

        @pl.when(c == pl.num_programs(1) - 1)
        def _():
            hlast_ref[...] = h_ref[...].astype(hlast_ref.dtype)

    return kernel


def _fused_gru_pallas(x, h0, layers, *, Tc, Bt, Hp, T_valid,
                      single_buffer_weights, vmem_limit):
    """x:  (T_pad, Bp, Ep)  time-major, lane/sublane padded embedded input (f32)
       h0: (L,    Bp, Hp)   padded initial hidden (f32)
       layers: list of dicts with 'wih_t' (Din_p,3Hp), 'whh_t' (Hp,3Hp),
               'b_gi' (1,3Hp) f32, 'b_hn' (1,Hp) f32."""
    T_pad, Bp, Ep = x.shape
    NC = T_pad // Tc
    NB = Bp // Bt
    L = h0.shape[0]
    compute_dtype = layers[0]["wih_t"].dtype

    # Grid-invariant weight blocks: single-buffer them once they are large
    # enough to matter (default double-buffering would waste 1x their size).
    w_kwargs = (dict(pipeline_mode=pl.Buffered(1))
                if single_buffer_weights else {})

    flat_inputs = [x]
    in_specs = [pl.BlockSpec((Tc, Bt, Ep), lambda b, c: (c, b, 0))]
    for lp in layers:
        din_p = lp["wih_t"].shape[0]
        flat_inputs += [lp["wih_t"], lp["whh_t"], lp["b_gi"], lp["b_hn"]]
        in_specs += [
            pl.BlockSpec((din_p, 3 * Hp), lambda b, c: (0, 0), **w_kwargs),  # W_ih^T
            pl.BlockSpec((Hp, 3 * Hp), lambda b, c: (0, 0), **w_kwargs),     # W_hh^T
            pl.BlockSpec((1, 3 * Hp), lambda b, c: (0, 0)),                  # folded gi bias
            pl.BlockSpec((1, Hp), lambda b, c: (0, 0)),                      # b_hn
        ]
    flat_inputs.append(h0)
    in_specs.append(pl.BlockSpec((L, Bt, Hp), lambda b, c: (0, b, 0)))

    out_specs = [
        pl.BlockSpec((Tc, Bt, Hp), lambda b, c: (c, b, 0)),    # y chunk
        pl.BlockSpec((L, Bt, Hp), lambda b, c: (0, b, 0)),     # h_last
    ]
    out_shape = (
        jax.ShapeDtypeStruct((T_pad, Bp, Hp), x.dtype),
        jax.ShapeDtypeStruct((L, Bp, Hp), x.dtype),
    )

    grid_spec = pltpu.PrefetchScalarGridSpec(
        num_scalar_prefetch=0,
        grid=(NB, NC),
        in_specs=in_specs,
        out_specs=out_specs,
        scratch_shapes=[
            # Hoisted gi projection, stored in the compute dtype (bf16 halves it).
            pltpu.VMEM((Tc * Bt, 3 * Hp), compute_dtype),
            pltpu.VMEM((L, Bt, Hp), jnp.float32),              # carried hidden state
        ],
    )

    unroll = True if Tc <= 8 else 4   # bounded unroll: LLO overlap w/o code blowup
    kernel = _make_fused_gru_kernel(L, Tc, Bt, Hp, T_valid, T_pad, unroll)

    return pl.pallas_call(
        kernel,
        grid_spec=grid_spec,
        out_shape=out_shape,
        compiler_params=pltpu.CompilerParams(
            dimension_semantics=("parallel", "arbitrary"),
            vmem_limit_bytes=int(vmem_limit),
        ),
    )(*flat_inputs)


# ----------------------------------------------------------------------------
# Parameter construction (PyTorch layout) and one-time layout preparation.
# ----------------------------------------------------------------------------
def init_params(key, ntoken, emsize, nhid, nlayers):
    """Raw parameters in PyTorch nn.GRU layout (w_ih: (3H, Din), gate order r,z,n)."""
    initrange = 0.1
    ks = jax.random.split(key, 1 + 4 * nlayers)
    params = {"embedding": jax.random.uniform(
        ks[0], (ntoken, emsize), jnp.float32, -initrange, initrange)}
    stdv = 1.0 / math.sqrt(nhid)
    layers = []
    for l in range(nlayers):
        din = emsize if l == 0 else nhid
        k_wih, k_whh, k_bih, k_bhh = ks[1 + 4 * l: 5 + 4 * l]
        layers.append({
            "w_ih": jax.random.uniform(k_wih, (3 * nhid, din), jnp.float32, -stdv, stdv),
            "w_hh": jax.random.uniform(k_whh, (3 * nhid, nhid), jnp.float32, -stdv, stdv),
            "b_ih": jax.random.uniform(k_bih, (3 * nhid,), jnp.float32, -stdv, stdv),
            "b_hh": jax.random.uniform(k_bhh, (3 * nhid,), jnp.float32, -stdv, stdv),
        })
    params["layers"] = layers
    return params


def prepare_params(params, compute_dtype=jnp.bfloat16):
    """One-time (outside jit) layout prep: transpose weights, lane-pad every gate
    block to a multiple of 128, fold b_ih + (r,z parts of) b_hh into one bias.
    Default compute_dtype=bfloat16 runs the MXU matmuls at native bf16 rate with
    f32 accumulation and halves resident weight VMEM; pass jnp.float32 for a
    bit-accurate path."""
    emb = params["embedding"]
    _, emsize = emb.shape
    nhid = params["layers"][0]["w_hh"].shape[-1]
    Hp = _round_up(nhid, 128)
    Ep = _round_up(emsize, 128)
    H = nhid

    def pad_gate_cols(w_t):   # (Din, 3H) -> (Din, 3*Hp), per-gate zero pad
        return jnp.concatenate(
            [jnp.pad(w_t[:, g * H:(g + 1) * H], ((0, 0), (0, Hp - H))) for g in range(3)],
            axis=1)

    prepped_layers = []
    for l, lp in enumerate(params["layers"]):
        din = lp["w_ih"].shape[-1]
        din_p = Ep if l == 0 else Hp
        wih_t = jnp.pad(pad_gate_cols(lp["w_ih"].T), ((0, din_p - din), (0, 0)))
        whh_t = jnp.pad(pad_gate_cols(lp["w_hh"].T), ((0, Hp - H), (0, 0)))
        b_ih, b_hh = lp["b_ih"], lp["b_hh"]
        b_gi = jnp.concatenate([
            jnp.pad(b_ih[0 * H:1 * H] + b_hh[0 * H:1 * H], (0, Hp - H)),
            jnp.pad(b_ih[1 * H:2 * H] + b_hh[1 * H:2 * H], (0, Hp - H)),
            jnp.pad(b_ih[2 * H:3 * H], (0, Hp - H)),
        ]).reshape(1, 3 * Hp)
        b_hn = jnp.pad(b_hh[2 * H:3 * H], (0, Hp - H)).reshape(1, Hp)
        prepped_layers.append({
            "wih_t": wih_t.astype(compute_dtype),
            "whh_t": whh_t.astype(compute_dtype),
            "b_gi": b_gi.astype(jnp.float32),
            "b_hn": b_hn.astype(jnp.float32),
        })

    return {
        "embedding": jnp.pad(emb, ((0, 0), (0, Ep - emsize))),   # (ntoken, Ep) f32
        "layers": prepped_layers,
    }


# ----------------------------------------------------------------------------
# Forward pass (eval mode: every dropout is identity).
# ----------------------------------------------------------------------------
@partial(jax.jit, static_argnames=("max_time_chunk",))
def rnn_model_forward(prepped, tokens, hidden, max_time_chunk=None):
    """tokens: (T, B) int32; hidden: (nlayers, B, nhid).
    Returns (output (T*B, nhid), h_n (nlayers, B, nhid))."""
    T, B = tokens.shape
    L, _, H = hidden.shape
    Hp = prepped["layers"][0]["whh_t"].shape[0]
    Ep = prepped["embedding"].shape[1]
    Bp = _round_up(B, 8)

    # ---- VMEM-budget-driven tiling (all static at trace time) --------------
    cdt = prepped["layers"][0]["wih_t"].dtype
    w_item = jnp.dtype(cdt).itemsize
    w_bytes = sum(int(lp["wih_t"].size + lp["whh_t"].size) * w_item
                  for lp in prepped["layers"])
    bias_bytes = sum(int(lp["b_gi"].size + lp["b_hn"].size) * 4
                     for lp in prepped["layers"])
    single_buf_w = w_bytes > _SINGLE_BUFFER_WEIGHT_BYTES
    fixed_w = w_bytes * (1 if single_buf_w else 2) + 2 * bias_bytes

    budget = _vmem_budget_bytes()
    Bt, Tc = _choose_tiling(T, Bp, Ep, Hp, L, fixed_w, w_item, budget)
    if max_time_chunk is not None:
        Tc = max(1, min(Tc, int(max_time_chunk)))
    T_pad = _round_up(T, Tc)

    # embedded_dropout(p=0) + LockedDropout(eval) == plain embedding lookup.
    emb = jnp.take(prepped["embedding"], tokens, axis=0)        # (T, B, Ep)

    # Pad time to a multiple of Tc and batch to a multiple of the tile; no
    # reshape/transpose re-tiling — the kernel uses 3-D (Tc, Bt, *) blocks.
    x = jnp.pad(emb, ((0, T_pad - T), (0, Bp - B), (0, 0)))     # (T_pad, Bp, Ep)
    h0 = jnp.pad(hidden, ((0, 0), (0, Bp - B), (0, Hp - H)))    # (L, Bp, Hp)

    y, h_last = _fused_gru_pallas(
        x, h0, prepped["layers"],
        Tc=Tc, Bt=Bt, Hp=Hp, T_valid=T,
        single_buffer_weights=single_buf_w, vmem_limit=budget)

    output = y[:T, :B, :H].reshape(T * B, H)                    # LockedDropout(eval)=id
    h_n = h_last[:, :B, :H]
    return output, h_n


# ----------------------------------------------------------------------------
# Pure-JAX reference (matches PyTorch nn.GRU math) for correctness checking.
# ----------------------------------------------------------------------------
def _gru_reference(params, tokens, hidden):
    emb = jnp.take(params["embedding"], tokens, axis=0)
    x = emb
    h_n = []
    for l, lp in enumerate(params["layers"]):
        H = hidden.shape[-1]
        wih, whh, bih, bhh = lp["w_ih"], lp["w_hh"], lp["b_ih"], lp["b_hh"]

        def step(h, x_t):
            gi = x_t @ wih.T + bih
            gh = h @ whh.T + bhh
            r = jax.nn.sigmoid(gi[:, :H] + gh[:, :H])
            z = jax.nn.sigmoid(gi[:, H:2 * H] + gh[:, H:2 * H])
            n = jnp.tanh(gi[:, 2 * H:] + r * gh[:, 2 * H:])
            h_new = (1.0 - z) * n + z * h
            return h_new, h_new

        h_last, ys = jax.lax.scan(step, hidden[l], x)
        x = ys
        h_n.append(h_last)
    T, B, H = x.shape
    return x.reshape(T * B, H), jnp.stack(h_n, axis=0)


if __name__ == "__main__":
    # Small, module-consistent shapes.
    ntoken, emsize, nhid, nlayers = 50, 32, 32, 2
    T, B = 8, 2  # seq len, batch

    key = jax.random.PRNGKey(0)
    k_param, k_tok = jax.random.split(key)
    params = init_params(k_param, ntoken, emsize, nhid, nlayers)

    tokens = jax.random.randint(k_tok, (T, B), 0, ntoken, dtype=jnp.int32)
    hidden = jnp.zeros((nlayers, B, nhid), jnp.float32)  # init_hidden(bsz)

    ref_out, ref_hn = _gru_reference(params, tokens, hidden)

    # ---- f32 weights: bit-accurate path ------------------------------------
    prepped_f32 = prepare_params(params, compute_dtype=jnp.float32)
    out_f32, hn_f32 = rnn_model_forward(prepped_f32, tokens, hidden)
    jax.block_until_ready((out_f32, hn_f32))
    assert out_f32.shape == (T * B, nhid)
    assert hn_f32.shape == (nlayers, B, nhid)
    assert jnp.allclose(out_f32, ref_out, atol=1e-4, rtol=1e-4), (
        float(jnp.max(jnp.abs(out_f32 - ref_out))))
    assert jnp.allclose(hn_f32, ref_hn, atol=1e-4, rtol=1e-4), (
        float(jnp.max(jnp.abs(hn_f32 - ref_hn))))

    # ---- f32 weights, forced small time chunk: exercises T padding + masking
    out_pad, hn_pad = rnn_model_forward(prepped_f32, tokens, hidden, max_time_chunk=3)
    jax.block_until_ready((out_pad, hn_pad))
    assert jnp.allclose(out_pad, ref_out, atol=1e-4, rtol=1e-4), (
        float(jnp.max(jnp.abs(out_pad - ref_out))))
    assert jnp.allclose(hn_pad, ref_hn, atol=1e-4, rtol=1e-4), (
        float(jnp.max(jnp.abs(hn_pad - ref_hn))))

    # ---- bf16 weights (default / recommended production path) --------------
    prepped_bf16 = prepare_params(params)   # compute_dtype=bfloat16 by default
    out_bf, hn_bf = rnn_model_forward(prepped_bf16, tokens, hidden)
    jax.block_until_ready((out_bf, hn_bf))
    assert jnp.allclose(out_bf, ref_out, atol=2e-2, rtol=2e-2), (
        float(jnp.max(jnp.abs(out_bf - ref_out))))
    assert jnp.allclose(hn_bf, ref_hn, atol=2e-2, rtol=2e-2), (
        float(jnp.max(jnp.abs(hn_bf - ref_hn))))

    print("KERNEL_OK")
</pallas_src>

<mosaic_0001>
module attributes {stable_mosaic.version = 11 : i64} {
  func.func @kernel(%arg0: i32, %arg1: i32, %arg2: memref<8x8x128xf32, #tpu.memory_space<vmem>>, %arg3: memref<128x384xf32, #tpu.memory_space<vmem>>, %arg4: memref<128x384xf32, #tpu.memory_space<vmem>>, %arg5: memref<1x384xf32, #tpu.memory_space<vmem>>, %arg6: memref<1x128xf32, #tpu.memory_space<vmem>>, %arg7: memref<128x384xf32, #tpu.memory_space<vmem>>, %arg8: memref<128x384xf32, #tpu.memory_space<vmem>>, %arg9: memref<1x384xf32, #tpu.memory_space<vmem>>, %arg10: memref<1x128xf32, #tpu.memory_space<vmem>>, %arg11: memref<2x8x128xf32, #tpu.memory_space<vmem>>, %arg12: memref<8x8x128xf32, #tpu.memory_space<vmem>>, %arg13: memref<2x8x128xf32, #tpu.memory_space<vmem>>, %arg14: memref<64x384xf32, #tpu.memory_space<vmem>>, %arg15: memref<2x8x128xf32, #tpu.memory_space<vmem>>) attributes {dimension_semantics = [#tpu.dimension_semantics<parallel>, #tpu.dimension_semantics<arbitrary>], iteration_bounds = array<i64: 1, 1>, scalar_prefetch = 0 : i64, scratch_operands = 2 : i64, tpu.core_type = #tpu.core_type<tc>, window_params = [{transform_indices = @transform_0, window_bounds = array<i64: 8, 8, 128>}, {pipeline_mode = #tpu.pipeline_mode<synchronous>, transform_indices = @transform_1, window_bounds = array<i64: 128, 384>}, {pipeline_mode = #tpu.pipeline_mode<synchronous>, transform_indices = @transform_2, window_bounds = array<i64: 128, 384>}, {pipeline_mode = #tpu.pipeline_mode<synchronous>, transform_indices = @transform_3, window_bounds = array<i64: 1, 384>}, {pipeline_mode = #tpu.pipeline_mode<synchronous>, transform_indices = @transform_4, window_bounds = array<i64: 1, 128>}, {pipeline_mode = #tpu.pipeline_mode<synchronous>, transform_indices = @transform_5, window_bounds = array<i64: 128, 384>}, {pipeline_mode = #tpu.pipeline_mode<synchronous>, transform_indices = @transform_6, window_bounds = array<i64: 128, 384>}, {pipeline_mode = #tpu.pipeline_mode<synchronous>, transform_indices = @transform_7, window_bounds = array<i64: 1, 384>}, {pipeline_mode = #tpu.pipeline_mode<synchronous>, transform_indices = @transform_8, window_bounds = array<i64: 1, 128>}, {transform_indices = @transform_9, window_bounds = array<i64: 2, 8, 128>}, {transform_indices = @transform_10, window_bounds = array<i64: 8, 8, 128>}, {transform_indices = @transform_11, window_bounds = array<i64: 2, 8, 128>}]} {
    %c0_i32 = arith.constant 0 : i32
    %0 = arith.cmpi eq, %arg1, %c0_i32 : i32
    %1 = arith.extui %0 : i1 to i32
    %c0_i32_0 = arith.constant 0 : i32
    %2 = arith.cmpi ne, %1, %c0_i32_0 : i32
    scf.if %2 {
      %c0_206 = arith.constant 0 : index
      %c0_207 = arith.constant 0 : index
      %c0_208 = arith.constant 0 : index
      %642 = vector.load %arg11[%c0_206, %c0_207, %c0_208] : memref<2x8x128xf32, #tpu.memory_space<vmem>>, vector<2x8x128xf32>
      %c0_209 = arith.constant 0 : index
      %c0_210 = arith.constant 0 : index
      %c0_211 = arith.constant 0 : index
      %643 = vector.load %arg15[%c0_209, %c0_210, %c0_211] : memref<2x8x128xf32, #tpu.memory_space<vmem>>, vector<2x8x128xf32>
      tpu.vector_store %arg15[%c0_209, %c0_210, %c0_211], %642 {strides = array<i32>} : memref<2x8x128xf32, #tpu.memory_space<vmem>>, vector<2x8x128xf32>,
    } else {
    }
    %c0 = arith.constant 0 : index
    %c0_1 = arith.constant 0 : index
    %c0_2 = arith.constant 0 : index
    %3 = vector.load %arg2[%c0, %c0_1, %c0_2] : memref<8x8x128xf32, #tpu.memory_space<vmem>>, vector<8x8x128xf32>
    %4 = vector.shape_cast %3 : vector<8x8x128xf32> to vector<64x128xf32>
    %c0_3 = arith.constant 0 : index
    %c0_4 = arith.constant 0 : index
    %5 = vector.load %arg3[%c0_3, %c0_4] : memref<128x384xf32, #tpu.memory_space<vmem>>, vector<128x384xf32>
    %cst = arith.constant dense<0.000000e+00> : vector<64x384xf32>
    %6 = tpu.matmul %4, %5, %cst {dimension_numbers = #tpu.dot_dimension_numbers<[1], [0], [0], [1], [0, 0, 1, 1], [], []>} : vector<64x128xf32>, vector<128x384xf32>, vector<64x384xf32> -> vector<64x384xf32>
    %c0_5 = arith.constant 0 : index
    %c0_6 = arith.constant 0 : index
    %7 = vector.load %arg5[%c0_5, %c0_6] : memref<1x384xf32, #tpu.memory_space<vmem>>, vector<1x384xf32>
    %8 = vector.broadcast %7 : vector<1x384xf32> to vector<64x384xf32>
    %9 = arith.addf %6, %8 : vector<64x384xf32>
    %c0_7 = arith.constant 0 : index
    %c0_8 = arith.constant 0 : index
    %10 = vector.load %arg14[%c0_7, %c0_8] : memref<64x384xf32, #tpu.memory_space<vmem>>, vector<64x384xf32>
    tpu.vector_store %arg14[%c0_7, %c0_8], %9 {strides = array<i32>} : memref<64x384xf32, #tpu.memory_space<vmem>>, vector<64x384xf32>,
    %c0_9 = arith.constant 0 : index
    %c0_10 = arith.constant 0 : index
    %11 = vector.load %arg6[%c0_9, %c0_10] : memref<1x128xf32, #tpu.memory_space<vmem>>, vector<1x128xf32>
    %c0_11 = arith.constant 0 : index
    %c0_12 = arith.constant 0 : index
    %c0_13 = arith.constant 0 : index
    %12 = vector.load %arg15[%c0_11, %c0_12, %c0_13] : memref<2x8x128xf32, #tpu.memory_space<vmem>>, vector<1x8x128xf32>
    %13 = vector.shape_cast %12 : vector<1x8x128xf32> to vector<8x128xf32>
    %c0_i32_14 = arith.constant 0 : i32
    %c0_15 = arith.constant 0 : index
    %c0_16 = arith.constant 0 : index
    %14 = vector.load %arg4[%c0_15, %c0_16] : memref<128x384xf32, #tpu.memory_space<vmem>>, vector<128x384xf32>
    %cst_17 = arith.constant dense<0.000000e+00> : vector<8x384xf32>
    %15 = tpu.matmul %13, %14, %cst_17 {dimension_numbers = #tpu.dot_dimension_numbers<[1], [0], [0], [1], [0, 0, 1, 1], [], []>} : vector<8x128xf32>, vector<128x384xf32>, vector<8x384xf32> -> vector<8x384xf32>
    %c8_i32 = arith.constant 8 : i32
    %16 = arith.muli %c0_i32_14, %c8_i32 : i32
    %17 = tpu.assume_multiple %16, 8 : i32
    %18 = arith.index_cast %17 : i32 to index
    %c0_18 = arith.constant 0 : index
    %19 = vector.load %arg14[%18, %c0_18] : memref<64x384xf32, #tpu.memory_space<vmem>>, vector<8x384xf32>
    %20 = vector.extract_strided_slice %19 {offsets = [0, 0], sizes = [8, 128], strides = [1, 1]} : vector<8x384xf32> to vector<8x128xf32>
    %21 = vector.extract_strided_slice %15 {offsets = [0, 0], sizes = [8, 128], strides = [1, 1]} : vector<8x384xf32> to vector<8x128xf32>
    %22 = arith.addf %20, %21 : vector<8x128xf32>
    %23 = arith.negf %22 : vector<8x128xf32>
    %24 = math.exp %23 : vector<8x128xf32>
    %cst_19 = arith.constant 1.000000e+00 : f32
    %25 = vector.broadcast %cst_19 : f32 to vector<8x128xf32>
    %26 = arith.addf %25, %24 : vector<8x128xf32>
    %27 = arith.divf %25, %26 : vector<8x128xf32>
    %28 = vector.extract_strided_slice %19 {offsets = [0, 128], sizes = [8, 128], strides = [1, 1]} : vector<8x384xf32> to vector<8x128xf32>
    %29 = vector.extract_strided_slice %15 {offsets = [0, 128], sizes = [8, 128], strides = [1, 1]} : vector<8x384xf32> to vector<8x128xf32>
    %30 = arith.addf %28, %29 : vector<8x128xf32>
    %31 = arith.negf %30 : vector<8x128xf32>
    %32 = math.exp %31 : vector<8x128xf32>
    %cst_20 = arith.constant 1.000000e+00 : f32
    %33 = vector.broadcast %cst_20 : f32 to vector<8x128xf32>
    %34 = arith.addf %33, %32 : vector<8x128xf32>
    %35 = arith.divf %33, %34 : vector<8x128xf32>
    %36 = vector.extract_strided_slice %19 {offsets = [0, 256], sizes = [8, 128], strides = [1, 1]} : vector<8x384xf32> to vector<8x128xf32>
    %37 = vector.extract_strided_slice %15 {offsets = [0, 256], sizes = [8, 128], strides = [1, 1]} : vector<8x384xf32> to vector<8x128xf32>
    %38 = vector.broadcast %11 : vector<1x128xf32> to vector<8x128xf32>
    %39 = arith.addf %37, %38 : vector<8x128xf32>
    %40 = arith.mulf %27, %39 : vector<8x128xf32>
    %41 = arith.addf %36, %40 : vector<8x128xf32>
    %42 = math.tanh %41 : vector<8x128xf32>
    %cst_21 = arith.constant 1.000000e+00 : f32
    %43 = vector.broadcast %cst_21 : f32 to vector<8x128xf32>
    %44 = arith.subf %43, %35 : vector<8x128xf32>
    %45 = arith.mulf %44, %42 : vector<8x128xf32>
    %46 = arith.mulf %35, %13 : vector<8x128xf32>
    %47 = arith.addf %45, %46 : vector<8x128xf32>
    %48 = arith.index_cast %c0_i32_14 : i32 to index
    %c0_22 = arith.constant 0 : index
    %c0_23 = arith.constant 0 : index
    %49 = vector.load %arg12[%48, %c0_22, %c0_23] : memref<8x8x128xf32, #tpu.memory_space<vmem>>, vector<1x8x128xf32>
    %50 = vector.shape_cast %49 : vector<1x8x128xf32> to vector<8x128xf32>
    %51 = vector.shape_cast %47 : vector<8x128xf32> to vector<1x8x128xf32>
    tpu.vector_store %arg12[%48, %c0_22, %c0_23], %51 {strides = array<i32>} : memref<8x8x128xf32, #tpu.memory_space<vmem>>, vector<1x8x128xf32>,
    %c1_i32 = arith.constant 1 : i32
    %c0_24 = arith.constant 0 : index
    %c0_25 = arith.constant 0 : index
    %52 = vector.load %arg4[%c0_24, %c0_25] : memref<128x384xf32, #tpu.memory_space<vmem>>, vector<128x384xf32>
    %cst_26 = arith.constant dense<0.000000e+00> : vector<8x384xf32>
    %53 = tpu.matmul %47, %52, %cst_26 {dimension_numbers = #tpu.dot_dimension_numbers<[1], [0], [0], [1], [0, 0, 1, 1], [], []>} : vector<8x128xf32>, vector<128x384xf32>, vector<8x384xf32> -> vector<8x384xf32>
    %c8_i32_27 = arith.constant 8 : i32
    %54 = arith.muli %c1_i32, %c8_i32_27 : i32
    %55 = tpu.assume_multiple %54, 8 : i32
    %56 = arith.index_cast %55 : i32 to index
    %c0_28 = arith.constant 0 : index
    %57 = vector.load %arg14[%56, %c0_28] : memref<64x384xf32, #tpu.memory_space<vmem>>, vector<8x384xf32>
    %58 = vector.extract_strided_slice %57 {offsets = [0, 0], sizes = [8, 128], strides = [1, 1]} : vector<8x384xf32> to vector<8x128xf32>
    %59 = vector.extract_strided_slice %53 {offsets = [0, 0], sizes = [8, 128], strides = [1, 1]} : vector<8x384xf32> to vector<8x128xf32>
    %60 = arith.addf %58, %59 : vector<8x128xf32>
    %61 = arith.negf %60 : vector<8x128xf32>
    %62 = math.exp %61 : vector<8x128xf32>
    %cst_29 = arith.constant 1.000000e+00 : f32
    %63 = vector.broadcast %cst_29 : f32 to vector<8x128xf32>
    %64 = arith.addf %63, %62 : vector<8x128xf32>
    %65 = arith.divf %63, %64 : vector<8x128xf32>
    %66 = vector.extract_strided_slice %57 {offsets = [0, 128], sizes = [8, 128], strides = [1, 1]} : vector<8x384xf32> to vector<8x128xf32>
    %67 = vector.extract_strided_slice %53 {offsets = [0, 128], sizes = [8, 128], strides = [1, 1]} : vector<8x384xf32> to vector<8x128xf32>
    %68 = arith.addf %66, %67 : vector<8x128xf32>
    %69 = arith.negf %68 : vector<8x128xf32>
    %70 = math.exp %69 : vector<8x128xf32>
    %cst_30 = arith.constant 1.000000e+00 : f32
    %71 = vector.broadcast %cst_30 : f32 to vector<8x128xf32>
    %72 = arith.addf %71, %70 : vector<8x128xf32>
    %73 = arith.divf %71, %72 : vector<8x128xf32>
    %74 = vector.extract_strided_slice %57 {offsets = [0, 256], sizes = [8, 128], strides = [1, 1]} : vector<8x384xf32> to vector<8x128xf32>
    %75 = vector.extract_strided_slice %53 {offsets = [0, 256], sizes = [8, 128], strides = [1, 1]} : vector<8x384xf32> to vector<8x128xf32>
    %76 = vector.broadcast %11 : vector<1x128xf32> to vector<8x128xf32>
    %77 = arith.addf %75, %76 : vector<8x128xf32>
    %78 = arith.mulf %65, %77 : vector<8x128xf32>
    %79 = arith.addf %74, %78 : vector<8x128xf32>
    %80 = math.tanh %79 : vector<8x128xf32>
    %cst_31 = arith.constant 1.000000e+00 : f32
    %81 = vector.broadcast %cst_31 : f32 to vector<8x128xf32>
    %82 = arith.subf %81, %73 : vector<8x128xf32>
    %83 = arith.mulf %82, %80 : vector<8x128xf32>
    %84 = arith.mulf %73, %47 : vector<8x128xf32>
    %85 = arith.addf %83, %84 : vector<8x128xf32>
    %86 = arith.index_cast %c1_i32 : i32 to index
    %c0_32 = arith.constant 0 : index
    %c0_33 = arith.constant 0 : index
    %87 = vector.load %arg12[%86, %c0_32, %c0_33] : memref<8x8x128xf32, #tpu.memory_space<vmem>>, vector<1x8x128xf32>
    %88 = vector.shape_cast %87 : vector<1x8x128xf32> to vector<8x128xf32>
    %89 = vector.shape_cast %85 : vector<8x128xf32> to vector<1x8x128xf32>
    tpu.vector_store %arg12[%86, %c0_32, %c0_33], %89 {strides = array<i32>} : memref<8x8x128xf32, #tpu.memory_space<vmem>>, vector<1x8x128xf32>,
    %c2_i32 = arith.constant 2 : i32
    %c0_34 = arith.constant 0 : index
    %c0_35 = arith.constant 0 : index
    %90 = vector.load %arg4[%c0_34, %c0_35] : memref<128x384xf32, #tpu.memory_space<vmem>>, vector<128x384xf32>
    %cst_36 = arith.constant dense<0.000000e+00> : vector<8x384xf32>
    %91 = tpu.matmul %85, %90, %cst_36 {dimension_numbers = #tpu.dot_dimension_numbers<[1], [0], [0], [1], [0, 0, 1, 1], [], []>} : vector<8x128xf32>, vector<128x384xf32>, vector<8x384xf32> -> vector<8x384xf32>
    %c8_i32_37 = arith.constant 8 : i32
    %92 = arith.muli %c2_i32, %c8_i32_37 : i32
    %93 = tpu.assume_multiple %92, 8 : i32
    %94 = arith.index_cast %93 : i32 to index
    %c0_38 = arith.constant 0 : index
    %95 = vector.load %arg14[%94, %c0_38] : memref<64x384xf32, #tpu.memory_space<vmem>>, vector<8x384xf32>
    %96 = vector.extract_strided_slice %95 {offsets = [0, 0], sizes = [8, 128], strides = [1, 1]} : vector<8x384xf32> to vector<8x128xf32>
    %97 = vector.extract_strided_slice %91 {offsets = [0, 0], sizes = [8, 128], strides = [1, 1]} : vector<8x384xf32> to vector<8x128xf32>
    %98 = arith.addf %96, %97 : vector<8x128xf32>
    %99 = arith.negf %98 : vector<8x128xf32>
    %100 = math.exp %99 : vector<8x128xf32>
    %cst_39 = arith.constant 1.000000e+00 : f32
    %101 = vector.broadcast %cst_39 : f32 to vector<8x128xf32>
    %102 = arith.addf %101, %100 : vector<8x128xf32>
    %103 = arith.divf %101, %102 : vector<8x128xf32>
    %104 = vector.extract_strided_slice %95 {offsets = [0, 128], sizes = [8, 128], strides = [1, 1]} : vector<8x384xf32> to vector<8x128xf32>
    %105 = vector.extract_strided_slice %91 {offsets = [0, 128], sizes = [8, 128], strides = [1, 1]} : vector<8x384xf32> to vector<8x128xf32>
    %106 = arith.addf %104, %105 : vector<8x128xf32>
    %107 = arith.negf %106 : vector<8x128xf32>
    %108 = math.exp %107 : vector<8x128xf32>
    %cst_40 = arith.constant 1.000000e+00 : f32
    %109 = vector.broadcast %cst_40 : f32 to vector<8x128xf32>
    %110 = arith.addf %109, %108 : vector<8x128xf32>
    %111 = arith.divf %109, %110 : vector<8x128xf32>
    %112 = vector.extract_strided_slice %95 {offsets = [0, 256], sizes = [8, 128], strides = [1, 1]} : vector<8x384xf32> to vector<8x128xf32>
    %113 = vector.extract_strided_slice %91 {offsets = [0, 256], sizes = [8, 128], strides = [1, 1]} : vector<8x384xf32> to vector<8x128xf32>
    %114 = vector.broadcast %11 : vector<1x128xf32> to vector<8x128xf32>
    %115 = arith.addf %113, %114 : vector<8x128xf32>
    %116 = arith.mulf %103, %115 : vector<8x128xf32>
    %117 = arith.addf %112, %116 : vector<8x128xf32>
    %118 = math.tanh %117 : vector<8x128xf32>
    %cst_41 = arith.constant 1.000000e+00 : f32
    %119 = vector.broadcast %cst_41 : f32 to vector<8x128xf32>
    %120 = arith.subf %119, %111 : vector<8x128xf32>
    %121 = arith.mulf %120, %118 : vector<8x128xf32>
    %122 = arith.mulf %111, %85 : vector<8x128xf32>
    %123 = arith.addf %121, %122 : vector<8x128xf32>
    %124 = arith.index_cast %c2_i32 : i32 to index
    %c0_42 = arith.constant 0 : index
    %c0_43 = arith.constant 0 : index
    %125 = vector.load %arg12[%124, %c0_42, %c0_43] : memref<8x8x128xf32, #tpu.memory_space<vmem>>, vector<1x8x128xf32>
    %126 = vector.shape_cast %125 : vector<1x8x128xf32> to vector<8x128xf32>
    %127 = vector.shape_cast %123 : vector<8x128xf32> to vector<1x8x128xf32>
    tpu.vector_store %arg12[%124, %c0_42, %c0_43], %127 {strides = array<i32>} : memref<8x8x128xf32, #tpu.memory_space<vmem>>, vector<1x8x128xf32>,
    %c3_i32 = arith.constant 3 : i32
    %c0_44 = arith.constant 0 : index
    %c0_45 = arith.constant 0 : index
    %128 = vector.load %arg4[%c0_44, %c0_45] : memref<128x384xf32, #tpu.memory_space<vmem>>, vector<128x384xf32>
    %cst_46 = arith.constant dense<0.000000e+00> : vector<8x384xf32>
    %129 = tpu.matmul %123, %128, %cst_46 {dimension_numbers = #tpu.dot_dimension_numbers<[1], [0], [0], [1], [0, 0, 1, 1], [], []>} : vector<8x128xf32>, vector<128x384xf32>, vector<8x384xf32> -> vector<8x384xf32>
    %c8_i32_47 = arith.constant 8 : i32
    %130 = arith.muli %c3_i32, %c8_i32_47 : i32
    %131 = tpu.assume_multiple %130, 8 : i32
    %132 = arith.index_cast %131 : i32 to index
    %c0_48 = arith.constant 0 : index
    %133 = vector.load %arg14[%132, %c0_48] : memref<64x384xf32, #tpu.memory_space<vmem>>, vector<8x384xf32>
    %134 = vector.extract_strided_slice %133 {offsets = [0, 0], sizes = [8, 128], strides = [1, 1]} : vector<8x384xf32> to vector<8x128xf32>
    %135 = vector.extract_strided_slice %129 {offsets = [0, 0], sizes = [8, 128], strides = [1, 1]} : vector<8x384xf32> to vector<8x128xf32>
    %136 = arith.addf %134, %135 : vector<8x128xf32>
    %137 = arith.negf %136 : vector<8x128xf32>
    %138 = math.exp %137 : vector<8x128xf32>
    %cst_49 = arith.constant 1.000000e+00 : f32
    %139 = vector.broadcast %cst_49 : f32 to vector<8x128xf32>
    %140 = arith.addf %139, %138 : vector<8x128xf32>
    %141 = arith.divf %139, %140 : vector<8x128xf32>
    %142 = vector.extract_strided_slice %133 {offsets = [0, 128], sizes = [8, 128], strides = [1, 1]} : vector<8x384xf32> to vector<8x128xf32>
    %143 = vector.extract_strided_slice %129 {offsets = [0, 128], sizes = [8, 128], strides = [1, 1]} : vector<8x384xf32> to vector<8x128xf32>
    %144 = arith.addf %142, %143 : vector<8x128xf32>
    %145 = arith.negf %144 : vector<8x128xf32>
    %146 = math.exp %145 : vector<8x128xf32>
    %cst_50 = arith.constant 1.000000e+00 : f32
    %147 = vector.broadcast %cst_50 : f32 to vector<8x128xf32>
    %148 = arith.addf %147, %146 : vector<8x128xf32>
    %149 = arith.divf %147, %148 : vector<8x128xf32>
    %150 = vector.extract_strided_slice %133 {offsets = [0, 256], sizes = [8, 128], strides = [1, 1]} : vector<8x384xf32> to vector<8x128xf32>
    %151 = vector.extract_strided_slice %129 {offsets = [0, 256], sizes = [8, 128], strides = [1, 1]} : vector<8x384xf32> to vector<8x128xf32>
    %152 = vector.broadcast %11 : vector<1x128xf32> to vector<8x128xf32>
    %153 = arith.addf %151, %152 : vector<8x128xf32>
    %154 = arith.mulf %141, %153 : vector<8x128xf32>
    %155 = arith.addf %150, %154 : vector<8x128xf32>
    %156 = math.tanh %155 : vector<8x128xf32>
    %cst_51 = arith.constant 1.000000e+00 : f32
    %157 = vector.broadcast %cst_51 : f32 to vector<8x128xf32>
    %158 = arith.subf %157, %149 : vector<8x128xf32>
    %159 = arith.mulf %158, %156 : vector<8x128xf32>
    %160 = arith.mulf %149, %123 : vector<8x128xf32>
    %161 = arith.addf %159, %160 : vector<8x128xf32>
    %162 = arith.index_cast %c3_i32 : i32 to index
    %c0_52 = arith.constant 0 : index
    %c0_53 = arith.constant 0 : index
    %163 = vector.load %arg12[%162, %c0_52, %c0_53] : memref<8x8x128xf32, #tpu.memory_space<vmem>>, vector<1x8x128xf32>
    %164 = vector.shape_cast %163 : vector<1x8x128xf32> to vector<8x128xf32>
    %165 = vector.shape_cast %161 : vector<8x128xf32> to vector<1x8x128xf32>
    tpu.vector_store %arg12[%162, %c0_52, %c0_53], %165 {strides = array<i32>} : memref<8x8x128xf32, #tpu.memory_space<vmem>>, vector<1x8x128xf32>,
    %c4_i32 = arith.constant 4 : i32
    %c0_54 = arith.constant 0 : index
    %c0_55 = arith.constant 0 : index
    %166 = vector.load %arg4[%c0_54, %c0_55] : memref<128x384xf32, #tpu.memory_space<vmem>>, vector<128x384xf32>
    %cst_56 = arith.constant dense<0.000000e+00> : vector<8x384xf32>
    %167 = tpu.matmul %161, %166, %cst_56 {dimension_numbers = #tpu.dot_dimension_numbers<[1], [0], [0], [1], [0, 0, 1, 1], [], []>} : vector<8x128xf32>, vector<128x384xf32>, vector<8x384xf32> -> vector<8x384xf32>
    %c8_i32_57 = arith.constant 8 : i32
    %168 = arith.muli %c4_i32, %c8_i32_57 : i32
    %169 = tpu.assume_multiple %168, 8 : i32
    %170 = arith.index_cast %169 : i32 to index
    %c0_58 = arith.constant 0 : index
    %171 = vector.load %arg14[%170, %c0_58] : memref<64x384xf32, #tpu.memory_space<vmem>>, vector<8x384xf32>
    %172 = vector.extract_strided_slice %171 {offsets = [0, 0], sizes = [8, 128], strides = [1, 1]} : vector<8x384xf32> to vector<8x128xf32>
    %173 = vector.extract_strided_slice %167 {offsets = [0, 0], sizes = [8, 128], strides = [1, 1]} : vector<8x384xf32> to vector<8x128xf32>
    %174 = arith.addf %172, %173 : vector<8x128xf32>
    %175 = arith.negf %174 : vector<8x128xf32>
    %176 = math.exp %175 : vector<8x128xf32>
    %cst_59 = arith.constant 1.000000e+00 : f32
    %177 = vector.broadcast %cst_59 : f32 to vector<8x128xf32>
    %178 = arith.addf %177, %176 : vector<8x128xf32>
    %179 = arith.divf %177, %178 : vector<8x128xf32>
    %180 = vector.extract_strided_slice %171 {offsets = [0, 128], sizes = [8, 128], strides = [1, 1]} : vector<8x384xf32> to vector<8x128xf32>
    %181 = vector.extract_strided_slice %167 {offsets = [0, 128], sizes = [8, 128], strides = [1, 1]} : vector<8x384xf32> to vector<8x128xf32>
    %182 = arith.addf %180, %181 : vector<8x128xf32>
    %183 = arith.negf %182 : vector<8x128xf32>
    %184 = math.exp %183 : vector<8x128xf32>
    %cst_60 = arith.constant 1.000000e+00 : f32
    %185 = vector.broadcast %cst_60 : f32 to vector<8x128xf32>
    %186 = arith.addf %185, %184 : vector<8x128xf32>
    %187 = arith.divf %185, %186 : vector<8x128xf32>
    %188 = vector.extract_strided_slice %171 {offsets = [0, 256], sizes = [8, 128], strides = [1, 1]} : vector<8x384xf32> to vector<8x128xf32>
    %189 = vector.extract_strided_slice %167 {offsets = [0, 256], sizes = [8, 128], strides = [1, 1]} : vector<8x384xf32> to vector<8x128xf32>
    %190 = vector.broadcast %11 : vector<1x128xf32> to vector<8x128xf32>
    %191 = arith.addf %189, %190 : vector<8x128xf32>
    %192 = arith.mulf %179, %191 : vector<8x128xf32>
    %193 = arith.addf %188, %192 : vector<8x128xf32>
    %194 = math.tanh %193 : vector<8x128xf32>
    %cst_61 = arith.constant 1.000000e+00 : f32
    %195 = vector.broadcast %cst_61 : f32 to vector<8x128xf32>
    %196 = arith.subf %195, %187 : vector<8x128xf32>
    %197 = arith.mulf %196, %194 : vector<8x128xf32>
    %198 = arith.mulf %187, %161 : vector<8x128xf32>
    %199 = arith.addf %197, %198 : vector<8x128xf32>
    %200 = arith.index_cast %c4_i32 : i32 to index
    %c0_62 = arith.constant 0 : index
    %c0_63 = arith.constant 0 : index
    %201 = vector.load %arg12[%200, %c0_62, %c0_63] : memref<8x8x128xf32, #tpu.memory_space<vmem>>, vector<1x8x128xf32>
    %202 = vector.shape_cast %201 : vector<1x8x128xf32> to vector<8x128xf32>
    %203 = vector.shape_cast %199 : vector<8x128xf32> to vector<1x8x128xf32>
    tpu.vector_store %arg12[%200, %c0_62, %c0_63], %203 {strides = array<i32>} : memref<8x8x128xf32, #tpu.memory_space<vmem>>, vector<1x8x128xf32>,
    %c5_i32 = arith.constant 5 : i32
    %c0_64 = arith.constant 0 : index
    %c0_65 = arith.constant 0 : index
    %204 = vector.load %arg4[%c0_64, %c0_65] : memref<128x384xf32, #tpu.memory_space<vmem>>, vector<128x384xf32>
    %cst_66 = arith.constant dense<0.000000e+00> : vector<8x384xf32>
    %205 = tpu.matmul %199, %204, %cst_66 {dimension_numbers = #tpu.dot_dimension_numbers<[1], [0], [0], [1], [0, 0, 1, 1], [], []>} : vector<8x128xf32>, vector<128x384xf32>, vector<8x384xf32> -> vector<8x384xf32>
    %c8_i32_67 = arith.constant 8 : i32
    %206 = arith.muli %c5_i32, %c8_i32_67 : i32
    %207 = tpu.assume_multiple %206, 8 : i32
    %208 = arith.index_cast %207 : i32 to index
    %c0_68 = arith.constant 0 : index
    %209 = vector.load %arg14[%208, %c0_68] : memref<64x384xf32, #tpu.memory_space<vmem>>, vector<8x384xf32>
    %210 = vector.extract_strided_slice %209 {offsets = [0, 0], sizes = [8, 128], strides = [1, 1]} : vector<8x384xf32> to vector<8x128xf32>
    %211 = vector.extract_strided_slice %205 {offsets = [0, 0], sizes = [8, 128], strides = [1, 1]} : vector<8x384xf32> to vector<8x128xf32>
    %212 = arith.addf %210, %211 : vector<8x128xf32>
    %213 = arith.negf %212 : vector<8x128xf32>
    %214 = math.exp %213 : vector<8x128xf32>
    %cst_69 = arith.constant 1.000000e+00 : f32
    %215 = vector.broadcast %cst_69 : f32 to vector<8x128xf32>
    %216 = arith.addf %215, %214 : vector<8x128xf32>
    %217 = arith.divf %215, %216 : vector<8x128xf32>
    %218 = vector.extract_strided_slice %209 {offsets = [0, 128], sizes = [8, 128], strides = [1, 1]} : vector<8x384xf32> to vector<8x128xf32>
    %219 = vector.extract_strided_slice %205 {offsets = [0, 128], sizes = [8, 128], strides = [1, 1]} : vector<8x384xf32> to vector<8x128xf32>
    %220 = arith.addf %218, %219 : vector<8x128xf32>
    %221 = arith.negf %220 : vector<8x128xf32>
    %222 = math.exp %221 : vector<8x128xf32>
    %cst_70 = arith.constant 1.000000e+00 : f32
    %223 = vector.broadcast %cst_70 : f32 to vector<8x128xf32>
    %224 = arith.addf %223, %222 : vector<8x128xf32>
    %225 = arith.divf %223, %224 : vector<8x128xf32>
    %226 = vector.extract_strided_slice %209 {offsets = [0, 256], sizes = [8, 128], strides = [1, 1]} : vector<8x384xf32> to vector<8x128xf32>
    %227 = vector.extract_strided_slice %205 {offsets = [0, 256], sizes = [8, 128], strides = [1, 1]} : vector<8x384xf32> to vector<8x128xf32>
    %228 = vector.broadcast %11 : vector<1x128xf32> to vector<8x128xf32>
    %229 = arith.addf %227, %228 : vector<8x128xf32>
    %230 = arith.mulf %217, %229 : vector<8x128xf32>
    %231 = arith.addf %226, %230 : vector<8x128xf32>
    %232 = math.tanh %231 : vector<8x128xf32>
    %cst_71 = arith.constant 1.000000e+00 : f32
    %233 = vector.broadcast %cst_71 : f32 to vector<8x128xf32>
    %234 = arith.subf %233, %225 : vector<8x128xf32>
    %235 = arith.mulf %234, %232 : vector<8x128xf32>
    %236 = arith.mulf %225, %199 : vector<8x128xf32>
    %237 = arith.addf %235, %236 : vector<8x128xf32>
    %238 = arith.index_cast %c5_i32 : i32 to index
    %c0_72 = arith.constant 0 : index
    %c0_73 = arith.constant 0 : index
    %239 = vector.load %arg12[%238, %c0_72, %c0_73] : memref<8x8x128xf32, #tpu.memory_space<vmem>>, vector<1x8x128xf32>
    %240 = vector.shape_cast %239 : vector<1x8x128xf32> to vector<8x128xf32>
    %241 = vector.shape_cast %237 : vector<8x128xf32> to vector<1x8x128xf32>
    tpu.vector_store %arg12[%238, %c0_72, %c0_73], %241 {strides = array<i32>} : memref<8x8x128xf32, #tpu.memory_space<vmem>>, vector<1x8x128xf32>,
    %c6_i32 = arith.constant 6 : i32
    %c0_74 = arith.constant 0 : index
    %c0_75 = arith.constant 0 : index
    %242 = vector.load %arg4[%c0_74, %c0_75] : memref<128x384xf32, #tpu.memory_space<vmem>>, vector<128x384xf32>
    %cst_76 = arith.constant dense<0.000000e+00> : vector<8x384xf32>
    %243 = tpu.matmul %237, %242, %cst_76 {dimension_numbers = #tpu.dot_dimension_numbers<[1], [0], [0], [1], [0, 0, 1, 1], [], []>} : vector<8x128xf32>, vector<128x384xf32>, vector<8x384xf32> -> vector<8x384xf32>
    %c8_i32_77 = arith.constant 8 : i32
    %244 = arith.muli %c6_i32, %c8_i32_77 : i32
    %245 = tpu.assume_multiple %244, 8 : i32
    %246 = arith.index_cast %245 : i32 to index
    %c0_78 = arith.constant 0 : index
    %247 = vector.load %arg14[%246, %c0_78] : memref<64x384xf32, #tpu.memory_space<vmem>>, vector<8x384xf32>
    %248 = vector.extract_strided_slice %247 {offsets = [0, 0], sizes = [8, 128], strides = [1, 1]} : vector<8x384xf32> to vector<8x128xf32>
    %249 = vector.extract_strided_slice %243 {offsets = [0, 0], sizes = [8, 128], strides = [1, 1]} : vector<8x384xf32> to vector<8x128xf32>
    %250 = arith.addf %248, %249 : vector<8x128xf32>
    %251 = arith.negf %250 : vector<8x128xf32>
    %252 = math.exp %251 : vector<8x128xf32>
    %cst_79 = arith.constant 1.000000e+00 : f32
    %253 = vector.broadcast %cst_79 : f32 to vector<8x128xf32>
    %254 = arith.addf %253, %252 : vector<8x128xf32>
    %255 = arith.divf %253, %254 : vector<8x128xf32>
    %256 = vector.extract_strided_slice %247 {offsets = [0, 128], sizes = [8, 128], strides = [1, 1]} : vector<8x384xf32> to vector<8x128xf32>
    %257 = vector.extract_strided_slice %243 {offsets = [0, 128], sizes = [8, 128], strides = [1, 1]} : vector<8x384xf32> to vector<8x128xf32>
    %258 = arith.addf %256, %257 : vector<8x128xf32>
    %259 = arith.negf %258 : vector<8x128xf32>
    %260 = math.exp %259 : vector<8x128xf32>
    %cst_80 = arith.constant 1.000000e+00 : f32
    %261 = vector.broadcast %cst_80 : f32 to vector<8x128xf32>
    %262 = arith.addf %261, %260 : vector<8x128xf32>
    %263 = arith.divf %261, %262 : vector<8x128xf32>
    %264 = vector.extract_strided_slice %247 {offsets = [0, 256], sizes = [8, 128], strides = [1, 1]} : vector<8x384xf32> to vector<8x128xf32>
    %265 = vector.extract_strided_slice %243 {offsets = [0, 256], sizes = [8, 128], strides = [1, 1]} : vector<8x384xf32> to vector<8x128xf32>
    %266 = vector.broadcast %11 : vector<1x128xf32> to vector<8x128xf32>
    %267 = arith.addf %265, %266 : vector<8x128xf32>
    %268 = arith.mulf %255, %267 : vector<8x128xf32>
    %269 = arith.addf %264, %268 : vector<8x128xf32>
    %270 = math.tanh %269 : vector<8x128xf32>
    %cst_81 = arith.constant 1.000000e+00 : f32
    %271 = vector.broadcast %cst_81 : f32 to vector<8x128xf32>
    %272 = arith.subf %271, %263 : vector<8x128xf32>
    %273 = arith.mulf %272, %270 : vector<8x128xf32>
    %274 = arith.mulf %263, %237 : vector<8x128xf32>
    %275 = arith.addf %273, %274 : vector<8x128xf32>
    %276 = arith.index_cast %c6_i32 : i32 to index
    %c0_82 = arith.constant 0 : index
    %c0_83 = arith.constant 0 : index
    %277 = vector.load %arg12[%276, %c0_82, %c0_83] : memref<8x8x128xf32, #tpu.memory_space<vmem>>, vector<1x8x128xf32>
    %278 = vector.shape_cast %277 : vector<1x8x128xf32> to vector<8x128xf32>
    %279 = vector.shape_cast %275 : vector<8x128xf32> to vector<1x8x128xf32>
    tpu.vector_store %arg12[%276, %c0_82, %c0_83], %279 {strides = array<i32>} : memref<8x8x128xf32, #tpu.memory_space<vmem>>, vector<1x8x128xf32>,
    %c7_i32 = arith.constant 7 : i32
    %c0_84 = arith.constant 0 : index
    %c0_85 = arith.constant 0 : index
    %280 = vector.load %arg4[%c0_84, %c0_85] : memref<128x384xf32, #tpu.memory_space<vmem>>, vector<128x384xf32>
    %cst_86 = arith.constant dense<0.000000e+00> : vector<8x384xf32>
    %281 = tpu.matmul %275, %280, %cst_86 {dimension_numbers = #tpu.dot_dimension_numbers<[1], [0], [0], [1], [0, 0, 1, 1], [], []>} : vector<8x128xf32>, vector<128x384xf32>, vector<8x384xf32> -> vector<8x384xf32>
    %c8_i32_87 = arith.constant 8 : i32
    %282 = arith.muli %c7_i32, %c8_i32_87 : i32
    %283 = tpu.assume_multiple %282, 8 : i32
    %284 = arith.index_cast %283 : i32 to index
    %c0_88 = arith.constant 0 : index
    %285 = vector.load %arg14[%284, %c0_88] : memref<64x384xf32, #tpu.memory_space<vmem>>, vector<8x384xf32>
    %286 = vector.extract_strided_slice %285 {offsets = [0, 0], sizes = [8, 128], strides = [1, 1]} : vector<8x384xf32> to vector<8x128xf32>
    %287 = vector.extract_strided_slice %281 {offsets = [0, 0], sizes = [8, 128], strides = [1, 1]} : vector<8x384xf32> to vector<8x128xf32>
    %288 = arith.addf %286, %287 : vector<8x128xf32>
    %289 = arith.negf %288 : vector<8x128xf32>
    %290 = math.exp %289 : vector<8x128xf32>
    %cst_89 = arith.constant 1.000000e+00 : f32
    %291 = vector.broadcast %cst_89 : f32 to vector<8x128xf32>
    %292 = arith.addf %291, %290 : vector<8x128xf32>
    %293 = arith.divf %291, %292 : vector<8x128xf32>
    %294 = vector.extract_strided_slice %285 {offsets = [0, 128], sizes = [8, 128], strides = [1, 1]} : vector<8x384xf32> to vector<8x128xf32>
    %295 = vector.extract_strided_slice %281 {offsets = [0, 128], sizes = [8, 128], strides = [1, 1]} : vector<8x384xf32> to vector<8x128xf32>
    %296 = arith.addf %294, %295 : vector<8x128xf32>
    %297 = arith.negf %296 : vector<8x128xf32>
    %298 = math.exp %297 : vector<8x128xf32>
    %cst_90 = arith.constant 1.000000e+00 : f32
    %299 = vector.broadcast %cst_90 : f32 to vector<8x128xf32>
    %300 = arith.addf %299, %298 : vector<8x128xf32>
    %301 = arith.divf %299, %300 : vector<8x128xf32>
    %302 = vector.extract_strided_slice %285 {offsets = [0, 256], sizes = [8, 128], strides = [1, 1]} : vector<8x384xf32> to vector<8x128xf32>
    %303 = vector.extract_strided_slice %281 {offsets = [0, 256], sizes = [8, 128], strides = [1, 1]} : vector<8x384xf32> to vector<8x128xf32>
    %304 = vector.broadcast %11 : vector<1x128xf32> to vector<8x128xf32>
    %305 = arith.addf %303, %304 : vector<8x128xf32>
    %306 = arith.mulf %293, %305 : vector<8x128xf32>
    %307 = arith.addf %302, %306 : vector<8x128xf32>
    %308 = math.tanh %307 : vector<8x128xf32>
    %cst_91 = arith.constant 1.000000e+00 : f32
    %309 = vector.broadcast %cst_91 : f32 to vector<8x128xf32>
    %310 = arith.subf %309, %301 : vector<8x128xf32>
    %311 = arith.mulf %310, %308 : vector<8x128xf32>
    %312 = arith.mulf %301, %275 : vector<8x128xf32>
    %313 = arith.addf %311, %312 : vector<8x128xf32>
    %314 = arith.index_cast %c7_i32 : i32 to index
    %c0_92 = arith.constant 0 : index
    %c0_93 = arith.constant 0 : index
    %315 = vector.load %arg12[%314, %c0_92, %c0_93] : memref<8x8x128xf32, #tpu.memory_space<vmem>>, vector<1x8x128xf32>
    %316 = vector.shape_cast %315 : vector<1x8x128xf32> to vector<8x128xf32>
    %317 = vector.shape_cast %313 : vector<8x128xf32> to vector<1x8x128xf32>
    tpu.vector_store %arg12[%314, %c0_92, %c0_93], %317 {strides = array<i32>} : memref<8x8x128xf32, #tpu.memory_space<vmem>>, vector<1x8x128xf32>,
    %c8_i32_94 = arith.constant 8 : i32
    %c0_95 = arith.constant 0 : index
    %c0_96 = arith.constant 0 : index
    %c0_97 = arith.constant 0 : index
    %318 = vector.load %arg15[%c0_95, %c0_96, %c0_97] : memref<2x8x128xf32, #tpu.memory_space<vmem>>, vector<1x8x128xf32>
    %319 = vector.shape_cast %318 : vector<1x8x128xf32> to vector<8x128xf32>
    %320 = vector.shape_cast %313 : vector<8x128xf32> to vector<1x8x128xf32>
    tpu.vector_store %arg15[%c0_95, %c0_96, %c0_97], %320 {strides = array<i32>} : memref<2x8x128xf32, #tpu.memory_space<vmem>>, vector<1x8x128xf32>,
    %c0_98 = arith.constant 0 : index
    %c0_99 = arith.constant 0 : index
    %c0_100 = arith.constant 0 : index
    %321 = vector.load %arg12[%c0_98, %c0_99, %c0_100] : memref<8x8x128xf32, #tpu.memory_space<vmem>>, vector<8x8x128xf32>
    %322 = vector.shape_cast %321 : vector<8x8x128xf32> to vector<64x128xf32>
    %c0_101 = arith.constant 0 : index
    %c0_102 = arith.constant 0 : index
    %323 = vector.load %arg7[%c0_101, %c0_102] : memref<128x384xf32, #tpu.memory_space<vmem>>, vector<128x384xf32>
    %cst_103 = arith.constant dense<0.000000e+00> : vector<64x384xf32>
    %324 = tpu.matmul %322, %323, %cst_103 {dimension_numbers = #tpu.dot_dimension_numbers<[1], [0], [0], [1], [0, 0, 1, 1], [], []>} : vector<64x128xf32>, vector<128x384xf32>, vector<64x384xf32> -> vector<64x384xf32>
    %c0_104 = arith.constant 0 : index
    %c0_105 = arith.constant 0 : index
    %325 = vector.load %arg9[%c0_104, %c0_105] : memref<1x384xf32, #tpu.memory_space<vmem>>, vector<1x384xf32>
    %326 = vector.broadcast %325 : vector<1x384xf32> to vector<64x384xf32>
    %327 = arith.addf %324, %326 : vector<64x384xf32>
    %c0_106 = arith.constant 0 : index
    %c0_107 = arith.constant 0 : index
    %328 = vector.load %arg14[%c0_106, %c0_107] : memref<64x384xf32, #tpu.memory_space<vmem>>, vector<64x384xf32>
    tpu.vector_store %arg14[%c0_106, %c0_107], %327 {strides = array<i32>} : memref<64x384xf32, #tpu.memory_space<vmem>>, vector<64x384xf32>,
    %c0_108 = arith.constant 0 : index
    %c0_109 = arith.constant 0 : index
    %329 = vector.load %arg10[%c0_108, %c0_109] : memref<1x128xf32, #tpu.memory_space<vmem>>, vector<1x128xf32>
    %c1 = arith.constant 1 : index
    %c0_110 = arith.constant 0 : index
    %c0_111 = arith.constant 0 : index
    %330 = vector.load %arg15[%c1, %c0_110, %c0_111] : memref<2x8x128xf32, #tpu.memory_space<vmem>>, vector<1x8x128xf32>
    %331 = vector.shape_cast %330 : vector<1x8x128xf32> to vector<8x128xf32>
    %c0_i32_112 = arith.constant 0 : i32
    %c0_113 = arith.constant 0 : index
    %c0_114 = arith.constant 0 : index
    %332 = vector.load %arg8[%c0_113, %c0_114] : memref<128x384xf32, #tpu.memory_space<vmem>>, vector<128x384xf32>
    %cst_115 = arith.constant dense<0.000000e+00> : vector<8x384xf32>
    %333 = tpu.matmul %331, %332, %cst_115 {dimension_numbers = #tpu.dot_dimension_numbers<[1], [0], [0], [1], [0, 0, 1, 1], [], []>} : vector<8x128xf32>, vector<128x384xf32>, vector<8x384xf32> -> vector<8x384xf32>
    %c8_i32_116 = arith.constant 8 : i32
    %334 = arith.muli %c0_i32_112, %c8_i32_116 : i32
    %335 = tpu.assume_multiple %334, 8 : i32
    %336 = arith.index_cast %335 : i32 to index
    %c0_117 = arith.constant 0 : index
    %337 = vector.load %arg14[%336, %c0_117] : memref<64x384xf32, #tpu.memory_space<vmem>>, vector<8x384xf32>
    %338 = vector.extract_strided_slice %337 {offsets = [0, 0], sizes = [8, 128], strides = [1, 1]} : vector<8x384xf32> to vector<8x128xf32>
    %339 = vector.extract_strided_slice %333 {offsets = [0, 0], sizes = [8, 128], strides = [1, 1]} : vector<8x384xf32> to vector<8x128xf32>
    %340 = arith.addf %338, %339 : vector<8x128xf32>
    %341 = arith.negf %340 : vector<8x128xf32>
    %342 = math.exp %341 : vector<8x128xf32>
    %cst_118 = arith.constant 1.000000e+00 : f32
    %343 = vector.broadcast %cst_118 : f32 to vector<8x128xf32>
    %344 = arith.addf %343, %342 : vector<8x128xf32>
    %345 = arith.divf %343, %344 : vector<8x128xf32>
    %346 = vector.extract_strided_slice %337 {offsets = [0, 128], sizes = [8, 128], strides = [1, 1]} : vector<8x384xf32> to vector<8x128xf32>
    %347 = vector.extract_strided_slice %333 {offsets = [0, 128], sizes = [8, 128], strides = [1, 1]} : vector<8x384xf32> to vector<8x128xf32>
    %348 = arith.addf %346, %347 : vector<8x128xf32>
    %349 = arith.negf %348 : vector<8x128xf32>
    %350 = math.exp %349 : vector<8x128xf32>
    %cst_119 = arith.constant 1.000000e+00 : f32
    %351 = vector.broadcast %cst_119 : f32 to vector<8x128xf32>
    %352 = arith.addf %351, %350 : vector<8x128xf32>
    %353 = arith.divf %351, %352 : vector<8x128xf32>
    %354 = vector.extract_strided_slice %337 {offsets = [0, 256], sizes = [8, 128], strides = [1, 1]} : vector<8x384xf32> to vector<8x128xf32>
    %355 = vector.extract_strided_slice %333 {offsets = [0, 256], sizes = [8, 128], strides = [1, 1]} : vector<8x384xf32> to vector<8x128xf32>
    %356 = vector.broadcast %329 : vector<1x128xf32> to vector<8x128xf32>
    %357 = arith.addf %355, %356 : vector<8x128xf32>
    %358 = arith.mulf %345, %357 : vector<8x128xf32>
    %359 = arith.addf %354, %358 : vector<8x128xf32>
    %360 = math.tanh %359 : vector<8x128xf32>
    %cst_120 = arith.constant 1.000000e+00 : f32
    %361 = vector.broadcast %cst_120 : f32 to vector<8x128xf32>
    %362 = arith.subf %361, %353 : vector<8x128xf32>
    %363 = arith.mulf %362, %360 : vector<8x128xf32>
    %364 = arith.mulf %353, %331 : vector<8x128xf32>
    %365 = arith.addf %363, %364 : vector<8x128xf32>
    %366 = arith.index_cast %c0_i32_112 : i32 to index
    %c0_121 = arith.constant 0 : index
    %c0_122 = arith.constant 0 : index
    %367 = vector.load %arg12[%366, %c0_121, %c0_122] : memref<8x8x128xf32, #tpu.memory_space<vmem>>, vector<1x8x128xf32>
    %368 = vector.shape_cast %367 : vector<1x8x128xf32> to vector<8x128xf32>
    %369 = vector.shape_cast %365 : vector<8x128xf32> to vector<1x8x128xf32>
    tpu.vector_store %arg12[%366, %c0_121, %c0_122], %369 {strides = array<i32>} : memref<8x8x128xf32, #tpu.memory_space<vmem>>, vector<1x8x128xf32>,
    %c1_i32_123 = arith.constant 1 : i32
    %c0_124 = arith.constant 0 : index
    %c0_125 = arith.constant 0 : index
    %370 = vector.load %arg8[%c0_124, %c0_125] : memref<128x384xf32, #tpu.memory_space<vmem>>, vector<128x384xf32>
    %cst_126 = arith.constant dense<0.000000e+00> : vector<8x384xf32>
    %371 = tpu.matmul %365, %370, %cst_126 {dimension_numbers = #tpu.dot_dimension_numbers<[1], [0], [0], [1], [0, 0, 1, 1], [], []>} : vector<8x128xf32>, vector<128x384xf32>, vector<8x384xf32> -> vector<8x384xf32>
    %c8_i32_127 = arith.constant 8 : i32
    %372 = arith.muli %c1_i32_123, %c8_i32_127 : i32
    %373 = tpu.assume_multiple %372, 8 : i32
    %374 = arith.index_cast %373 : i32 to index
    %c0_128 = arith.constant 0 : index
    %375 = vector.load %arg14[%374, %c0_128] : memref<64x384xf32, #tpu.memory_space<vmem>>, vector<8x384xf32>
    %376 = vector.extract_strided_slice %375 {offsets = [0, 0], sizes = [8, 128], strides = [1, 1]} : vector<8x384xf32> to vector<8x128xf32>
    %377 = vector.extract_strided_slice %371 {offsets = [0, 0], sizes = [8, 128], strides = [1, 1]} : vector<8x384xf32> to vector<8x128xf32>
    %378 = arith.addf %376, %377 : vector<8x128xf32>
    %379 = arith.negf %378 : vector<8x128xf32>
    %380 = math.exp %379 : vector<8x128xf32>
    %cst_129 = arith.constant 1.000000e+00 : f32
    %381 = vector.broadcast %cst_129 : f32 to vector<8x128xf32>
    %382 = arith.addf %381, %380 : vector<8x128xf32>
    %383 = arith.divf %381, %382 : vector<8x128xf32>
    %384 = vector.extract_strided_slice %375 {offsets = [0, 128], sizes = [8, 128], strides = [1, 1]} : vector<8x384xf32> to vector<8x128xf32>
    %385 = vector.extract_strided_slice %371 {offsets = [0, 128], sizes = [8, 128], strides = [1, 1]} : vector<8x384xf32> to vector<8x128xf32>
    %386 = arith.addf %384, %385 : vector<8x128xf32>
    %387 = arith.negf %386 : vector<8x128xf32>
    %388 = math.exp %387 : vector<8x128xf32>
    %cst_130 = arith.constant 1.000000e+00 : f32
    %389 = vector.broadcast %cst_130 : f32 to vector<8x128xf32>
    %390 = arith.addf %389, %388 : vector<8x128xf32>
    %391 = arith.divf %389, %390 : vector<8x128xf32>
    %392 = vector.extract_strided_slice %375 {offsets = [0, 256], sizes = [8, 128], strides = [1, 1]} : vector<8x384xf32> to vector<8x128xf32>
    %393 = vector.extract_strided_slice %371 {offsets = [0, 256], sizes = [8, 128], strides = [1, 1]} : vector<8x384xf32> to vector<8x128xf32>
    %394 = vector.broadcast %329 : vector<1x128xf32> to vector<8x128xf32>
    %395 = arith.addf %393, %394 : vector<8x128xf32>
    %396 = arith.mulf %383, %395 : vector<8x128xf32>
    %397 = arith.addf %392, %396 : vector<8x128xf32>
    %398 = math.tanh %397 : vector<8x128xf32>
    %cst_131 = arith.constant 1.000000e+00 : f32
    %399 = vector.broadcast %cst_131 : f32 to vector<8x128xf32>
    %400 = arith.subf %399, %391 : vector<8x128xf32>
    %401 = arith.mulf %400, %398 : vector<8x128xf32>
    %402 = arith.mulf %391, %365 : vector<8x128xf32>
    %403 = arith.addf %401, %402 : vector<8x128xf32>
    %404 = arith.index_cast %c1_i32_123 : i32 to index
    %c0_132 = arith.constant 0 : index
    %c0_133 = arith.constant 0 : index
    %405 = vector.load %arg12[%404, %c0_132, %c0_133] : memref<8x8x128xf32, #tpu.memory_space<vmem>>, vector<1x8x128xf32>
    %406 = vector.shape_cast %405 : vector<1x8x128xf32> to vector<8x128xf32>
    %407 = vector.shape_cast %403 : vector<8x128xf32> to vector<1x8x128xf32>
    tpu.vector_store %arg12[%404, %c0_132, %c0_133], %407 {strides = array<i32>} : memref<8x8x128xf32, #tpu.memory_space<vmem>>, vector<1x8x128xf32>,
    %c2_i32_134 = arith.constant 2 : i32
    %c0_135 = arith.constant 0 : index
    %c0_136 = arith.constant 0 : index
    %408 = vector.load %arg8[%c0_135, %c0_136] : memref<128x384xf32, #tpu.memory_space<vmem>>, vector<128x384xf32>
    %cst_137 = arith.constant dense<0.000000e+00> : vector<8x384xf32>
    %409 = tpu.matmul %403, %408, %cst_137 {dimension_numbers = #tpu.dot_dimension_numbers<[1], [0], [0], [1], [0, 0, 1, 1], [], []>} : vector<8x128xf32>, vector<128x384xf32>, vector<8x384xf32> -> vector<8x384xf32>
    %c8_i32_138 = arith.constant 8 : i32
    %410 = arith.muli %c2_i32_134, %c8_i32_138 : i32
    %411 = tpu.assume_multiple %410, 8 : i32
    %412 = arith.index_cast %411 : i32 to index
    %c0_139 = arith.constant 0 : index
    %413 = vector.load %arg14[%412, %c0_139] : memref<64x384xf32, #tpu.memory_space<vmem>>, vector<8x384xf32>
    %414 = vector.extract_strided_slice %413 {offsets = [0, 0], sizes = [8, 128], strides = [1, 1]} : vector<8x384xf32> to vector<8x128xf32>
    %415 = vector.extract_strided_slice %409 {offsets = [0, 0], sizes = [8, 128], strides = [1, 1]} : vector<8x384xf32> to vector<8x128xf32>
    %416 = arith.addf %414, %415 : vector<8x128xf32>
    %417 = arith.negf %416 : vector<8x128xf32>
    %418 = math.exp %417 : vector<8x128xf32>
    %cst_140 = arith.constant 1.000000e+00 : f32
    %419 = vector.broadcast %cst_140 : f32 to vector<8x128xf32>
    %420 = arith.addf %419, %418 : vector<8x128xf32>
    %421 = arith.divf %419, %420 : vector<8x128xf32>
    %422 = vector.extract_strided_slice %413 {offsets = [0, 128], sizes = [8, 128], strides = [1, 1]} : vector<8x384xf32> to vector<8x128xf32>
    %423 = vector.extract_strided_slice %409 {offsets = [0, 128], sizes = [8, 128], strides = [1, 1]} : vector<8x384xf32> to vector<8x128xf32>
    %424 = arith.addf %422, %423 : vector<8x128xf32>
    %425 = arith.negf %424 : vector<8x128xf32>
    %426 = math.exp %425 : vector<8x128xf32>
    %cst_141 = arith.constant 1.000000e+00 : f32
    %427 = vector.broadcast %cst_141 : f32 to vector<8x128xf32>
    %428 = arith.addf %427, %426 : vector<8x128xf32>
    %429 = arith.divf %427, %428 : vector<8x128xf32>
    %430 = vector.extract_strided_slice %413 {offsets = [0, 256], sizes = [8, 128], strides = [1, 1]} : vector<8x384xf32> to vector<8x128xf32>
    %431 = vector.extract_strided_slice %409 {offsets = [0, 256], sizes = [8, 128], strides = [1, 1]} : vector<8x384xf32> to vector<8x128xf32>
    %432 = vector.broadcast %329 : vector<1x128xf32> to vector<8x128xf32>
    %433 = arith.addf %431, %432 : vector<8x128xf32>
    %434 = arith.mulf %421, %433 : vector<8x128xf32>
    %435 = arith.addf %430, %434 : vector<8x128xf32>
    %436 = math.tanh %435 : vector<8x128xf32>
    %cst_142 = arith.constant 1.000000e+00 : f32
    %437 = vector.broadcast %cst_142 : f32 to vector<8x128xf32>
    %438 = arith.subf %437, %429 : vector<8x128xf32>
    %439 = arith.mulf %438, %436 : vector<8x128xf32>
    %440 = arith.mulf %429, %403 : vector<8x128xf32>
    %441 = arith.addf %439, %440 : vector<8x128xf32>
    %442 = arith.index_cast %c2_i32_134 : i32 to index
    %c0_143 = arith.constant 0 : index
    %c0_144 = arith.constant 0 : index
    %443 = vector.load %arg12[%442, %c0_143, %c0_144] : memref<8x8x128xf32, #tpu.memory_space<vmem>>, vector<1x8x128xf32>
    %444 = vector.shape_cast %443 : vector<1x8x128xf32> to vector<8x128xf32>
    %445 = vector.shape_cast %441 : vector<8x128xf32> to vector<1x8x128xf32>
    tpu.vector_store %arg12[%442, %c0_143, %c0_144], %445 {strides = array<i32>} : memref<8x8x128xf32, #tpu.memory_space<vmem>>, vector<1x8x128xf32>,
    %c3_i32_145 = arith.constant 3 : i32
    %c0_146 = arith.constant 0 : index
    %c0_147 = arith.constant 0 : index
    %446 = vector.load %arg8[%c0_146, %c0_147] : memref<128x384xf32, #tpu.memory_space<vmem>>, vector<128x384xf32>
    %cst_148 = arith.constant dense<0.000000e+00> : vector<8x384xf32>
    %447 = tpu.matmul %441, %446, %cst_148 {dimension_numbers = #tpu.dot_dimension_numbers<[1], [0], [0], [1], [0, 0, 1, 1], [], []>} : vector<8x128xf32>, vector<128x384xf32>, vector<8x384xf32> -> vector<8x384xf32>
    %c8_i32_149 = arith.constant 8 : i32
    %448 = arith.muli %c3_i32_145, %c8_i32_149 : i32
    %449 = tpu.assume_multiple %448, 8 : i32
    %450 = arith.index_cast %449 : i32 to index
    %c0_150 = arith.constant 0 : index
    %451 = vector.load %arg14[%450, %c0_150] : memref<64x384xf32, #tpu.memory_space<vmem>>, vector<8x384xf32>
    %452 = vector.extract_strided_slice %451 {offsets = [0, 0], sizes = [8, 128], strides = [1, 1]} : vector<8x384xf32> to vector<8x128xf32>
    %453 = vector.extract_strided_slice %447 {offsets = [0, 0], sizes = [8, 128], strides = [1, 1]} : vector<8x384xf32> to vector<8x128xf32>
    %454 = arith.addf %452, %453 : vector<8x128xf32>
    %455 = arith.negf %454 : vector<8x128xf32>
    %456 = math.exp %455 : vector<8x128xf32>
    %cst_151 = arith.constant 1.000000e+00 : f32
    %457 = vector.broadcast %cst_151 : f32 to vector<8x128xf32>
    %458 = arith.addf %457, %456 : vector<8x128xf32>
    %459 = arith.divf %457, %458 : vector<8x128xf32>
    %460 = vector.extract_strided_slice %451 {offsets = [0, 128], sizes = [8, 128], strides = [1, 1]} : vector<8x384xf32> to vector<8x128xf32>
    %461 = vector.extract_strided_slice %447 {offsets = [0, 128], sizes = [8, 128], strides = [1, 1]} : vector<8x384xf32> to vector<8x128xf32>
    %462 = arith.addf %460, %461 : vector<8x128xf32>
    %463 = arith.negf %462 : vector<8x128xf32>
    %464 = math.exp %463 : vector<8x128xf32>
    %cst_152 = arith.constant 1.000000e+00 : f32
    %465 = vector.broadcast %cst_152 : f32 to vector<8x128xf32>
    %466 = arith.addf %465, %464 : vector<8x128xf32>
    %467 = arith.divf %465, %466 : vector<8x128xf32>
    %468 = vector.extract_strided_slice %451 {offsets = [0, 256], sizes = [8, 128], strides = [1, 1]} : vector<8x384xf32> to vector<8x128xf32>
    %469 = vector.extract_strided_slice %447 {offsets = [0, 256], sizes = [8, 128], strides = [1, 1]} : vector<8x384xf32> to vector<8x128xf32>
    %470 = vector.broadcast %329 : vector<1x128xf32> to vector<8x128xf32>
    %471 = arith.addf %469, %470 : vector<8x128xf32>
    %472 = arith.mulf %459, %471 : vector<8x128xf32>
    %473 = arith.addf %468, %472 : vector<8x128xf32>
    %474 = math.tanh %473 : vector<8x128xf32>
    %cst_153 = arith.constant 1.000000e+00 : f32
    %475 = vector.broadcast %cst_153 : f32 to vector<8x128xf32>
    %476 = arith.subf %475, %467 : vector<8x128xf32>
    %477 = arith.mulf %476, %474 : vector<8x128xf32>
    %478 = arith.mulf %467, %441 : vector<8x128xf32>
    %479 = arith.addf %477, %478 : vector<8x128xf32>
    %480 = arith.index_cast %c3_i32_145 : i32 to index
    %c0_154 = arith.constant 0 : index
    %c0_155 = arith.constant 0 : index
    %481 = vector.load %arg12[%480, %c0_154, %c0_155] : memref<8x8x128xf32, #tpu.memory_space<vmem>>, vector<1x8x128xf32>
    %482 = vector.shape_cast %481 : vector<1x8x128xf32> to vector<8x128xf32>
    %483 = vector.shape_cast %479 : vector<8x128xf32> to vector<1x8x128xf32>
    tpu.vector_store %arg12[%480, %c0_154, %c0_155], %483 {strides = array<i32>} : memref<8x8x128xf32, #tpu.memory_space<vmem>>, vector<1x8x128xf32>,
    %c4_i32_156 = arith.constant 4 : i32
    %c0_157 = arith.constant 0 : index
    %c0_158 = arith.constant 0 : index
    %484 = vector.load %arg8[%c0_157, %c0_158] : memref<128x384xf32, #tpu.memory_space<vmem>>, vector<128x384xf32>
    %cst_159 = arith.constant dense<0.000000e+00> : vector<8x384xf32>
    %485 = tpu.matmul %479, %484, %cst_159 {dimension_numbers = #tpu.dot_dimension_numbers<[1], [0], [0], [1], [0, 0, 1, 1], [], []>} : vector<8x128xf32>, vector<128x384xf32>, vector<8x384xf32> -> vector<8x384xf32>
    %c8_i32_160 = arith.constant 8 : i32
    %486 = arith.muli %c4_i32_156, %c8_i32_160 : i32
    %487 = tpu.assume_multiple %486, 8 : i32
    %488 = arith.index_cast %487 : i32 to index
    %c0_161 = arith.constant 0 : index
    %489 = vector.load %arg14[%488, %c0_161] : memref<64x384xf32, #tpu.memory_space<vmem>>, vector<8x384xf32>
    %490 = vector.extract_strided_slice %489 {offsets = [0, 0], sizes = [8, 128], strides = [1, 1]} : vector<8x384xf32> to vector<8x128xf32>
    %491 = vector.extract_strided_slice %485 {offsets = [0, 0], sizes = [8, 128], strides = [1, 1]} : vector<8x384xf32> to vector<8x128xf32>
    %492 = arith.addf %490, %491 : vector<8x128xf32>
    %493 = arith.negf %492 : vector<8x128xf32>
    %494 = math.exp %493 : vector<8x128xf32>
    %cst_162 = arith.constant 1.000000e+00 : f32
    %495 = vector.broadcast %cst_162 : f32 to vector<8x128xf32>
    %496 = arith.addf %495, %494 : vector<8x128xf32>
    %497 = arith.divf %495, %496 : vector<8x128xf32>
    %498 = vector.extract_strided_slice %489 {offsets = [0, 128], sizes = [8, 128], strides = [1, 1]} : vector<8x384xf32> to vector<8x128xf32>
    %499 = vector.extract_strided_slice %485 {offsets = [0, 128], sizes = [8, 128], strides = [1, 1]} : vector<8x384xf32> to vector<8x128xf32>
    %500 = arith.addf %498, %499 : vector<8x128xf32>
    %501 = arith.negf %500 : vector<8x128xf32>
    %502 = math.exp %501 : vector<8x128xf32>
    %cst_163 = arith.constant 1.000000e+00 : f32
    %503 = vector.broadcast %cst_163 : f32 to vector<8x128xf32>
    %504 = arith.addf %503, %502 : vector<8x128xf32>
    %505 = arith.divf %503, %504 : vector<8x128xf32>
    %506 = vector.extract_strided_slice %489 {offsets = [0, 256], sizes = [8, 128], strides = [1, 1]} : vector<8x384xf32> to vector<8x128xf32>
    %507 = vector.extract_strided_slice %485 {offsets = [0, 256], sizes = [8, 128], strides = [1, 1]} : vector<8x384xf32> to vector<8x128xf32>
    %508 = vector.broadcast %329 : vector<1x128xf32> to vector<8x128xf32>
    %509 = arith.addf %507, %508 : vector<8x128xf32>
    %510 = arith.mulf %497, %509 : vector<8x128xf32>
    %511 = arith.addf %506, %510 : vector<8x128xf32>
    %512 = math.tanh %511 : vector<8x128xf32>
    %cst_164 = arith.constant 1.000000e+00 : f32
    %513 = vector.broadcast %cst_164 : f32 to vector<8x128xf32>
    %514 = arith.subf %513, %505 : vector<8x128xf32>
    %515 = arith.mulf %514, %512 : vector<8x128xf32>
    %516 = arith.mulf %505, %479 : vector<8x128xf32>
    %517 = arith.addf %515, %516 : vector<8x128xf32>
    %518 = arith.index_cast %c4_i32_156 : i32 to index
    %c0_165 = arith.constant 0 : index
    %c0_166 = arith.constant 0 : index
    %519 = vector.load %arg12[%518, %c0_165, %c0_166] : memref<8x8x128xf32, #tpu.memory_space<vmem>>, vector<1x8x128xf32>
    %520 = vector.shape_cast %519 : vector<1x8x128xf32> to vector<8x128xf32>
    %521 = vector.shape_cast %517 : vector<8x128xf32> to vector<1x8x128xf32>
    tpu.vector_store %arg12[%518, %c0_165, %c0_166], %521 {strides = array<i32>} : memref<8x8x128xf32, #tpu.memory_space<vmem>>, vector<1x8x128xf32>,
    %c5_i32_167 = arith.constant 5 : i32
    %c0_168 = arith.constant 0 : index
    %c0_169 = arith.constant 0 : index
    %522 = vector.load %arg8[%c0_168, %c0_169] : memref<128x384xf32, #tpu.memory_space<vmem>>, vector<128x384xf32>
    %cst_170 = arith.constant dense<0.000000e+00> : vector<8x384xf32>
    %523 = tpu.matmul %517, %522, %cst_170 {dimension_numbers = #tpu.dot_dimension_numbers<[1], [0], [0], [1], [0, 0, 1, 1], [], []>} : vector<8x128xf32>, vector<128x384xf32>, vector<8x384xf32> -> vector<8x384xf32>
    %c8_i32_171 = arith.constant 8 : i32
    %524 = arith.muli %c5_i32_167, %c8_i32_171 : i32
    %525 = tpu.assume_multiple %524, 8 : i32
    %526 = arith.index_cast %525 : i32 to index
    %c0_172 = arith.constant 0 : index
    %527 = vector.load %arg14[%526, %c0_172] : memref<64x384xf32, #tpu.memory_space<vmem>>, vector<8x384xf32>
    %528 = vector.extract_strided_slice %527 {offsets = [0, 0], sizes = [8, 128], strides = [1, 1]} : vector<8x384xf32> to vector<8x128xf32>
    %529 = vector.extract_strided_slice %523 {offsets = [0, 0], sizes = [8, 128], strides = [1, 1]} : vector<8x384xf32> to vector<8x128xf32>
    %530 = arith.addf %528, %529 : vector<8x128xf32>
    %531 = arith.negf %530 : vector<8x128xf32>
    %532 = math.exp %531 : vector<8x128xf32>
    %cst_173 = arith.constant 1.000000e+00 : f32
    %533 = vector.broadcast %cst_173 : f32 to vector<8x128xf32>
    %534 = arith.addf %533, %532 : vector<8x128xf32>
    %535 = arith.divf %533, %534 : vector<8x128xf32>
    %536 = vector.extract_strided_slice %527 {offsets = [0, 128], sizes = [8, 128], strides = [1, 1]} : vector<8x384xf32> to vector<8x128xf32>
    %537 = vector.extract_strided_slice %523 {offsets = [0, 128], sizes = [8, 128], strides = [1, 1]} : vector<8x384xf32> to vector<8x128xf32>
    %538 = arith.addf %536, %537 : vector<8x128xf32>
    %539 = arith.negf %538 : vector<8x128xf32>
    %540 = math.exp %539 : vector<8x128xf32>
    %cst_174 = arith.constant 1.000000e+00 : f32
    %541 = vector.broadcast %cst_174 : f32 to vector<8x128xf32>
    %542 = arith.addf %541, %540 : vector<8x128xf32>
    %543 = arith.divf %541, %542 : vector<8x128xf32>
    %544 = vector.extract_strided_slice %527 {offsets = [0, 256], sizes = [8, 128], strides = [1, 1]} : vector<8x384xf32> to vector<8x128xf32>
    %545 = vector.extract_strided_slice %523 {offsets = [0, 256], sizes = [8, 128], strides = [1, 1]} : vector<8x384xf32> to vector<8x128xf32>
    %546 = vector.broadcast %329 : vector<1x128xf32> to vector<8x128xf32>
    %547 = arith.addf %545, %546 : vector<8x128xf32>
    %548 = arith.mulf %535, %547 : vector<8x128xf32>
    %549 = arith.addf %544, %548 : vector<8x128xf32>
    %550 = math.tanh %549 : vector<8x128xf32>
    %cst_175 = arith.constant 1.000000e+00 : f32
    %551 = vector.broadcast %cst_175 : f32 to vector<8x128xf32>
    %552 = arith.subf %551, %543 : vector<8x128xf32>
    %553 = arith.mulf %552, %550 : vector<8x128xf32>
    %554 = arith.mulf %543, %517 : vector<8x128xf32>
    %555 = arith.addf %553, %554 : vector<8x128xf32>
    %556 = arith.index_cast %c5_i32_167 : i32 to index
    %c0_176 = arith.constant 0 : index
    %c0_177 = arith.constant 0 : index
    %557 = vector.load %arg12[%556, %c0_176, %c0_177] : memref<8x8x128xf32, #tpu.memory_space<vmem>>, vector<1x8x128xf32>
    %558 = vector.shape_cast %557 : vector<1x8x128xf32> to vector<8x128xf32>
    %559 = vector.shape_cast %555 : vector<8x128xf32> to vector<1x8x128xf32>
    tpu.vector_store %arg12[%556, %c0_176, %c0_177], %559 {strides = array<i32>} : memref<8x8x128xf32, #tpu.memory_space<vmem>>, vector<1x8x128xf32>,
    %c6_i32_178 = arith.constant 6 : i32
    %c0_179 = arith.constant 0 : index
    %c0_180 = arith.constant 0 : index
    %560 = vector.load %arg8[%c0_179, %c0_180] : memref<128x384xf32, #tpu.memory_space<vmem>>, vector<128x384xf32>
    %cst_181 = arith.constant dense<0.000000e+00> : vector<8x384xf32>
    %561 = tpu.matmul %555, %560, %cst_181 {dimension_numbers = #tpu.dot_dimension_numbers<[1], [0], [0], [1], [0, 0, 1, 1], [], []>} : vector<8x128xf32>, vector<128x384xf32>, vector<8x384xf32> -> vector<8x384xf32>
    %c8_i32_182 = arith.constant 8 : i32
    %562 = arith.muli %c6_i32_178, %c8_i32_182 : i32
    %563 = tpu.assume_multiple %562, 8 : i32
    %564 = arith.index_cast %563 : i32 to index
    %c0_183 = arith.constant 0 : index
    %565 = vector.load %arg14[%564, %c0_183] : memref<64x384xf32, #tpu.memory_space<vmem>>, vector<8x384xf32>
    %566 = vector.extract_strided_slice %565 {offsets = [0, 0], sizes = [8, 128], strides = [1, 1]} : vector<8x384xf32> to vector<8x128xf32>
    %567 = vector.extract_strided_slice %561 {offsets = [0, 0], sizes = [8, 128], strides = [1, 1]} : vector<8x384xf32> to vector<8x128xf32>
    %568 = arith.addf %566, %567 : vector<8x128xf32>
    %569 = arith.negf %568 : vector<8x128xf32>
    %570 = math.exp %569 : vector<8x128xf32>
    %cst_184 = arith.constant 1.000000e+00 : f32
    %571 = vector.broadcast %cst_184 : f32 to vector<8x128xf32>
    %572 = arith.addf %571, %570 : vector<8x128xf32>
    %573 = arith.divf %571, %572 : vector<8x128xf32>
    %574 = vector.extract_strided_slice %565 {offsets = [0, 128], sizes = [8, 128], strides = [1, 1]} : vector<8x384xf32> to vector<8x128xf32>
    %575 = vector.extract_strided_slice %561 {offsets = [0, 128], sizes = [8, 128], strides = [1, 1]} : vector<8x384xf32> to vector<8x128xf32>
    %576 = arith.addf %574, %575 : vector<8x128xf32>
    %577 = arith.negf %576 : vector<8x128xf32>
    %578 = math.exp %577 : vector<8x128xf32>
    %cst_185 = arith.constant 1.000000e+00 : f32
    %579 = vector.broadcast %cst_185 : f32 to vector<8x128xf32>
    %580 = arith.addf %579, %578 : vector<8x128xf32>
    %581 = arith.divf %579, %580 : vector<8x128xf32>
    %582 = vector.extract_strided_slice %565 {offsets = [0, 256], sizes = [8, 128], strides = [1, 1]} : vector<8x384xf32> to vector<8x128xf32>
    %583 = vector.extract_strided_slice %561 {offsets = [0, 256], sizes = [8, 128], strides = [1, 1]} : vector<8x384xf32> to vector<8x128xf32>
    %584 = vector.broadcast %329 : vector<1x128xf32> to vector<8x128xf32>
    %585 = arith.addf %583, %584 : vector<8x128xf32>
    %586 = arith.mulf %573, %585 : vector<8x128xf32>
    %587 = arith.addf %582, %586 : vector<8x128xf32>
    %588 = math.tanh %587 : vector<8x128xf32>
    %cst_186 = arith.constant 1.000000e+00 : f32
    %589 = vector.broadcast %cst_186 : f32 to vector<8x128xf32>
    %590 = arith.subf %589, %581 : vector<8x128xf32>
    %591 = arith.mulf %590, %588 : vector<8x128xf32>
    %592 = arith.mulf %581, %555 : vector<8x128xf32>
    %593 = arith.addf %591, %592 : vector<8x128xf32>
    %594 = arith.index_cast %c6_i32_178 : i32 to index
    %c0_187 = arith.constant 0 : index
    %c0_188 = arith.constant 0 : index
    %595 = vector.load %arg12[%594, %c0_187, %c0_188] : memref<8x8x128xf32, #tpu.memory_space<vmem>>, vector<1x8x128xf32>
    %596 = vector.shape_cast %595 : vector<1x8x128xf32> to vector<8x128xf32>
    %597 = vector.shape_cast %593 : vector<8x128xf32> to vector<1x8x128xf32>
    tpu.vector_store %arg12[%594, %c0_187, %c0_188], %597 {strides = array<i32>} : memref<8x8x128xf32, #tpu.memory_space<vmem>>, vector<1x8x128xf32>,
    %c7_i32_189 = arith.constant 7 : i32
    %c0_190 = arith.constant 0 : index
    %c0_191 = arith.constant 0 : index
    %598 = vector.load %arg8[%c0_190, %c0_191] : memref<128x384xf32, #tpu.memory_space<vmem>>, vector<128x384xf32>
    %cst_192 = arith.constant dense<0.000000e+00> : vector<8x384xf32>
    %599 = tpu.matmul %593, %598, %cst_192 {dimension_numbers = #tpu.dot_dimension_numbers<[1], [0], [0], [1], [0, 0, 1, 1], [], []>} : vector<8x128xf32>, vector<128x384xf32>, vector<8x384xf32> -> vector<8x384xf32>
    %c8_i32_193 = arith.constant 8 : i32
    %600 = arith.muli %c7_i32_189, %c8_i32_193 : i32
    %601 = tpu.assume_multiple %600, 8 : i32
    %602 = arith.index_cast %601 : i32 to index
    %c0_194 = arith.constant 0 : index
    %603 = vector.load %arg14[%602, %c0_194] : memref<64x384xf32, #tpu.memory_space<vmem>>, vector<8x384xf32>
    %604 = vector.extract_strided_slice %603 {offsets = [0, 0], sizes = [8, 128], strides = [1, 1]} : vector<8x384xf32> to vector<8x128xf32>
    %605 = vector.extract_strided_slice %599 {offsets = [0, 0], sizes = [8, 128], strides = [1, 1]} : vector<8x384xf32> to vector<8x128xf32>
    %606 = arith.addf %604, %605 : vector<8x128xf32>
    %607 = arith.negf %606 : vector<8x128xf32>
    %608 = math.exp %607 : vector<8x128xf32>
    %cst_195 = arith.constant 1.000000e+00 : f32
    %609 = vector.broadcast %cst_195 : f32 to vector<8x128xf32>
    %610 = arith.addf %609, %608 : vector<8x128xf32>
    %611 = arith.divf %609, %610 : vector<8x128xf32>
    %612 = vector.extract_strided_slice %603 {offsets = [0, 128], sizes = [8, 128], strides = [1, 1]} : vector<8x384xf32> to vector<8x128xf32>
    %613 = vector.extract_strided_slice %599 {offsets = [0, 128], sizes = [8, 128], strides = [1, 1]} : vector<8x384xf32> to vector<8x128xf32>
    %614 = arith.addf %612, %613 : vector<8x128xf32>
    %615 = arith.negf %614 : vector<8x128xf32>
    %616 = math.exp %615 : vector<8x128xf32>
    %cst_196 = arith.constant 1.000000e+00 : f32
    %617 = vector.broadcast %cst_196 : f32 to vector<8x128xf32>
    %618 = arith.addf %617, %616 : vector<8x128xf32>
    %619 = arith.divf %617, %618 : vector<8x128xf32>
    %620 = vector.extract_strided_slice %603 {offsets = [0, 256], sizes = [8, 128], strides = [1, 1]} : vector<8x384xf32> to vector<8x128xf32>
    %621 = vector.extract_strided_slice %599 {offsets = [0, 256], sizes = [8, 128], strides = [1, 1]} : vector<8x384xf32> to vector<8x128xf32>
    %622 = vector.broadcast %329 : vector<1x128xf32> to vector<8x128xf32>
    %623 = arith.addf %621, %622 : vector<8x128xf32>
    %624 = arith.mulf %611, %623 : vector<8x128xf32>
    %625 = arith.addf %620, %624 : vector<8x128xf32>
    %626 = math.tanh %625 : vector<8x128xf32>
    %cst_197 = arith.constant 1.000000e+00 : f32
    %627 = vector.broadcast %cst_197 : f32 to vector<8x128xf32>
    %628 = arith.subf %627, %619 : vector<8x128xf32>
    %629 = arith.mulf %628, %626 : vector<8x128xf32>
    %630 = arith.mulf %619, %593 : vector<8x128xf32>
    %631 = arith.addf %629, %630 : vector<8x128xf32>
    %632 = arith.index_cast %c7_i32_189 : i32 to index
    %c0_198 = arith.constant 0 : index
    %c0_199 = arith.constant 0 : index
    %633 = vector.load %arg12[%632, %c0_198, %c0_199] : memref<8x8x128xf32, #tpu.memory_space<vmem>>, vector<1x8x128xf32>
    %634 = vector.shape_cast %633 : vector<1x8x128xf32> to vector<8x128xf32>
    %635 = vector.shape_cast %631 : vector<8x128xf32> to vector<1x8x128xf32>
    tpu.vector_store %arg12[%632, %c0_198, %c0_199], %635 {strides = array<i32>} : memref<8x8x128xf32, #tpu.memory_space<vmem>>, vector<1x8x128xf32>,
    %c8_i32_200 = arith.constant 8 : i32
    %c1_201 = arith.constant 1 : index
    %c0_202 = arith.constant 0 : index
    %c0_203 = arith.constant 0 : index
    %636 = vector.load %arg15[%c1_201, %c0_202, %c0_203] : memref<2x8x128xf32, #tpu.memory_space<vmem>>, vector<1x8x128xf32>
    %637 = vector.shape_cast %636 : vector<1x8x128xf32> to vector<8x128xf32>
    %638 = vector.shape_cast %631 : vector<8x128xf32> to vector<1x8x128xf32>
    tpu.vector_store %arg15[%c1_201, %c0_202, %c0_203], %638 {strides = array<i32>} : memref<2x8x128xf32, #tpu.memory_space<vmem>>, vector<1x8x128xf32>,
    %c0_i32_204 = arith.constant 0 : i32
    %639 = arith.cmpi eq, %arg1, %c0_i32_204 : i32
    %640 = arith.extui %639 : i1 to i32
    %c0_i32_205 = arith.constant 0 : i32
    %641 = arith.cmpi ne, %640, %c0_i32_205 : i32
    scf.if %641 {
      %c0_206 = arith.constant 0 : index
      %c0_207 = arith.constant 0 : index
      %c0_208 = arith.constant 0 : index
      %642 = vector.load %arg15[%c0_206, %c0_207, %c0_208] : memref<2x8x128xf32, #tpu.memory_space<vmem>>, vector<2x8x128xf32>
      %c0_209 = arith.constant 0 : index
      %c0_210 = arith.constant 0 : index
      %c0_211 = arith.constant 0 : index
      %643 = vector.load %arg13[%c0_209, %c0_210, %c0_211] : memref<2x8x128xf32, #tpu.memory_space<vmem>>, vector<2x8x128xf32>
      tpu.vector_store %arg13[%c0_209, %c0_210, %c0_211], %642 {strides = array<i32>} : memref<2x8x128xf32, #tpu.memory_space<vmem>>, vector<2x8x128xf32>,
    } else {
    }
    return
  }
  func.func @transform_0(%arg0: i32, %arg1: i32) -> (i32, i32, i32) {
    %c0_i32 = arith.constant 0 : i32
    %c0_i32_0 = arith.constant 0 : i32
    return %arg1, %arg0, %c0_i32 : i32, i32, i32
  }
  func.func @transform_1(%arg0: i32, %arg1: i32) -> (i32, i32) {
    %c0_i32 = arith.constant 0 : i32
    %c0_i32_0 = arith.constant 0 : i32
    %c0_i32_1 = arith.constant 0 : i32
    return %c0_i32, %c0_i32_0 : i32, i32
  }
  func.func @transform_2(%arg0: i32, %arg1: i32) -> (i32, i32) {
    %c0_i32 = arith.constant 0 : i32
    %c0_i32_0 = arith.constant 0 : i32
    %c0_i32_1 = arith.constant 0 : i32
    return %c0_i32, %c0_i32_0 : i32, i32
  }
  func.func @transform_3(%arg0: i32, %arg1: i32) -> (i32, i32) {
    %c0_i32 = arith.constant 0 : i32
    %c0_i32_0 = arith.constant 0 : i32
    %c0_i32_1 = arith.constant 0 : i32
    return %c0_i32, %c0_i32_0 : i32, i32
  }
  func.func @transform_4(%arg0: i32, %arg1: i32) -> (i32, i32) {
    %c0_i32 = arith.constant 0 : i32
    %c0_i32_0 = arith.constant 0 : i32
    %c0_i32_1 = arith.constant 0 : i32
    return %c0_i32, %c0_i32_0 : i32, i32
  }
  func.func @transform_5(%arg0: i32, %arg1: i32) -> (i32, i32) {
    %c0_i32 = arith.constant 0 : i32
    %c0_i32_0 = arith.constant 0 : i32
    %c0_i32_1 = arith.constant 0 : i32
    return %c0_i32, %c0_i32_0 : i32, i32
  }
  func.func @transform_6(%arg0: i32, %arg1: i32) -> (i32, i32) {
    %c0_i32 = arith.constant 0 : i32
    %c0_i32_0 = arith.constant 0 : i32
    %c0_i32_1 = arith.constant 0 : i32
    return %c0_i32, %c0_i32_0 : i32, i32
  }
  func.func @transform_7(%arg0: i32, %arg1: i32) -> (i32, i32) {
    %c0_i32 = arith.constant 0 : i32
    %c0_i32_0 = arith.constant 0 : i32
    %c0_i32_1 = arith.constant 0 : i32
    return %c0_i32, %c0_i32_0 : i32, i32
  }
  func.func @transform_8(%arg0: i32, %arg1: i32) -> (i32, i32) {
    %c0_i32 = arith.constant 0 : i32
    %c0_i32_0 = arith.constant 0 : i32
    %c0_i32_1 = arith.constant 0 : i32
    return %c0_i32, %c0_i32_0 : i32, i32
  }
  func.func @transform_9(%arg0: i32, %arg1: i32) -> (i32, i32, i32) {
    %c0_i32 = arith.constant 0 : i32
    %c0_i32_0 = arith.constant 0 : i32
    %c0_i32_1 = arith.constant 0 : i32
    return %c0_i32, %arg0, %c0_i32_0 : i32, i32, i32
  }
  func.func @transform_10(%arg0: i32, %arg1: i32) -> (i32, i32, i32) {
    %c0_i32 = arith.constant 0 : i32
    %c0_i32_0 = arith.constant 0 : i32
    return %arg1, %arg0, %c0_i32 : i32, i32, i32
  }
  func.func @transform_11(%arg0: i32, %arg1: i32) -> (i32, i32, i32) {
    %c0_i32 = arith.constant 0 : i32
    %c0_i32_0 = arith.constant 0 : i32
    %c0_i32_1 = arith.constant 0 : i32
    return %c0_i32, %arg0, %c0_i32_0 : i32, i32, i32
  }
}

</mosaic_0001>

<llo_original>
// kernel: rnn_model_forward.1
$region0: #{rnn_model_forward.1}
  #allocation0 [shape = 'u32[]', space=smem, size = 0x4, offset = 0x4, fixed_abs, tag = 'smem constant byte address 0x4 - core index']
  #allocation1 [shape = 'u32[144,128]{1,0:T(1,128)}', space=vmem, size = 0x12000, scoped, tag = 'internal scratch']
  #allocation2 [shape = 'f32[64,384]{1,0:T(8,128)}', space=vmem, size = 0x18000, scoped, tag = 'scratch operand']
  #allocation3 [shape = 'f32[2,8,128]{2,1,0:T(8,128)}', space=vmem, size = 0x2000, scoped, tag = 'scratch operand']
  %s0 = inlined_call_operand.vmem [shape: f32[8,8,128], index: 0, kind: input, shape index: {}]
  %s1 = inlined_call_operand.hbm [shape: f32[128,384], index: 1, kind: input, shape index: {}]
  %s2 = inlined_call_operand.hbm [shape: f32[128,384], index: 2, kind: input, shape index: {}]
  %s3 = inlined_call_operand.vmem [shape: f32[1,384], index: 3, kind: input, shape index: {}]
  %s4 = inlined_call_operand.vmem [shape: f32[1,128], index: 4, kind: input, shape index: {}]
  %s5 = inlined_call_operand.hbm [shape: f32[128,384], index: 5, kind: input, shape index: {}]
  %s6 = inlined_call_operand.hbm [shape: f32[128,384], index: 6, kind: input, shape index: {}]
  %s7 = inlined_call_operand.vmem [shape: f32[1,384], index: 7, kind: input, shape index: {}]
  %s8 = inlined_call_operand.vmem [shape: f32[1,128], index: 8, kind: input, shape index: {}]
  %s9 = inlined_call_operand.vmem [shape: f32[2,8,128], index: 9, kind: input, shape index: {}]
  %s10 = inlined_call_operand.vmem [shape: f32[8,8,128], index: 10, kind: output, shape index: {0}]
  %s11 = inlined_call_operand.vmem [shape: f32[2,8,128], index: 11, kind: output, shape index: {1}]
  %12 = xla_tuple %s10, %s11
  %s13 = sld [smem:[#allocation0]]
  $region82: #{rnn_model_forward.1} parent=0
    _
  %s15 = ssub.s32 1, %s13
  %s16 = scalar_select 0, %s15, %s13
  $region1: #{rnn_model_forward.1} parent=0
    #allocation4 [shape = 'u8[196608]{0}', space=vmem, size = 0x30000, scoped, tag = 'input window, operand 1, single buffered']
    #allocation5 [shape = 's32[1]{0}', space=sflag, size = 0x4, scoped, tag = 'scoped memory for rnn_model_forward.1']
    #allocation6 [shape = 'u8[196608]{0}', space=vmem, size = 0x30000, scoped, tag = 'input window, operand 2, single buffered']
    #allocation7 [shape = 's32[1]{0}', space=sflag, size = 0x4, scoped, tag = 'scoped memory for rnn_model_forward.1']
    #allocation8 [shape = 'u8[196608]{0}', space=vmem, size = 0x30000, scoped, tag = 'input window, operand 5, single buffered']
    #allocation9 [shape = 'u8[196608]{0}', space=vmem, size = 0x30000, scoped, tag = 'input window, operand 6, single buffered']
    #allocation10 [shape = 's32[1]{0}', space=sflag, size = 0x4, scoped, tag = 'scoped memory for rnn_model_forward.1']
    %17 = vsyncpa [#allocation5], 0
    %18 = vsyncpa [#allocation7], 0
    %19 = vsyncpa [#allocation10], 0
    // Predicated region
    $region2: #{rnn_model_forward.1} parent=1 // pred_check
      _
    $region3: #{rnn_model_forward.1} parent=1 // pred_check_branch
      %21 = sbr.rel (0) target = $region5
    $region4: #{rnn_model_forward.1} parent=1 // pred_region
      _
    $region5: #{rnn_model_forward.1} parent=1 // pred_fallthru
      _
    // Predicated region
    $region6: #{rnn_model_forward.1} parent=1 // pred_check
      _
    $region7: #{rnn_model_forward.1} parent=1 // pred_check_branch
      %23 = sbr.rel (0) target = $region9
    $region8: #{rnn_model_forward.1} parent=1 // pred_region
      %s25 = ssub.s32 6144, 6144
      %26 = vsyncadd [#allocation5], %s25
      %s27 = sshll.u32 [#allocation4], 4
      %s28 = int_to_ptr.vmem [resolvable:$true] %s27
      %33 = dma.hbm_to_vmem [thread:$0]  %s1, 6144, %s28, [#allocation5], 384, 384, 24
    $region9: #{rnn_model_forward.1} parent=1 // pred_fallthru
      _
    // Predicated region
    $region10: #{rnn_model_forward.1} parent=1 // pred_check
      _
    $region11: #{rnn_model_forward.1} parent=1 // pred_check_branch
      %35 = sbr.rel (0) target = $region13
    $region12: #{rnn_model_forward.1} parent=1 // pred_region
      %s37 = ssub.s32 6144, 6144
      %38 = vsyncadd [#allocation7], %s37
      %s39 = sshll.u32 [#allocation6], 4
      %s40 = int_to_ptr.vmem [resolvable:$true] %s39
      %45 = dma.hbm_to_vmem [thread:$0]  %s2, 6144, %s40, [#allocation7], 384, 384, 24
    $region13: #{rnn_model_forward.1} parent=1 // pred_fallthru
      _
    // Predicated region
    $region14: #{rnn_model_forward.1} parent=1 // pred_check
      _
    $region15: #{rnn_model_forward.1} parent=1 // pred_check_branch
      %47 = sbr.rel (0) target = $region17
    $region16: #{rnn_model_forward.1} parent=1 // pred_region
      _
    $region17: #{rnn_model_forward.1} parent=1 // pred_fallthru
      _
    // Predicated region
    $region18: #{rnn_model_forward.1} parent=1 // pred_check
      _
    $region19: #{rnn_model_forward.1} parent=1 // pred_check_branch
      %49 = sbr.rel (0) target = $region21
    $region20: #{rnn_model_forward.1} parent=1 // pred_region
      _
    $region21: #{rnn_model_forward.1} parent=1 // pred_fallthru
      _
    // Predicated region
    $region22: #{rnn_model_forward.1} parent=1 // pred_check
      _
    $region23: #{rnn_model_forward.1} parent=1 // pred_check_branch
      %51 = sbr.rel (0) target = $region25
    $region24: #{rnn_model_forward.1} parent=1 // pred_region
      %s53 = ssub.s32 6144, 6144
      %54 = vsyncadd [#allocation7], %s53
      %s55 = sshll.u32 [#allocation8], 4
      %s56 = int_to_ptr.vmem [resolvable:$true] %s55
      %61 = dma.hbm_to_vmem [thread:$0]  %s5, 6144, %s56, [#allocation7], 384, 384, 24
    $region25: #{rnn_model_forward.1} parent=1 // pred_fallthru
      _
    // Predicated region
    $region26: #{rnn_model_forward.1} parent=1 // pred_check
      _
    $region27: #{rnn_model_forward.1} parent=1 // pred_check_branch
      %63 = sbr.rel (0) target = $region29
    $region28: #{rnn_model_forward.1} parent=1 // pred_region
      %s65 = ssub.s32 6144, 6144
      %66 = vsyncadd [#allocation10], %s65
      %s67 = sshll.u32 [#allocation9], 4
      %s68 = int_to_ptr.vmem [resolvable:$true] %s67
      %73 = dma.hbm_to_vmem [thread:$0]  %s6, 6144, %s68, [#allocation10], 384, 384, 24
    $region29: #{rnn_model_forward.1} parent=1 // pred_fallthru
      _
    // Predicated region
    $region30: #{rnn_model_forward.1} parent=1 // pred_check
      _
    $region31: #{rnn_model_forward.1} parent=1 // pred_check_branch
      %75 = sbr.rel (0) target = $region33
    $region32: #{rnn_model_forward.1} parent=1 // pred_region
      _
    $region33: #{rnn_model_forward.1} parent=1 // pred_fallthru
      _
    // Predicated region
    $region34: #{rnn_model_forward.1} parent=1 // pred_check
      _
    $region35: #{rnn_model_forward.1} parent=1 // pred_check_branch
      %77 = sbr.rel (0) target = $region37
    $region36: #{rnn_model_forward.1} parent=1 // pred_region
      _
    $region37: #{rnn_model_forward.1} parent=1 // pred_fallthru
      _
    // Predicated region
    $region38: #{rnn_model_forward.1} parent=1 // pred_check
      _
    $region39: #{rnn_model_forward.1} parent=1 // pred_check_branch
      %79 = sbr.rel (0) target = $region41
    $region40: #{rnn_model_forward.1} parent=1 // pred_region
      _
    $region41: #{rnn_model_forward.1} parent=1 // pred_fallthru
      _
    // Predicated region
    $region42: #{rnn_model_forward.1} parent=1 // pred_check
      _
    $region43: #{rnn_model_forward.1} parent=1 // pred_check_branch
      %81 = sbr.rel (0) target = $region45
    $region44: #{rnn_model_forward.1} parent=1 // pred_region
      %82 = dma.done [#allocation5], 6144
    $region45: #{rnn_model_forward.1} parent=1 // pred_fallthru
      _
    // Predicated region
    $region46: #{rnn_model_forward.1} parent=1 // pred_check
      _
    $region47: #{rnn_model_forward.1} parent=1 // pred_check_branch
      %84 = sbr.rel (0) target = $region49
    $region48: #{rnn_model_forward.1} parent=1 // pred_region
      %85 = dma.done [#allocation7], 6144
    $region49: #{rnn_model_forward.1} parent=1 // pred_fallthru
      _
    // Predicated region
    $region50: #{rnn_model_forward.1} parent=1 // pred_check
      _
    $region51: #{rnn_model_forward.1} parent=1 // pred_check_branch
      %87 = sbr.rel (0) target = $region53
    $region52: #{rnn_model_forward.1} parent=1 // pred_region
      %88 = dma.done [#allocation7], 6144
    $region53: #{rnn_model_forward.1} parent=1 // pred_fallthru
      _
    // Predicated region
    $region54: #{rnn_model_forward.1} parent=1 // pred_check
      _
    $region55: #{rnn_model_forward.1} parent=1 // pred_check_branch
      %90 = sbr.rel (0) target = $region57
    $region56: #{rnn_model_forward.1} parent=1 // pred_region
      %91 = dma.done [#allocation10], 6144
    $region57: #{rnn_model_forward.1} parent=1 // pred_fallthru
      _
    %p92 = scmp.eq.s32.totalorder 0, 0
    // Predicated region
    $region58: #{rnn_model_forward.1} parent=1 // pred_check
      %p93 = pneg %p92
    $region59: #{rnn_model_forward.1} parent=1 // pred_check_branch
      %95 = sbr.rel (%p93) target = $region61
    $region60: #{rnn_model_forward.1} parent=1 // pred_region
      %v96 = vld [vmem:[%s9] sm:$0xff]
      %v97 = vld [vmem:[%s9 + $0x8] sm:$0xff]
      %98 = vst [vmem:[#allocation3] sm:$0xff] %v96
      %99 = vst [vmem:[#allocation3 + $0x8] sm:$0xff] %v97
    $region61: #{rnn_model_forward.1} parent=1 // pred_fallthru
      _
    %v100 = vld [vmem:[%s0] sm:$0xff]
    %v101 = vld [vmem:[%s0 + $0x8] sm:$0xff]
    %v102 = vld [vmem:[%s0 + $0x10] sm:$0xff]
    %v103 = vld [vmem:[%s0 + $0x18] sm:$0xff]
    %v104 = vld [vmem:[%s0 + $0x20] sm:$0xff]
    %v105 = vld [vmem:[%s0 + $0x28] sm:$0xff]
    %v106 = vld [vmem:[%s0 + $0x30] sm:$0xff]
    %v107 = vld [vmem:[%s0 + $0x38] sm:$0xff]
    %v108 = vld [vmem:[#allocation4] sm:$0xff]
    %v109 = vld [vmem:[#allocation4 + $0x8] sm:$0xff]
    %v110 = vld [vmem:[#allocation4 + $0x10] sm:$0xff]
    %v111 = vld [vmem:[#allocation4 + $0x18] sm:$0xff]
    %v112 = vld [vmem:[#allocation4 + $0x20] sm:$0xff]
    %v113 = vld [vmem:[#allocation4 + $0x28] sm:$0xff]
    %v114 = vld [vmem:[#allocation4 + $0x30] sm:$0xff]
    %v115 = vld [vmem:[#allocation4 + $0x38] sm:$0xff]
    %v116 = vld [vmem:[#allocation4 + $0x40] sm:$0xff]
    %v117 = vld [vmem:[#allocation4 + $0x48] sm:$0xff]
    %v118 = vld [vmem:[#allocation4 + $0x50] sm:$0xff]
    %v119 = vld [vmem:[#allocation4 + $0x58] sm:$0xff]
    %v120 = vld [vmem:[#allocation4 + $0x60] sm:$0xff]
    %v121 = vld [vmem:[#allocation4 + $0x68] sm:$0xff]
    %v122 = vld [vmem:[#allocation4 + $0x70] sm:$0xff]
    %v123 = vld [vmem:[#allocation4 + $0x78] sm:$0xff]
    %v124 = vld [vmem:[#allocation4 + $0x80] sm:$0xff]
    %v125 = vld [vmem:[#allocation4 + $0x88] sm:$0xff]
    %v126 = vld [vmem:[#allocation4 + $0x90] sm:$0xff]
    %v127 = vld [vmem:[#allocation4 + $0x98] sm:$0xff]
    %v128 = vld [vmem:[#allocation4 + $0xa0] sm:$0xff]
    %v129 = vld [vmem:[#allocation4 + $0xa8] sm:$0xff]
    %v130 = vld [vmem:[#allocation4 + $0xb0] sm:$0xff]
    %v131 = vld [vmem:[#allocation4 + $0xb8] sm:$0xff]
    %v132 = vld [vmem:[#allocation4 + $0xc0] sm:$0xff]
    %v133 = vld [vmem:[#allocation4 + $0xc8] sm:$0xff]
    %v134 = vld [vmem:[#allocation4 + $0xd0] sm:$0xff]
    %v135 = vld [vmem:[#allocation4 + $0xd8] sm:$0xff]
    %v136 = vld [vmem:[#allocation4 + $0xe0] sm:$0xff]
    %v137 = vld [vmem:[#allocation4 + $0xe8] sm:$0xff]
    %v138 = vld [vmem:[#allocation4 + $0xf0] sm:$0xff]
    %v139 = vld [vmem:[#allocation4 + $0xf8] sm:$0xff]
    %v140 = vld [vmem:[#allocation4 + $0x100] sm:$0xff]
    %v141 = vld [vmem:[#allocation4 + $0x108] sm:$0xff]
    %v142 = vld [vmem:[#allocation4 + $0x110] sm:$0xff]
    %v143 = vld [vmem:[#allocation4 + $0x118] sm:$0xff]
    %v144 = vld [vmem:[#allocation4 + $0x120] sm:$0xff]
    %v145 = vld [vmem:[#allocation4 + $0x128] sm:$0xff]
    %v146 = vld [vmem:[#allocation4 + $0x130] sm:$0xff]
    %v147 = vld [vmem:[#allocation4 + $0x138] sm:$0xff]
    %v148 = vld [vmem:[#allocation4 + $0x140] sm:$0xff]
    %v149 = vld [vmem:[#allocation4 + $0x148] sm:$0xff]
    %v150 = vld [vmem:[#allocation4 + $0x150] sm:$0xff]
    %v151 = vld [vmem:[#allocation4 + $0x158] sm:$0xff]
    %v152 = vld [vmem:[#allocation4 + $0x160] sm:$0xff]
    %v153 = vld [vmem:[#allocation4 + $0x168] sm:$0xff]
    %v154 = vld [vmem:[#allocation4 + $0x170] sm:$0xff]
    %v155 = vld [vmem:[#allocation4 + $0x178] sm:$0xff]
    %v156 = vld [vmem:[%s3] sm:$0x7]
    %v158 = vlaneseq
    %v159 = vshrl.u32 %v158, 7
    %v160 = vsub.s32 0, %v159
    %v161 = vrot.slane %v156, %v160
    %v162 = vlaneseq
    %v163 = vshrl.u32 %v162, 7
    %v164 = vsub.s32 1, %v163
    %v165 = vrot.slane %v156, %v164
    %v166 = vlaneseq
    %v167 = vshrl.u32 %v166, 7
    %v168 = vsub.s32 2, %v167
    %v169 = vrot.slane %v156, %v168
    %173 = vmatprep.subr.mxu0 %v154
    %174 = vmatpush1.msra.mxu0 %v153
    %175 = vmatprep.subr.mxu0 %v151
    %176 = vmatpush1.msra.mxu0 %v150
    %177 = vmatprep.subr.mxu0 %v148
    %178 = vmatpush1.msra.mxu0 %v147
    %179 = vmatprep.subr.mxu0 %v145
    %180 = vmatpush1.msra.mxu0 %v144
    %181 = vmatprep.subr.mxu0 %v142
    %182 = vmatpush1.msra.mxu0 %v141
    %183 = vmatprep.subr.mxu0 %v139
    %184 = vmatpush1.msra.mxu0 %v138
    %185 = vmatprep.subr.mxu0 %v136
    %186 = vmatpush1.msra.mxu0 %v135
    %187 = vmatprep.subr.mxu0 %v133
    %188 = vmatpush1.msra.mxu0 %v132
    %189 = vmatprep.subr.mxu0 %v130
    %190 = vmatpush1.msra.mxu0 %v129
    %191 = vmatprep.subr.mxu0 %v127
    %192 = vmatpush1.msra.mxu0 %v126
    %193 = vmatprep.subr.mxu0 %v124
    %194 = vmatpush1.msra.mxu0 %v123
    %195 = vmatprep.subr.mxu0 %v121
    %196 = vmatpush1.msra.mxu0 %v120
    %197 = vmatprep.subr.mxu0 %v118
    %198 = vmatpush1.msra.mxu0 %v117
    %199 = vmatprep.subr.mxu0 %v115
    %200 = vmatpush1.msra.mxu0 %v114
    %201 = vmatprep.subr.mxu0 %v112
    %202 = vmatpush1.msra.mxu0 %v111
    %203 = vmatprep.subr.mxu0 %v109
    %204 = vmatpush1.msra.mxu0 %v108
    %205 = vmatprep.subr.mxu0 0.0
    %206 = vmatpush2.msra.mxu0 0.0
    %207 = vmatprep.subr.mxu0 0.0
    %208 = vmatpush2.msra.mxu0 0.0
    %209 = vmatprep.subr.mxu0 0.0
    %210 = vmatpush2.msra.mxu0 0.0
    %211 = vmatprep.subr.mxu0 0.0
    %212 = vmatpush2.msra.mxu0 0.0
    %213 = vmatprep.subr.mxu0 0.0
    %214 = vmatpush2.msra.mxu0 0.0
    %215 = vmatprep.subr.mxu0 0.0
    %216 = vmatpush2.msra.mxu0 0.0
    %217 = vmatprep.subr.mxu0 0.0
    %218 = vmatpush2.msra.mxu0 0.0
    %219 = vmatprep.subr.mxu0 0.0
    %220 = vmatpush2.msra.mxu0 0.0
    %221 = vmatprep.subr.mxu0 0.0
    %222 = vmatpush2.msra.mxu0 0.0
    %223 = vmatprep.subr.mxu0 0.0
    %224 = vmatpush2.msra.mxu0 0.0
    %225 = vmatprep.subr.mxu0 0.0
    %226 = vmatpush2.msra.mxu0 0.0
    %227 = vmatprep.subr.mxu0 0.0
    %228 = vmatpush2.msra.mxu0 0.0
    %229 = vmatprep.subr.mxu0 0.0
    %230 = vmatpush2.msra.mxu0 0.0
    %231 = vmatprep.subr.mxu0 0.0
    %232 = vmatpush2.msra.mxu0 0.0
    %233 = vmatprep.subr.mxu0 0.0
    %234 = vmatpush2.msra.mxu0 0.0
    %235 = vmatprep.subr.mxu0 0.0
    %236 = vmatpush2.msra.mxu0 0.0
    %237 = vmatprep.mubr.f32.mxu0 0.0
    %238 = vmatmul.mubr.f32.gmra.mxu0 %v100
    %v239 = vpop.f32.mrf.mxu0
    %v240 = vadd.f32 %v161, %v239
    %v241 = vpop.f32.mrf.mxu0
    %v242 = vadd.f32 %v165, %v241
    %243 = vmatprep.mubr.f32.mxu0 0.0
    %244 = vmatmul.mubr.f32.gmra.mxu0 %v101
    %v245 = vpop.f32.mrf.mxu0
    %v246 = vadd.f32 %v161, %v245
    %v247 = vpop.f32.mrf.mxu0
    %v248 = vadd.f32 %v165, %v247
    %249 = vmatprep.mubr.f32.mxu0 0.0
    %250 = vmatmul.mubr.f32.gmra.mxu0 %v102
    %v251 = vpop.f32.mrf.mxu0
    %v252 = vadd.f32 %v161, %v251
    %v253 = vpop.f32.mrf.mxu0
    %v254 = vadd.f32 %v165, %v253
    %255 = vmatprep.mubr.f32.mxu0 0.0
    %256 = vmatmul.mubr.f32.gmra.mxu0 %v103
    %v257 = vpop.f32.mrf.mxu0
    %v258 = vadd.f32 %v161, %v257
    %v259 = vpop.f32.mrf.mxu0
    %v260 = vadd.f32 %v165, %v259
    %261 = vmatprep.mubr.f32.mxu0 0.0
    %262 = vmatmul.mubr.f32.gmra.mxu0 %v104
    %v263 = vpop.f32.mrf.mxu0
    %v264 = vadd.f32 %v161, %v263
    %v265 = vpop.f32.mrf.mxu0
    %v266 = vadd.f32 %v165, %v265
    %267 = vmatprep.mubr.f32.mxu0 0.0
    %268 = vmatmul.mubr.f32.gmra.mxu0 %v105
    %v269 = vpop.f32.mrf.mxu0
    %v270 = vadd.f32 %v161, %v269
    %v271 = vpop.f32.mrf.mxu0
    %v272 = vadd.f32 %v165, %v271
    %273 = vmatprep.mubr.f32.mxu0 0.0
    %274 = vmatmul.mubr.f32.gmra.mxu0 %v106
    %v275 = vpop.f32.mrf.mxu0
    %v276 = vadd.f32 %v161, %v275
    %v277 = vpop.f32.mrf.mxu0
    %v278 = vadd.f32 %v165, %v277
    %279 = vmatprep.mubr.f32.mxu0 0.0
    %280 = vmatmul.mubr.f32.gmra.mxu0 %v107
    %v281 = vpop.f32.mrf.mxu0
    %v282 = vadd.f32 %v161, %v281
    %v283 = vpop.f32.mrf.mxu0
    %v284 = vadd.f32 %v165, %v283
    %285 = vdwg.mxu0
    %286 = vmatprep.subr.mxu0 0.0
    %287 = vmatpush1.msra.mxu0 %v155
    %288 = vmatprep.subr.mxu0 0.0
    %289 = vmatpush1.msra.mxu0 %v152
    %290 = vmatprep.subr.mxu0 0.0
    %291 = vmatpush1.msra.mxu0 %v149
    %292 = vmatprep.subr.mxu0 0.0
    %293 = vmatpush1.msra.mxu0 %v146
    %294 = vmatprep.subr.mxu0 0.0
    %295 = vmatpush1.msra.mxu0 %v143
    %296 = vmatprep.subr.mxu0 0.0
    %297 = vmatpush1.msra.mxu0 %v140
    %298 = vmatprep.subr.mxu0 0.0
    %299 = vmatpush1.msra.mxu0 %v137
    %300 = vmatprep.subr.mxu0 0.0
    %301 = vmatpush1.msra.mxu0 %v134
    %302 = vmatprep.subr.mxu0 0.0
    %303 = vmatpush1.msra.mxu0 %v131
    %304 = vmatprep.subr.mxu0 0.0
    %305 = vmatpush1.msra.mxu0 %v128
    %306 = vmatprep.subr.mxu0 0.0
    %307 = vmatpush1.msra.mxu0 %v125
    %308 = vmatprep.subr.mxu0 0.0
    %309 = vmatpush1.msra.mxu0 %v122
    %310 = vmatprep.subr.mxu0 0.0
    %311 = vmatpush1.msra.mxu0 %v119
    %312 = vmatprep.subr.mxu0 0.0
    %313 = vmatpush1.msra.mxu0 %v116
    %314 = vmatprep.subr.mxu0 0.0
    %315 = vmatpush1.msra.mxu0 %v113
    %316 = vmatprep.subr.mxu0 0.0
    %317 = vmatpush1.msra.mxu0 %v110
    %318 = vmatprep.subr.mxu0 0.0
    %319 = vmatpush2.msra.mxu0 0.0
    %320 = vmatprep.subr.mxu0 0.0
    %321 = vmatpush2.msra.mxu0 0.0
    %322 = vmatprep.subr.mxu0 0.0
    %323 = vmatpush2.msra.mxu0 0.0
    %324 = vmatprep.subr.mxu0 0.0
    %325 = vmatpush2.msra.mxu0 0.0
    %326 = vmatprep.subr.mxu0 0.0
    %327 = vmatpush2.msra.mxu0 0.0
    %328 = vmatprep.subr.mxu0 0.0
    %329 = vmatpush2.msra.mxu0 0.0
    %330 = vmatprep.subr.mxu0 0.0
    %331 = vmatpush2.msra.mxu0 0.0
    %332 = vmatprep.subr.mxu0 0.0
    %333 = vmatpush2.msra.mxu0 0.0
    %334 = vmatprep.subr.mxu0 0.0
    %335 = vmatpush2.msra.mxu0 0.0
    %336 = vmatprep.subr.mxu0 0.0
    %337 = vmatpush2.msra.mxu0 0.0
    %338 = vmatprep.subr.mxu0 0.0
    %339 = vmatpush2.msra.mxu0 0.0
    %340 = vmatprep.subr.mxu0 0.0
    %341 = vmatpush2.msra.mxu0 0.0
    %342 = vmatprep.subr.mxu0 0.0
    %343 = vmatpush2.msra.mxu0 0.0
    %344 = vmatprep.subr.mxu0 0.0
    %345 = vmatpush2.msra.mxu0 0.0
    %346 = vmatprep.subr.mxu0 0.0
    %347 = vmatpush2.msra.mxu0 0.0
    %348 = vmatprep.subr.mxu0 0.0
    %349 = vmatpush2.msra.mxu0 0.0
    %350 = vmatprep.mubr.f32.mxu0 0.0
    %351 = vmatmul.mubr.f32.gmra.mxu0 %v100
    %v352 = vpop.f32.mrf.mxu0
    %v353 = vadd.f32 %v169, %v352
    %v354 = vpop.f32.mrf.mxu0
    %355 = vmatprep.mubr.f32.mxu0 0.0
    %356 = vmatmul.mubr.f32.gmra.mxu0 %v101
    %v357 = vpop.f32.mrf.mxu0
    %v358 = vadd.f32 %v169, %v357
    %v359 = vpop.f32.mrf.mxu0
    %360 = vmatprep.mubr.f32.mxu0 0.0
    %361 = vmatmul.mubr.f32.gmra.mxu0 %v102
    %v362 = vpop.f32.mrf.mxu0
    %v363 = vadd.f32 %v169, %v362
    %v364 = vpop.f32.mrf.mxu0
    %365 = vmatprep.mubr.f32.mxu0 0.0
    %366 = vmatmul.mubr.f32.gmra.mxu0 %v103
    %v367 = vpop.f32.mrf.mxu0
    %v368 = vadd.f32 %v169, %v367
    %v369 = vpop.f32.mrf.mxu0
    %370 = vmatprep.mubr.f32.mxu0 0.0
    %371 = vmatmul.mubr.f32.gmra.mxu0 %v104
    %v372 = vpop.f32.mrf.mxu0
    %v373 = vadd.f32 %v169, %v372
    %v374 = vpop.f32.mrf.mxu0
    %375 = vmatprep.mubr.f32.mxu0 0.0
    %376 = vmatmul.mubr.f32.gmra.mxu0 %v105
    %v377 = vpop.f32.mrf.mxu0
    %v378 = vadd.f32 %v169, %v377
    %v379 = vpop.f32.mrf.mxu0
    %380 = vmatprep.mubr.f32.mxu0 0.0
    %381 = vmatmul.mubr.f32.gmra.mxu0 %v106
    %v382 = vpop.f32.mrf.mxu0
    %v383 = vadd.f32 %v169, %v382
    %v384 = vpop.f32.mrf.mxu0
    %385 = vmatprep.mubr.f32.mxu0 0.0
    %386 = vmatmul.mubr.f32.gmra.mxu0 %v107
    %v387 = vpop.f32.mrf.mxu0
    %v388 = vadd.f32 %v169, %v387
    %v389 = vpop.f32.mrf.mxu0
    %390 = vdwg.mxu0
    %391 = vst [vmem:[#allocation2] sm:$0xff] %v240
    %392 = vst [vmem:[#allocation2 + $0x8] sm:$0xff] %v242
    %393 = vst [vmem:[#allocation2 + $0x10] sm:$0xff] %v353
    %394 = vst [vmem:[#allocation2 + $0x18] sm:$0xff] %v246
    %395 = vst [vmem:[#allocation2 + $0x20] sm:$0xff] %v248
    %396 = vst [vmem:[#allocation2 + $0x28] sm:$0xff] %v358
    %397 = vst [vmem:[#allocation2 + $0x30] sm:$0xff] %v252
    %398 = vst [vmem:[#allocation2 + $0x38] sm:$0xff] %v254
    %399 = vst [vmem:[#allocation2 + $0x40] sm:$0xff] %v363
    %400 = vst [vmem:[#allocation2 + $0x48] sm:$0xff] %v258
    %401 = vst [vmem:[#allocation2 + $0x50] sm:$0xff] %v260
    %402 = vst [vmem:[#allocation2 + $0x58] sm:$0xff] %v368
    %403 = vst [vmem:[#allocation2 + $0x60] sm:$0xff] %v264
    %404 = vst [vmem:[#allocation2 + $0x68] sm:$0xff] %v266
    %405 = vst [vmem:[#allocation2 + $0x70] sm:$0xff] %v373
    %406 = vst [vmem:[#allocation2 + $0x78] sm:$0xff] %v270
    %407 = vst [vmem:[#allocation2 + $0x80] sm:$0xff] %v272
    %408 = vst [vmem:[#allocation2 + $0x88] sm:$0xff] %v378
    %409 = vst [vmem:[#allocation2 + $0x90] sm:$0xff] %v276
    %410 = vst [vmem:[#allocation2 + $0x98] sm:$0xff] %v278
    %411 = vst [vmem:[#allocation2 + $0xa0] sm:$0xff] %v383
    %412 = vst [vmem:[#allocation2 + $0xa8] sm:$0xff] %v282
    %413 = vst [vmem:[#allocation2 + $0xb0] sm:$0xff] %v284
    %414 = vst [vmem:[#allocation2 + $0xb8] sm:$0xff] %v388
    %v415 = vld [vmem:[%s4] sm:$0x1]
    %v416 = vld [vmem:[#allocation3] sm:$0xff]
    %v417 = vld [vmem:[#allocation6] sm:$0xff]
    %v418 = vld [vmem:[#allocation6 + $0x8] sm:$0xff]
    %v419 = vld [vmem:[#allocation6 + $0x10] sm:$0xff]
    %v420 = vld [vmem:[#allocation6 + $0x18] sm:$0xff]
    %v421 = vld [vmem:[#allocation6 + $0x20] sm:$0xff]
    %v422 = vld [vmem:[#allocation6 + $0x28] sm:$0xff]
    %v423 = vld [vmem:[#allocation6 + $0x30] sm:$0xff]
    %v424 = vld [vmem:[#allocation6 + $0x38] sm:$0xff]
    %v425 = vld [vmem:[#allocation6 + $0x40] sm:$0xff]
    %v426 = vld [vmem:[#allocation6 + $0x48] sm:$0xff]
    %v427 = vld [vmem:[#allocation6 + $0x50] sm:$0xff]
    %v428 = vld [vmem:[#allocation6 + $0x58] sm:$0xff]
    %v429 = vld [vmem:[#allocation6 + $0x60] sm:$0xff]
    %v430 = vld [vmem:[#allocation6 + $0x68] sm:$0xff]
    %v431 = vld [vmem:[#allocation6 + $0x70] sm:$0xff]
    %v432 = vld [vmem:[#allocation6 + $0x78] sm:$0xff]
    %v433 = vld [vmem:[#allocation6 + $0x80] sm:$0xff]
    %v434 = vld [vmem:[#allocation6 + $0x88] sm:$0xff]
    %v435 = vld [vmem:[#allocation6 + $0x90] sm:$0xff]
    %v436 = vld [vmem:[#allocation6 + $0x98] sm:$0xff]
    %v437 = vld [vmem:[#allocation6 + $0xa0] sm:$0xff]
    %v438 = vld [vmem:[#allocation6 + $0xa8] sm:$0xff]
    %v439 = vld [vmem:[#allocation6 + $0xb0] sm:$0xff]
    %v440 = vld [vmem:[#allocation6 + $0xb8] sm:$0xff]
    %v441 = vld [vmem:[#allocation6 + $0xc0] sm:$0xff]
    %v442 = vld [vmem:[#allocation6 + $0xc8] sm:$0xff]
    %v443 = vld [vmem:[#allocation6 + $0xd0] sm:$0xff]
    %v444 = vld [vmem:[#allocation6 + $0xd8] sm:$0xff]
    %v445 = vld [vmem:[#allocation6 + $0xe0] sm:$0xff]
    %v446 = vld [vmem:[#allocation6 + $0xe8] sm:$0xff]
    %v447 = vld [vmem:[#allocation6 + $0xf0] sm:$0xff]
    %v448 = vld [vmem:[#allocation6 + $0xf8] sm:$0xff]
    %v449 = vld [vmem:[#allocation6 + $0x100] sm:$0xff]
    %v450 = vld [vmem:[#allocation6 + $0x108] sm:$0xff]
    %v451 = vld [vmem:[#allocation6 + $0x110] sm:$0xff]
    %v452 = vld [vmem:[#allocation6 + $0x118] sm:$0xff]
    %v453 = vld [vmem:[#allocation6 + $0x120] sm:$0xff]
    %v454 = vld [vmem:[#allocation6 + $0x128] sm:$0xff]
    %v455 = vld [vmem:[#allocation6 + $0x130] sm:$0xff]
    %v456 = vld [vmem:[#allocation6 + $0x138] sm:$0xff]
    %v457 = vld [vmem:[#allocation6 + $0x140] sm:$0xff]
    %v458 = vld [vmem:[#allocation6 + $0x148] sm:$0xff]
    %v459 = vld [vmem:[#allocation6 + $0x150] sm:$0xff]
    %v460 = vld [vmem:[#allocation6 + $0x158] sm:$0xff]
    %v461 = vld [vmem:[#allocation6 + $0x160] sm:$0xff]
    %v462 = vld [vmem:[#allocation6 + $0x168] sm:$0xff]
    %v463 = vld [vmem:[#allocation6 + $0x170] sm:$0xff]
    %v464 = vld [vmem:[#allocation6 + $0x178] sm:$0xff]
    %465 = vmatprep.subr.mxu0 %v463
    %466 = vmatpush1.msra.mxu0 %v462
    %467 = vmatprep.subr.mxu0 %v460
    %468 = vmatpush1.msra.mxu0 %v459
    %469 = vmatprep.subr.mxu0 %v457
    %470 = vmatpush1.msra.mxu0 %v456
    %471 = vmatprep.subr.mxu0 %v454
    %472 = vmatpush1.msra.mxu0 %v453
    %473 = vmatprep.subr.mxu0 %v451
    %474 = vmatpush1.msra.mxu0 %v450
    %475 = vmatprep.subr.mxu0 %v448
    %476 = vmatpush1.msra.mxu0 %v447
    %477 = vmatprep.subr.mxu0 %v445
    %478 = vmatpush1.msra.mxu0 %v444
    %479 = vmatprep.subr.mxu0 %v442
    %480 = vmatpush1.msra.mxu0 %v441
    %481 = vmatprep.subr.mxu0 %v439
    %482 = vmatpush1.msra.mxu0 %v438
    %483 = vmatprep.subr.mxu0 %v436
    %484 = vmatpush1.msra.mxu0 %v435
    %485 = vmatprep.subr.mxu0 %v433
    %486 = vmatpush1.msra.mxu0 %v432
    %487 = vmatprep.subr.mxu0 %v430
    %488 = vmatpush1.msra.mxu0 %v429
    %489 = vmatprep.subr.mxu0 %v427
    %490 = vmatpush1.msra.mxu0 %v426
    %491 = vmatprep.subr.mxu0 %v424
    %492 = vmatpush1.msra.mxu0 %v423
    %493 = vmatprep.subr.mxu0 %v421
    %494 = vmatpush1.msra.mxu0 %v420
    %495 = vmatprep.subr.mxu0 %v418
    %496 = vmatpush1.msra.mxu0 %v417
    %497 = vmatprep.subr.mxu0 0.0
    %498 = vmatpush2.msra.mxu0 0.0
    %499 = vmatprep.subr.mxu0 0.0
    %500 = vmatpush2.msra.mxu0 0.0
    %501 = vmatprep.subr.mxu0 0.0
    %502 = vmatpush2.msra.mxu0 0.0
    %503 = vmatprep.subr.mxu0 0.0
    %504 = vmatpush2.msra.mxu0 0.0
    %505 = vmatprep.subr.mxu0 0.0
    %506 = vmatpush2.msra.mxu0 0.0
    %507 = vmatprep.subr.mxu0 0.0
    %508 = vmatpush2.msra.mxu0 0.0
    %509 = vmatprep.subr.mxu0 0.0
    %510 = vmatpush2.msra.mxu0 0.0
    %511 = vmatprep.subr.mxu0 0.0
    %512 = vmatpush2.msra.mxu0 0.0
    %513 = vmatprep.subr.mxu0 0.0
    %514 = vmatpush2.msra.mxu0 0.0
    %515 = vmatprep.subr.mxu0 0.0
    %516 = vmatpush2.msra.mxu0 0.0
    %517 = vmatprep.subr.mxu0 0.0
    %518 = vmatpush2.msra.mxu0 0.0
    %519 = vmatprep.subr.mxu0 0.0
    %520 = vmatpush2.msra.mxu0 0.0
    %521 = vmatprep.subr.mxu0 0.0
    %522 = vmatpush2.msra.mxu0 0.0
    %523 = vmatprep.subr.mxu0 0.0
    %524 = vmatpush2.msra.mxu0 0.0
    %525 = vmatprep.subr.mxu0 0.0
    %526 = vmatpush2.msra.mxu0 0.0
    %527 = vmatprep.subr.mxu0 0.0
    %528 = vmatpush2.msra.mxu0 0.0
    %529 = vmatprep.mubr.f32.mxu0 0.0
    %530 = vmatmul.mubr.f32.gmra.mxu0 %v416
    %v531 = vpop.f32.mrf.mxu0
    %v532 = vadd.f32 0.0, %v531
    %v533 = vpop.f32.mrf.mxu0
    %v534 = vadd.f32 0.0, %v533
    %535 = vdwg.mxu0
    %536 = vmatprep.subr.mxu0 0.0
    %537 = vmatpush1.msra.mxu0 %v464
    %538 = vmatprep.subr.mxu0 0.0
    %539 = vmatpush1.msra.mxu0 %v461
    %540 = vmatprep.subr.mxu0 0.0
    %541 = vmatpush1.msra.mxu0 %v458
    %542 = vmatprep.subr.mxu0 0.0
    %543 = vmatpush1.msra.mxu0 %v455
    %544 = vmatprep.subr.mxu0 0.0
    %545 = vmatpush1.msra.mxu0 %v452
    %546 = vmatprep.subr.mxu0 0.0
    %547 = vmatpush1.msra.mxu0 %v449
    %548 = vmatprep.subr.mxu0 0.0
    %549 = vmatpush1.msra.mxu0 %v446
    %550 = vmatprep.subr.mxu0 0.0
    %551 = vmatpush1.msra.mxu0 %v443
    %552 = vmatprep.subr.mxu0 0.0
    %553 = vmatpush1.msra.mxu0 %v440
    %554 = vmatprep.subr.mxu0 0.0
    %555 = vmatpush1.msra.mxu0 %v437
    %556 = vmatprep.subr.mxu0 0.0
    %557 = vmatpush1.msra.mxu0 %v434
    %558 = vmatprep.subr.mxu0 0.0
    %559 = vmatpush1.msra.mxu0 %v431
    %560 = vmatprep.subr.mxu0 0.0
    %561 = vmatpush1.msra.mxu0 %v428
    %562 = vmatprep.subr.mxu0 0.0
    %563 = vmatpush1.msra.mxu0 %v425
    %564 = vmatprep.subr.mxu0 0.0
    %565 = vmatpush1.msra.mxu0 %v422
    %566 = vmatprep.subr.mxu0 0.0
    %567 = vmatpush1.msra.mxu0 %v419
    %568 = vmatprep.subr.mxu0 0.0
    %569 = vmatpush2.msra.mxu0 0.0
    %570 = vmatprep.subr.mxu0 0.0
    %571 = vmatpush2.msra.mxu0 0.0
    %572 = vmatprep.subr.mxu0 0.0
    %573 = vmatpush2.msra.mxu0 0.0
    %574 = vmatprep.subr.mxu0 0.0
    %575 = vmatpush2.msra.mxu0 0.0
    %576 = vmatprep.subr.mxu0 0.0
    %577 = vmatpush2.msra.mxu0 0.0
    %578 = vmatprep.subr.mxu0 0.0
    %579 = vmatpush2.msra.mxu0 0.0
    %580 = vmatprep.subr.mxu0 0.0
    %581 = vmatpush2.msra.mxu0 0.0
    %582 = vmatprep.subr.mxu0 0.0
    %583 = vmatpush2.msra.mxu0 0.0
    %584 = vmatprep.subr.mxu0 0.0
    %585 = vmatpush2.msra.mxu0 0.0
    %586 = vmatprep.subr.mxu0 0.0
    %587 = vmatpush2.msra.mxu0 0.0
    %588 = vmatprep.subr.mxu0 0.0
    %589 = vmatpush2.msra.mxu0 0.0
    %590 = vmatprep.subr.mxu0 0.0
    %591 = vmatpush2.msra.mxu0 0.0
    %592 = vmatprep.subr.mxu0 0.0
    %593 = vmatpush2.msra.mxu0 0.0
    %594 = vmatprep.subr.mxu0 0.0
    %595 = vmatpush2.msra.mxu0 0.0
    %596 = vmatprep.subr.mxu0 0.0
    %597 = vmatpush2.msra.mxu0 0.0
    %598 = vmatprep.subr.mxu0 0.0
    %599 = vmatpush2.msra.mxu0 0.0
    %600 = vmatprep.mubr.f32.mxu0 0.0
    %601 = vmatmul.mubr.f32.gmra.mxu0 %v416
    %v602 = vpop.f32.mrf.mxu0
    %v603 = vadd.f32 0.0, %v602
    %v604 = vpop.f32.mrf.mxu0
    %605 = vdwg.mxu0
    %s606 = smul.u32 0, 3
    %s607 = smul.addr %s606, 8
    %s608 = scalar_lea.vmem [#allocation2], %s607
    %v609 = vld [vmem:[%s608] sm:$0xff]
    %v610 = vld [vmem:[%s608 + $0x8] sm:$0xff]
    %v611 = vld [vmem:[%s608 + $0x10] sm:$0xff]
    %v612 = vadd.f32 %v609, %v532
    %v613 = vxor.u32 %v612, 2147483648
    %v614 = vmul.f32 %v613, 1.442695
    %v615 = vpow.pop %v614
    %v616 = vadd.f32 %v615, 1.0
    %v617 = vrcp.pop %v616
    %v618 = vmul.f32 1.0, %v617
    %v619 = vadd.f32 %v610, %v534
    %v620 = vxor.u32 %v619, 2147483648
    %v621 = vmul.f32 %v620, 1.442695
    %v622 = vpow.pop %v621
    %v623 = vadd.f32 %v622, 1.0
    %v624 = vrcp.pop %v623
    %v625 = vmul.f32 1.0, %v624
    %v627 = vlaneseq
    %v628 = vshrl.u32 %v627, 7
    %v629 = vsub.s32 0, %v628
    %v630 = vrot.slane %v415, %v629
    %v632 = vadd.f32 %v603, %v630
    %v633 = vmul.f32 %v618, %v632
    %v634 = vadd.f32 %v611, %v633
    %v635 = vtanh.pop %v634
    %v636 = vsub.f32 1.0, %v625
    %v637 = vmul.f32 %v636, %v635
    %v638 = vmul.f32 %v625, %v416
    %v639 = vadd.f32 %v637, %v638
    %640 = vst [vmem:[%s10] sm:$0xff] %v639
    %v641 = vld [vmem:[#allocation6] sm:$0xff]
    %v642 = vld [vmem:[#allocation6 + $0x8] sm:$0xff]
    %v643 = vld [vmem:[#allocation6 + $0x10] sm:$0xff]
    %v644 = vld [vmem:[#allocation6 + $0x18] sm:$0xff]
    %v645 = vld [vmem:[#allocation6 + $0x20] sm:$0xff]
    %v646 = vld [vmem:[#allocation6 + $0x28] sm:$0xff]
    %v647 = vld [vmem:[#allocation6 + $0x30] sm:$0xff]
    %v648 = vld [vmem:[#allocation6 + $0x38] sm:$0xff]
    %v649 = vld [vmem:[#allocation6 + $0x40] sm:$0xff]
    %v650 = vld [vmem:[#allocation6 + $0x48] sm:$0xff]
    %v651 = vld [vmem:[#allocation6 + $0x50] sm:$0xff]
    %v652 = vld [vmem:[#allocation6 + $0x58] sm:$0xff]
    %v653 = vld [vmem:[#allocation6 + $0x60] sm:$0xff]
    %v654 = vld [vmem:[#allocation6 + $0x68] sm:$0xff]
    %v655 = vld [vmem:[#allocation6 + $0x70] sm:$0xff]
    %v656 = vld [vmem:[#allocation6 + $0x78] sm:$0xff]
    %v657 = vld [vmem:[#allocation6 + $0x80] sm:$0xff]
    %v658 = vld [vmem:[#allocation6 + $0x88] sm:$0xff]
    %v659 = vld [vmem:[#allocation6 + $0x90] sm:$0xff]
    %v660 = vld [vmem:[#allocation6 + $0x98] sm:$0xff]
    %v661 = vld [vmem:[#allocation6 + $0xa0] sm:$0xff]
    %v662 = vld [vmem:[#allocation6 + $0xa8] sm:$0xff]
    %v663 = vld [vmem:[#allocation6 + $0xb0] sm:$0xff]
    %v664 = vld [vmem:[#allocation6 + $0xb8] sm:$0xff]
    %v665 = vld [vmem:[#allocation6 + $0xc0] sm:$0xff]
    %v666 = vld [vmem:[#allocation6 + $0xc8] sm:$0xff]
    %v667 = vld [vmem:[#allocation6 + $0xd0] sm:$0xff]
    %v668 = vld [vmem:[#allocation6 + $0xd8] sm:$0xff]
    %v669 = vld [vmem:[#allocation6 + $0xe0] sm:$0xff]
    %v670 = vld [vmem:[#allocation6 + $0xe8] sm:$0xff]
    %v671 = vld [vmem:[#allocation6 + $0xf0] sm:$0xff]
    %v672 = vld [vmem:[#allocation6 + $0xf8] sm:$0xff]
    %v673 = vld [vmem:[#allocation6 + $0x100] sm:$0xff]
    %v674 = vld [vmem:[#allocation6 + $0x108] sm:$0xff]
    %v675 = vld [vmem:[#allocation6 + $0x110] sm:$0xff]
    %v676 = vld [vmem:[#allocation6 + $0x118] sm:$0xff]
    %v677 = vld [vmem:[#allocation6 + $0x120] sm:$0xff]
    %v678 = vld [vmem:[#allocation6 + $0x128] sm:$0xff]
    %v679 = vld [vmem:[#allocation6 + $0x130] sm:$0xff]
    %v680 = vld [vmem:[#allocation6 + $0x138] sm:$0xff]
    %v681 = vld [vmem:[#allocation6 + $0x140] sm:$0xff]
    %v682 = vld [vmem:[#allocation6 + $0x148] sm:$0xff]
    %v683 = vld [vmem:[#allocation6 + $0x150] sm:$0xff]
    %v684 = vld [vmem:[#allocation6 + $0x158] sm:$0xff]
    %v685 = vld [vmem:[#allocation6 + $0x160] sm:$0xff]
    %v686 = vld [vmem:[#allocation6 + $0x168] sm:$0xff]
    %v687 = vld [vmem:[#allocation6 + $0x170] sm:$0xff]
    %v688 = vld [vmem:[#allocation6 + $0x178] sm:$0xff]
    %689 = vmatprep.subr.mxu0 %v687
    %690 = vmatpush1.msra.mxu0 %v686
    %691 = vmatprep.subr.mxu0 %v684
    %692 = vmatpush1.msra.mxu0 %v683
    %693 = vmatprep.subr.mxu0 %v681
    %694 = vmatpush1.msra.mxu0 %v680
    %695 = vmatprep.subr.mxu0 %v678
    %696 = vmatpush1.msra.mxu0 %v677
    %697 = vmatprep.subr.mxu0 %v675
    %698 = vmatpush1.msra.mxu0 %v674
    %699 = vmatprep.subr.mxu0 %v672
    %700 = vmatpush1.msra.mxu0 %v671
    %701 = vmatprep.subr.mxu0 %v669
    %702 = vmatpush1.msra.mxu0 %v668
    %703 = vmatprep.subr.mxu0 %v666
    %704 = vmatpush1.msra.mxu0 %v665
    %705 = vmatprep.subr.mxu0 %v663
    %706 = vmatpush1.msra.mxu0 %v662
    %707 = vmatprep.subr.mxu0 %v660
    %708 = vmatpush1.msra.mxu0 %v659
    %709 = vmatprep.subr.mxu0 %v657
    %710 = vmatpush1.msra.mxu0 %v656
    %711 = vmatprep.subr.mxu0 %v654
    %712 = vmatpush1.msra.mxu0 %v653
    %713 = vmatprep.subr.mxu0 %v651
    %714 = vmatpush1.msra.mxu0 %v650
    %715 = vmatprep.subr.mxu0 %v648
    %716 = vmatpush1.msra.mxu0 %v647
    %717 = vmatprep.subr.mxu0 %v645
    %718 = vmatpush1.msra.mxu0 %v644
    %719 = vmatprep.subr.mxu0 %v642
    %720 = vmatpush1.msra.mxu0 %v641
    %721 = vmatprep.subr.mxu0 0.0
    %722 = vmatpush2.msra.mxu0 0.0
    %723 = vmatprep.subr.mxu0 0.0
    %724 = vmatpush2.msra.mxu0 0.0
    %725 = vmatprep.subr.mxu0 0.0
    %726 = vmatpush2.msra.mxu0 0.0
    %727 = vmatprep.subr.mxu0 0.0
    %728 = vmatpush2.msra.mxu0 0.0
    %729 = vmatprep.subr.mxu0 0.0
    %730 = vmatpush2.msra.mxu0 0.0
    %731 = vmatprep.subr.mxu0 0.0
    %732 = vmatpush2.msra.mxu0 0.0
    %733 = vmatprep.subr.mxu0 0.0
    %734 = vmatpush2.msra.mxu0 0.0
    %735 = vmatprep.subr.mxu0 0.0
    %736 = vmatpush2.msra.mxu0 0.0
    %737 = vmatprep.subr.mxu0 0.0
    %738 = vmatpush2.msra.mxu0 0.0
    %739 = vmatprep.subr.mxu0 0.0
    %740 = vmatpush2.msra.mxu0 0.0
    %741 = vmatprep.subr.mxu0 0.0
    %742 = vmatpush2.msra.mxu0 0.0
    %743 = vmatprep.subr.mxu0 0.0
    %744 = vmatpush2.msra.mxu0 0.0
    %745 = vmatprep.subr.mxu0 0.0
    %746 = vmatpush2.msra.mxu0 0.0
    %747 = vmatprep.subr.mxu0 0.0
    %748 = vmatpush2.msra.mxu0 0.0
    %749 = vmatprep.subr.mxu0 0.0
    %750 = vmatpush2.msra.mxu0 0.0
    %751 = vmatprep.subr.mxu0 0.0
    %752 = vmatpush2.msra.mxu0 0.0
    %753 = vmatprep.mubr.f32.mxu0 0.0
    %754 = vmatmul.mubr.f32.gmra.mxu0 %v639
    %v755 = vpop.f32.mrf.mxu0
    %v756 = vadd.f32 0.0, %v755
    %v757 = vpop.f32.mrf.mxu0
    %v758 = vadd.f32 0.0, %v757
    %759 = vdwg.mxu0
    %760 = vmatprep.subr.mxu0 0.0
    %761 = vmatpush1.msra.mxu0 %v688
    %762 = vmatprep.subr.mxu0 0.0
    %763 = vmatpush1.msra.mxu0 %v685
    %764 = vmatprep.subr.mxu0 0.0
    %765 = vmatpush1.msra.mxu0 %v682
    %766 = vmatprep.subr.mxu0 0.0
    %767 = vmatpush1.msra.mxu0 %v679
    %768 = vmatprep.subr.mxu0 0.0
    %769 = vmatpush1.msra.mxu0 %v676
    %770 = vmatprep.subr.mxu0 0.0
    %771 = vmatpush1.msra.mxu0 %v673
    %772 = vmatprep.subr.mxu0 0.0
    %773 = vmatpush1.msra.mxu0 %v670
    %774 = vmatprep.subr.mxu0 0.0
    %775 = vmatpush1.msra.mxu0 %v667
    %776 = vmatprep.subr.mxu0 0.0
    %777 = vmatpush1.msra.mxu0 %v664
    %778 = vmatprep.subr.mxu0 0.0
    %779 = vmatpush1.msra.mxu0 %v661
    %780 = vmatprep.subr.mxu0 0.0
    %781 = vmatpush1.msra.mxu0 %v658
    %782 = vmatprep.subr.mxu0 0.0
    %783 = vmatpush1.msra.mxu0 %v655
    %784 = vmatprep.subr.mxu0 0.0
    %785 = vmatpush1.msra.mxu0 %v652
    %786 = vmatprep.subr.mxu0 0.0
    %787 = vmatpush1.msra.mxu0 %v649
    %788 = vmatprep.subr.mxu0 0.0
    %789 = vmatpush1.msra.mxu0 %v646
    %790 = vmatprep.subr.mxu0 0.0
    %791 = vmatpush1.msra.mxu0 %v643
    %792 = vmatprep.subr.mxu0 0.0
    %793 = vmatpush2.msra.mxu0 0.0
    %794 = vmatprep.subr.mxu0 0.0
    %795 = vmatpush2.msra.mxu0 0.0
    %796 = vmatprep.subr.mxu0 0.0
    %797 = vmatpush2.msra.mxu0 0.0
    %798 = vmatprep.subr.mxu0 0.0
    %799 = vmatpush2.msra.mxu0 0.0
    %800 = vmatprep.subr.mxu0 0.0
    %801 = vmatpush2.msra.mxu0 0.0
    %802 = vmatprep.subr.mxu0 0.0
    %803 = vmatpush2.msra.mxu0 0.0
    %804 = vmatprep.subr.mxu0 0.0
    %805 = vmatpush2.msra.mxu0 0.0
    %806 = vmatprep.subr.mxu0 0.0
    %807 = vmatpush2.msra.mxu0 0.0
    %808 = vmatprep.subr.mxu0 0.0
    %809 = vmatpush2.msra.mxu0 0.0
    %810 = vmatprep.subr.mxu0 0.0
    %811 = vmatpush2.msra.mxu0 0.0
    %812 = vmatprep.subr.mxu0 0.0
    %813 = vmatpush2.msra.mxu0 0.0
    %814 = vmatprep.subr.mxu0 0.0
    %815 = vmatpush2.msra.mxu0 0.0
    %816 = vmatprep.subr.mxu0 0.0
    %817 = vmatpush2.msra.mxu0 0.0
    %818 = vmatprep.subr.mxu0 0.0
    %819 = vmatpush2.msra.mxu0 0.0
    %820 = vmatprep.subr.mxu0 0.0
    %821 = vmatpush2.msra.mxu0 0.0
    %822 = vmatprep.subr.mxu0 0.0
    %823 = vmatpush2.msra.mxu0 0.0
    %824 = vmatprep.mubr.f32.mxu0 0.0
    %825 = vmatmul.mubr.f32.gmra.mxu0 %v639
    %v826 = vpop.f32.mrf.mxu0
    %v827 = vadd.f32 0.0, %v826
    %v828 = vpop.f32.mrf.mxu0
    %829 = vdwg.mxu0
    %s830 = smul.u32 1, 3
    %s831 = smul.addr %s830, 8
    %s832 = scalar_lea.vmem [#allocation2], %s831
    %v833 = vld [vmem:[%s832] sm:$0xff]
    %v834 = vld [vmem:[%s832 + $0x8] sm:$0xff]
    %v835 = vld [vmem:[%s832 + $0x10] sm:$0xff]
    %v836 = vadd.f32 %v833, %v756
    %v837 = vxor.u32 %v836, 2147483648
    %v838 = vmul.f32 %v837, 1.442695
    %v839 = vpow.pop %v838
    %v840 = vadd.f32 %v839, 1.0
    %v841 = vrcp.pop %v840
    %v842 = vmul.f32 1.0, %v841
    %v843 = vadd.f32 %v834, %v758
    %v844 = vxor.u32 %v843, 2147483648
    %v845 = vmul.f32 %v844, 1.442695
    %v846 = vpow.pop %v845
    %v847 = vadd.f32 %v846, 1.0
    %v848 = vrcp.pop %v847
    %v849 = vmul.f32 1.0, %v848
    %v850 = vadd.f32 %v827, %v630
    %v851 = vmul.f32 %v842, %v850
    %v852 = vadd.f32 %v835, %v851
    %v853 = vtanh.pop %v852
    %v854 = vsub.f32 1.0, %v849
    %v855 = vmul.f32 %v854, %v853
    %v856 = vmul.f32 %v849, %v639
    %v857 = vadd.f32 %v855, %v856
    %s858 = scalar_lea.vmem %s10, 8
    %859 = vst [vmem:[%s858] sm:$0xff] %v857
    %v860 = vld [vmem:[#allocation6] sm:$0xff]
    %v861 = vld [vmem:[#allocation6 + $0x8] sm:$0xff]
    %v862 = vld [vmem:[#allocation6 + $0x10] sm:$0xff]
    %v863 = vld [vmem:[#allocation6 + $0x18] sm:$0xff]
    %v864 = vld [vmem:[#allocation6 + $0x20] sm:$0xff]
    %v865 = vld [vmem:[#allocation6 + $0x28] sm:$0xff]
    %v866 = vld [vmem:[#allocation6 + $0x30] sm:$0xff]
    %v867 = vld [vmem:[#allocation6 + $0x38] sm:$0xff]
    %v868 = vld [vmem:[#allocation6 + $0x40] sm:$0xff]
    %v869 = vld [vmem:[#allocation6 + $0x48] sm:$0xff]
    %v870 = vld [vmem:[#allocation6 + $0x50] sm:$0xff]
    %v871 = vld [vmem:[#allocation6 + $0x58] sm:$0xff]
    %v872 = vld [vmem:[#allocation6 + $0x60] sm:$0xff]
    %v873 = vld [vmem:[#allocation6 + $0x68] sm:$0xff]
    %v874 = vld [vmem:[#allocation6 + $0x70] sm:$0xff]
    %v875 = vld [vmem:[#allocation6 + $0x78] sm:$0xff]
    %v876 = vld [vmem:[#allocation6 + $0x80] sm:$0xff]
    %v877 = vld [vmem:[#allocation6 + $0x88] sm:$0xff]
    %v878 = vld [vmem:[#allocation6 + $0x90] sm:$0xff]
    %v879 = vld [vmem:[#allocation6 + $0x98] sm:$0xff]
    %v880 = vld [vmem:[#allocation6 + $0xa0] sm:$0xff]
    %v881 = vld [vmem:[#allocation6 + $0xa8] sm:$0xff]
    %v882 = vld [vmem:[#allocation6 + $0xb0] sm:$0xff]
    %v883 = vld [vmem:[#allocation6 + $0xb8] sm:$0xff]
    %v884 = vld [vmem:[#allocation6 + $0xc0] sm:$0xff]
    %v885 = vld [vmem:[#allocation6 + $0xc8] sm:$0xff]
    %v886 = vld [vmem:[#allocation6 + $0xd0] sm:$0xff]
    %v887 = vld [vmem:[#allocation6 + $0xd8] sm:$0xff]
    %v888 = vld [vmem:[#allocation6 + $0xe0] sm:$0xff]
    %v889 = vld [vmem:[#allocation6 + $0xe8] sm:$0xff]
    %v890 = vld [vmem:[#allocation6 + $0xf0] sm:$0xff]
    %v891 = vld [vmem:[#allocation6 + $0xf8] sm:$0xff]
    %v892 = vld [vmem:[#allocation6 + $0x100] sm:$0xff]
    %v893 = vld [vmem:[#allocation6 + $0x108] sm:$0xff]
    %v894 = vld [vmem:[#allocation6 + $0x110] sm:$0xff]
    %v895 = vld [vmem:[#allocation6 + $0x118] sm:$0xff]
    %v896 = vld [vmem:[#allocation6 + $0x120] sm:$0xff]
    %v897 = vld [vmem:[#allocation6 + $0x128] sm:$0xff]
    %v898 = vld [vmem:[#allocation6 + $0x130] sm:$0xff]
    %v899 = vld [vmem:[#allocation6 + $0x138] sm:$0xff]
    %v900 = vld [vmem:[#allocation6 + $0x140] sm:$0xff]
    %v901 = vld [vmem:[#allocation6 + $0x148] sm:$0xff]
    %v902 = vld [vmem:[#allocation6 + $0x150] sm:$0xff]
    %v903 = vld [vmem:[#allocation6 + $0x158] sm:$0xff]
    %v904 = vld [vmem:[#allocation6 + $0x160] sm:$0xff]
    %v905 = vld [vmem:[#allocation6 + $0x168] sm:$0xff]
    %v906 = vld [vmem:[#allocation6 + $0x170] sm:$0xff]
    %v907 = vld [vmem:[#allocation6 + $0x178] sm:$0xff]
    %908 = vmatprep.subr.mxu0 %v906
    %909 = vmatpush1.msra.mxu0 %v905
    %910 = vmatprep.subr.mxu0 %v903
    %911 = vmatpush1.msra.mxu0 %v902
    %912 = vmatprep.subr.mxu0 %v900
    %913 = vmatpush1.msra.mxu0 %v899
    %914 = vmatprep.subr.mxu0 %v897
    %915 = vmatpush1.msra.mxu0 %v896
    %916 = vmatprep.subr.mxu0 %v894
    %917 = vmatpush1.msra.mxu0 %v893
    %918 = vmatprep.subr.mxu0 %v891
    %919 = vmatpush1.msra.mxu0 %v890
    %920 = vmatprep.subr.mxu0 %v888
    %921 = vmatpush1.msra.mxu0 %v887
    %922 = vmatprep.subr.mxu0 %v885
    %923 = vmatpush1.msra.mxu0 %v884
    %924 = vmatprep.subr.mxu0 %v882
    %925 = vmatpush1.msra.mxu0 %v881
    %926 = vmatprep.subr.mxu0 %v879
    %927 = vmatpush1.msra.mxu0 %v878
    %928 = vmatprep.subr.mxu0 %v876
    %929 = vmatpush1.msra.mxu0 %v875
    %930 = vmatprep.subr.mxu0 %v873
    %931 = vmatpush1.msra.mxu0 %v872
    %932 = vmatprep.subr.mxu0 %v870
    %933 = vmatpush1.msra.mxu0 %v869
    %934 = vmatprep.subr.mxu0 %v867
    %935 = vmatpush1.msra.mxu0 %v866
    %936 = vmatprep.subr.mxu0 %v864
    %937 = vmatpush1.msra.mxu0 %v863
    %938 = vmatprep.subr.mxu0 %v861
    %939 = vmatpush1.msra.mxu0 %v860
    %940 = vmatprep.subr.mxu0 0.0
    %941 = vmatpush2.msra.mxu0 0.0
    %942 = vmatprep.subr.mxu0 0.0
    %943 = vmatpush2.msra.mxu0 0.0
    %944 = vmatprep.subr.mxu0 0.0
    %945 = vmatpush2.msra.mxu0 0.0
    %946 = vmatprep.subr.mxu0 0.0
    %947 = vmatpush2.msra.mxu0 0.0
    %948 = vmatprep.subr.mxu0 0.0
    %949 = vmatpush2.msra.mxu0 0.0
    %950 = vmatprep.subr.mxu0 0.0
    %951 = vmatpush2.msra.mxu0 0.0
    %952 = vmatprep.subr.mxu0 0.0
    %953 = vmatpush2.msra.mxu0 0.0
    %954 = vmatprep.subr.mxu0 0.0
    %955 = vmatpush2.msra.mxu0 0.0
    %956 = vmatprep.subr.mxu0 0.0
    %957 = vmatpush2.msra.mxu0 0.0
    %958 = vmatprep.subr.mxu0 0.0
    %959 = vmatpush2.msra.mxu0 0.0
    %960 = vmatprep.subr.mxu0 0.0
    %961 = vmatpush2.msra.mxu0 0.0
    %962 = vmatprep.subr.mxu0 0.0
    %963 = vmatpush2.msra.mxu0 0.0
    %964 = vmatprep.subr.mxu0 0.0
    %965 = vmatpush2.msra.mxu0 0.0
    %966 = vmatprep.subr.mxu0 0.0
    %967 = vmatpush2.msra.mxu0 0.0
    %968 = vmatprep.subr.mxu0 0.0
    %969 = vmatpush2.msra.mxu0 0.0
    %970 = vmatprep.subr.mxu0 0.0
    %971 = vmatpush2.msra.mxu0 0.0
    %972 = vmatprep.mubr.f32.mxu0 0.0
    %973 = vmatmul.mubr.f32.gmra.mxu0 %v857
    %v974 = vpop.f32.mrf.mxu0
    %v975 = vadd.f32 0.0, %v974
    %v976 = vpop.f32.mrf.mxu0
    %v977 = vadd.f32 0.0, %v976
    %978 = vdwg.mxu0
    %979 = vmatprep.subr.mxu0 0.0
    %980 = vmatpush1.msra.mxu0 %v907
    %981 = vmatprep.subr.mxu0 0.0
    %982 = vmatpush1.msra.mxu0 %v904
    %983 = vmatprep.subr.mxu0 0.0
    %984 = vmatpush1.msra.mxu0 %v901
    %985 = vmatprep.subr.mxu0 0.0
    %986 = vmatpush1.msra.mxu0 %v898
    %987 = vmatprep.subr.mxu0 0.0
    %988 = vmatpush1.msra.mxu0 %v895
    %989 = vmatprep.subr.mxu0 0.0
    %990 = vmatpush1.msra.mxu0 %v892
    %991 = vmatprep.subr.mxu0 0.0
    %992 = vmatpush1.msra.mxu0 %v889
    %993 = vmatprep.subr.mxu0 0.0
    %994 = vmatpush1.msra.mxu0 %v886
    %995 = vmatprep.subr.mxu0 0.0
    %996 = vmatpush1.msra.mxu0 %v883
    %997 = vmatprep.subr.mxu0 0.0
    %998 = vmatpush1.msra.mxu0 %v880
    %999 = vmatprep.subr.mxu0 0.0
    %1000 = vmatpush1.msra.mxu0 %v877
    %1001 = vmatprep.subr.mxu0 0.0
    %1002 = vmatpush1.msra.mxu0 %v874
    %1003 = vmatprep.subr.mxu0 0.0
    %1004 = vmatpush1.msra.mxu0 %v871
    %1005 = vmatprep.subr.mxu0 0.0
    %1006 = vmatpush1.msra.mxu0 %v868
    %1007 = vmatprep.subr.mxu0 0.0
    %1008 = vmatpush1.msra.mxu0 %v865
    %1009 = vmatprep.subr.mxu0 0.0
    %1010 = vmatpush1.msra.mxu0 %v862
    %1011 = vmatprep.subr.mxu0 0.0
    %1012 = vmatpush2.msra.mxu0 0.0
    %1013 = vmatprep.subr.mxu0 0.0
    %1014 = vmatpush2.msra.mxu0 0.0
    %1015 = vmatprep.subr.mxu0 0.0
    %1016 = vmatpush2.msra.mxu0 0.0
    %1017 = vmatprep.subr.mxu0 0.0
    %1018 = vmatpush2.msra.mxu0 0.0
    %1019 = vmatprep.subr.mxu0 0.0
    %1020 = vmatpush2.msra.mxu0 0.0
    %1021 = vmatprep.subr.mxu0 0.0
    %1022 = vmatpush2.msra.mxu0 0.0
    %1023 = vmatprep.subr.mxu0 0.0
    %1024 = vmatpush2.msra.mxu0 0.0
    %1025 = vmatprep.subr.mxu0 0.0
    %1026 = vmatpush2.msra.mxu0 0.0
    %1027 = vmatprep.subr.mxu0 0.0
    %1028 = vmatpush2.msra.mxu0 0.0
    %1029 = vmatprep.subr.mxu0 0.0
    %1030 = vmatpush2.msra.mxu0 0.0
    %1031 = vmatprep.subr.mxu0 0.0
    %1032 = vmatpush2.msra.mxu0 0.0
    %1033 = vmatprep.subr.mxu0 0.0
    %1034 = vmatpush2.msra.mxu0 0.0
    %1035 = vmatprep.subr.mxu0 0.0
    %1036 = vmatpush2.msra.mxu0 0.0
    %1037 = vmatprep.subr.mxu0 0.0
    %1038 = vmatpush2.msra.mxu0 0.0
    %1039 = vmatprep.subr.mxu0 0.0
    %1040 = vmatpush2.msra.mxu0 0.0
    %1041 = vmatprep.subr.mxu0 0.0
    %1042 = vmatpush2.msra.mxu0 0.0
    %1043 = vmatprep.mubr.f32.mxu0 0.0
    %1044 = vmatmul.mubr.f32.gmra.mxu0 %v857
    %v1045 = vpop.f32.mrf.mxu0
    %v1046 = vadd.f32 0.0, %v1045
    %v1047 = vpop.f32.mrf.mxu0
    %1048 = vdwg.mxu0
    %s1049 = smul.u32 2, 3
    %s1050 = smul.addr %s1049, 8
    %s1051 = scalar_lea.vmem [#allocation2], %s1050
    %v1052 = vld [vmem:[%s1051] sm:$0xff]
    %v1053 = vld [vmem:[%s1051 + $0x8] sm:$0xff]
    %v1054 = vld [vmem:[%s1051 + $0x10] sm:$0xff]
    %v1055 = vadd.f32 %v1052, %v975
    %v1056 = vxor.u32 %v1055, 2147483648
    %v1057 = vmul.f32 %v1056, 1.442695
    %v1058 = vpow.pop %v1057
    %v1059 = vadd.f32 %v1058, 1.0
    %v1060 = vrcp.pop %v1059
    %v1061 = vmul.f32 1.0, %v1060
    %v1062 = vadd.f32 %v1053, %v977
    %v1063 = vxor.u32 %v1062, 2147483648
    %v1064 = vmul.f32 %v1063, 1.442695
    %v1065 = vpow.pop %v1064
    %v1066 = vadd.f32 %v1065, 1.0
    %v1067 = vrcp.pop %v1066
    %v1068 = vmul.f32 1.0, %v1067
    %v1069 = vadd.f32 %v1046, %v630
    %v1070 = vmul.f32 %v1061, %v1069
    %v1071 = vadd.f32 %v1054, %v1070
    %v1072 = vtanh.pop %v1071
    %v1073 = vsub.f32 1.0, %v1068
    %v1074 = vmul.f32 %v1073, %v1072
    %v1075 = vmul.f32 %v1068, %v857
    %v1076 = vadd.f32 %v1074, %v1075
    %s1077 = scalar_lea.vmem %s10, 16
    %1078 = vst [vmem:[%s1077] sm:$0xff] %v1076
    %v1079 = vld [vmem:[#allocation6] sm:$0xff]
    %v1080 = vld [vmem:[#allocation6 + $0x8] sm:$0xff]
    %v1081 = vld [vmem:[#allocation6 + $0x10] sm:$0xff]
    %v1082 = vld [vmem:[#allocation6 + $0x18] sm:$0xff]
    %v1083 = vld [vmem:[#allocation6 + $0x20] sm:$0xff]
    %v1084 = vld [vmem:[#allocation6 + $0x28] sm:$0xff]
    %v1085 = vld [vmem:[#allocation6 + $0x30] sm:$0xff]
    %v1086 = vld [vmem:[#allocation6 + $0x38] sm:$0xff]
    %v1087 = vld [vmem:[#allocation6 + $0x40] sm:$0xff]
    %v1088 = vld [vmem:[#allocation6 + $0x48] sm:$0xff]
    %v1089 = vld [vmem:[#allocation6 + $0x50] sm:$0xff]
    %v1090 = vld [vmem:[#allocation6 + $0x58] sm:$0xff]
    %v1091 = vld [vmem:[#allocation6 + $0x60] sm:$0xff]
    %v1092 = vld [vmem:[#allocation6 + $0x68] sm:$0xff]
    %v1093 = vld [vmem:[#allocation6 + $0x70] sm:$0xff]
    %v1094 = vld [vmem:[#allocation6 + $0x78] sm:$0xff]
    %v1095 = vld [vmem:[#allocation6 + $0x80] sm:$0xff]
    %v1096 = vld [vmem:[#allocation6 + $0x88] sm:$0xff]
    %v1097 = vld [vmem:[#allocation6 + $0x90] sm:$0xff]
    %v1098 = vld [vmem:[#allocation6 + $0x98] sm:$0xff]
    %v1099 = vld [vmem:[#allocation6 + $0xa0] sm:$0xff]
    %v1100 = vld [vmem:[#allocation6 + $0xa8] sm:$0xff]
    %v1101 = vld [vmem:[#allocation6 + $0xb0] sm:$0xff]
    %v1102 = vld [vmem:[#allocation6 + $0xb8] sm:$0xff]
    %v1103 = vld [vmem:[#allocation6 + $0xc0] sm:$0xff]
    %v1104 = vld [vmem:[#allocation6 + $0xc8] sm:$0xff]
    %v1105 = vld [vmem:[#allocation6 + $0xd0] sm:$0xff]
    %v1106 = vld [vmem:[#allocation6 + $0xd8] sm:$0xff]
    %v1107 = vld [vmem:[#allocation6 + $0xe0] sm:$0xff]
    %v1108 = vld [vmem:[#allocation6 + $0xe8] sm:$0xff]
    %v1109 = vld [vmem:[#allocation6 + $0xf0] sm:$0xff]
    %v1110 = vld [vmem:[#allocation6 + $0xf8] sm:$0xff]
    %v1111 = vld [vmem:[#allocation6 + $0x100] sm:$0xff]
    %v1112 = vld [vmem:[#allocation6 + $0x108] sm:$0xff]
    %v1113 = vld [vmem:[#allocation6 + $0x110] sm:$0xff]
    %v1114 = vld [vmem:[#allocation6 + $0x118] sm:$0xff]
    %v1115 = vld [vmem:[#allocation6 + $0x120] sm:$0xff]
    %v1116 = vld [vmem:[#allocation6 + $0x128] sm:$0xff]
    %v1117 = vld [vmem:[#allocation6 + $0x130] sm:$0xff]
    %v1118 = vld [vmem:[#allocation6 + $0x138] sm:$0xff]
    %v1119 = vld [vmem:[#allocation6 + $0x140] sm:$0xff]
    %v1120 = vld [vmem:[#allocation6 + $0x148] sm:$0xff]
    %v1121 = vld [vmem:[#allocation6 + $0x150] sm:$0xff]
    %v1122 = vld [vmem:[#allocation6 + $0x158] sm:$0xff]
    %v1123 = vld [vmem:[#allocation6 + $0x160] sm:$0xff]
    %v1124 = vld [vmem:[#allocation6 + $0x168] sm:$0xff]
    %v1125 = vld [vmem:[#allocation6 + $0x170] sm:$0xff]
    %v1126 = vld [vmem:[#allocation6 + $0x178] sm:$0xff]
    %1127 = vmatprep.subr.mxu0 %v1125
    %1128 = vmatpush1.msra.mxu0 %v1124
    %1129 = vmatprep.subr.mxu0 %v1122
    %1130 = vmatpush1.msra.mxu0 %v1121
    %1131 = vmatprep.subr.mxu0 %v1119
    %1132 = vmatpush1.msra.mxu0 %v1118
    %1133 = vmatprep.subr.mxu0 %v1116
    %1134 = vmatpush1.msra.mxu0 %v1115
    %1135 = vmatprep.subr.mxu0 %v1113
    %1136 = vmatpush1.msra.mxu0 %v1112
    %1137 = vmatprep.subr.mxu0 %v1110
    %1138 = vmatpush1.msra.mxu0 %v1109
    %1139 = vmatprep.subr.mxu0 %v1107
    %1140 = vmatpush1.msra.mxu0 %v1106
    %1141 = vmatprep.subr.mxu0 %v1104
    %1142 = vmatpush1.msra.mxu0 %v1103
    %1143 = vmatprep.subr.mxu0 %v1101
    %1144 = vmatpush1.msra.mxu0 %v1100
    %1145 = vmatprep.subr.mxu0 %v1098
    %1146 = vmatpush1.msra.mxu0 %v1097
    %1147 = vmatprep.subr.mxu0 %v1095
    %1148 = vmatpush1.msra.mxu0 %v1094
    %1149 = vmatprep.subr.mxu0 %v1092
    %1150 = vmatpush1.msra.mxu0 %v1091
    %1151 = vmatprep.subr.mxu0 %v1089
    %1152 = vmatpush1.msra.mxu0 %v1088
    %1153 = vmatprep.subr.mxu0 %v1086
    %1154 = vmatpush1.msra.mxu0 %v1085
    %1155 = vmatprep.subr.mxu0 %v1083
    %1156 = vmatpush1.msra.mxu0 %v1082
    %1157 = vmatprep.subr.mxu0 %v1080
    %1158 = vmatpush1.msra.mxu0 %v1079
    %1159 = vmatprep.subr.mxu0 0.0
    %1160 = vmatpush2.msra.mxu0 0.0
    %1161 = vmatprep.subr.mxu0 0.0
    %1162 = vmatpush2.msra.mxu0 0.0
    %1163 = vmatprep.subr.mxu0 0.0
    %1164 = vmatpush2.msra.mxu0 0.0
    %1165 = vmatprep.subr.mxu0 0.0
    %1166 = vmatpush2.msra.mxu0 0.0
    %1167 = vmatprep.subr.mxu0 0.0
    %1168 = vmatpush2.msra.mxu0 0.0
    %1169 = vmatprep.subr.mxu0 0.0
    %1170 = vmatpush2.msra.mxu0 0.0
    %1171 = vmatprep.subr.mxu0 0.0
    %1172 = vmatpush2.msra.mxu0 0.0
    %1173 = vmatprep.subr.mxu0 0.0
    %1174 = vmatpush2.msra.mxu0 0.0
    %1175 = vmatprep.subr.mxu0 0.0
    %1176 = vmatpush2.msra.mxu0 0.0
    %1177 = vmatprep.subr.mxu0 0.0
    %1178 = vmatpush2.msra.mxu0 0.0
    %1179 = vmatprep.subr.mxu0 0.0
    %1180 = vmatpush2.msra.mxu0 0.0
    %1181 = vmatprep.subr.mxu0 0.0
    %1182 = vmatpush2.msra.mxu0 0.0
    %1183 = vmatprep.subr.mxu0 0.0
    %1184 = vmatpush2.msra.mxu0 0.0
    %1185 = vmatprep.subr.mxu0 0.0
    %1186 = vmatpush2.msra.mxu0 0.0
    %1187 = vmatprep.subr.mxu0 0.0
    %1188 = vmatpush2.msra.mxu0 0.0
    %1189 = vmatprep.subr.mxu0 0.0
    %1190 = vmatpush2.msra.mxu0 0.0
    %1191 = vmatprep.mubr.f32.mxu0 0.0
    %1192 = vmatmul.mubr.f32.gmra.mxu0 %v1076
    %v1193 = vpop.f32.mrf.mxu0
    %v1194 = vadd.f32 0.0, %v1193
    %v1195 = vpop.f32.mrf.mxu0
    %v1196 = vadd.f32 0.0, %v1195
    %1197 = vdwg.mxu0
    %1198 = vmatprep.subr.mxu0 0.0
    %1199 = vmatpush1.msra.mxu0 %v1126
    %1200 = vmatprep.subr.mxu0 0.0
    %1201 = vmatpush1.msra.mxu0 %v1123
    %1202 = vmatprep.subr.mxu0 0.0
    %1203 = vmatpush1.msra.mxu0 %v1120
    %1204 = vmatprep.subr.mxu0 0.0
    %1205 = vmatpush1.msra.mxu0 %v1117
    %1206 = vmatprep.subr.mxu0 0.0
    %1207 = vmatpush1.msra.mxu0 %v1114
    %1208 = vmatprep.subr.mxu0 0.0
    %1209 = vmatpush1.msra.mxu0 %v1111
    %1210 = vmatprep.subr.mxu0 0.0
    %1211 = vmatpush1.msra.mxu0 %v1108
    %1212 = vmatprep.subr.mxu0 0.0
    %1213 = vmatpush1.msra.mxu0 %v1105
    %1214 = vmatprep.subr.mxu0 0.0
    %1215 = vmatpush1.msra.mxu0 %v1102
    %1216 = vmatprep.subr.mxu0 0.0
    %1217 = vmatpush1.msra.mxu0 %v1099
    %1218 = vmatprep.subr.mxu0 0.0
    %1219 = vmatpush1.msra.mxu0 %v1096
    %1220 = vmatprep.subr.mxu0 0.0
    %1221 = vmatpush1.msra.mxu0 %v1093
    %1222 = vmatprep.subr.mxu0 0.0
    %1223 = vmatpush1.msra.mxu0 %v1090
    %1224 = vmatprep.subr.mxu0 0.0
    %1225 = vmatpush1.msra.mxu0 %v1087
    %1226 = vmatprep.subr.mxu0 0.0
    %1227 = vmatpush1.msra.mxu0 %v1084
    %1228 = vmatprep.subr.mxu0 0.0
    %1229 = vmatpush1.msra.mxu0 %v1081
    %1230 = vmatprep.subr.mxu0 0.0
    %1231 = vmatpush2.msra.mxu0 0.0
    %1232 = vmatprep.subr.mxu0 0.0
    %1233 = vmatpush2.msra.mxu0 0.0
    %1234 = vmatprep.subr.mxu0 0.0
    %1235 = vmatpush2.msra.mxu0 0.0
    %1236 = vmatprep.subr.mxu0 0.0
    %1237 = vmatpush2.msra.mxu0 0.0
    %1238 = vmatprep.subr.mxu0 0.0
    %1239 = vmatpush2.msra.mxu0 0.0
    %1240 = vmatprep.subr.mxu0 0.0
    %1241 = vmatpush2.msra.mxu0 0.0
    %1242 = vmatprep.subr.mxu0 0.0
    %1243 = vmatpush2.msra.mxu0 0.0
    %1244 = vmatprep.subr.mxu0 0.0
    %1245 = vmatpush2.msra.mxu0 0.0
    %1246 = vmatprep.subr.mxu0 0.0
    %1247 = vmatpush2.msra.mxu0 0.0
    %1248 = vmatprep.subr.mxu0 0.0
    %1249 = vmatpush2.msra.mxu0 0.0
    %1250 = vmatprep.subr.mxu0 0.0
    %1251 = vmatpush2.msra.mxu0 0.0
    %1252 = vmatprep.subr.mxu0 0.0
    %1253 = vmatpush2.msra.mxu0 0.0
    %1254 = vmatprep.subr.mxu0 0.0
    %1255 = vmatpush2.msra.mxu0 0.0
    %1256 = vmatprep.subr.mxu0 0.0
    %1257 = vmatpush2.msra.mxu0 0.0
    %1258 = vmatprep.subr.mxu0 0.0
    %1259 = vmatpush2.msra.mxu0 0.0
    %1260 = vmatprep.subr.mxu0 0.0
    %1261 = vmatpush2.msra.mxu0 0.0
    %1262 = vmatprep.mubr.f32.mxu0 0.0
    %1263 = vmatmul.mubr.f32.gmra.mxu0 %v1076
    %v1264 = vpop.f32.mrf.mxu0
    %v1265 = vadd.f32 0.0, %v1264
    %v1266 = vpop.f32.mrf.mxu0
    %1267 = vdwg.mxu0
    %s1268 = smul.u32 3, 3
    %s1269 = smul.addr %s1268, 8
    %s1270 = scalar_lea.vmem [#allocation2], %s1269
    %v1271 = vld [vmem:[%s1270] sm:$0xff]
    %v1272 = vld [vmem:[%s1270 + $0x8] sm:$0xff]
    %v1273 = vld [vmem:[%s1270 + $0x10] sm:$0xff]
    %v1274 = vadd.f32 %v1271, %v1194
    %v1275 = vxor.u32 %v1274, 2147483648
    %v1276 = vmul.f32 %v1275, 1.442695
    %v1277 = vpow.pop %v1276
    %v1278 = vadd.f32 %v1277, 1.0
    %v1279 = vrcp.pop %v1278
    %v1280 = vmul.f32 1.0, %v1279
    %v1281 = vadd.f32 %v1272, %v1196
    %v1282 = vxor.u32 %v1281, 2147483648
    %v1283 = vmul.f32 %v1282, 1.442695
    %v1284 = vpow.pop %v1283
    %v1285 = vadd.f32 %v1284, 1.0
    %v1286 = vrcp.pop %v1285
    %v1287 = vmul.f32 1.0, %v1286
    %v1288 = vadd.f32 %v1265, %v630
    %v1289 = vmul.f32 %v1280, %v1288
    %v1290 = vadd.f32 %v1273, %v1289
    %v1291 = vtanh.pop %v1290
    %v1292 = vsub.f32 1.0, %v1287
    %v1293 = vmul.f32 %v1292, %v1291
    %v1294 = vmul.f32 %v1287, %v1076
    %v1295 = vadd.f32 %v1293, %v1294
    %s1296 = scalar_lea.vmem %s10, 24
    %1297 = vst [vmem:[%s1296] sm:$0xff] %v1295
    %v1298 = vld [vmem:[#allocation6] sm:$0xff]
    %v1299 = vld [vmem:[#allocation6 + $0x8] sm:$0xff]
    %v1300 = vld [vmem:[#allocation6 + $0x10] sm:$0xff]
    %v1301 = vld [vmem:[#allocation6 + $0x18] sm:$0xff]
    %v1302 = vld [vmem:[#allocation6 + $0x20] sm:$0xff]
    %v1303 = vld [vmem:[#allocation6 + $0x28] sm:$0xff]
    %v1304 = vld [vmem:[#allocation6 + $0x30] sm:$0xff]
    %v1305 = vld [vmem:[#allocation6 + $0x38] sm:$0xff]
    %v1306 = vld [vmem:[#allocation6 + $0x40] sm:$0xff]
    %v1307 = vld [vmem:[#allocation6 + $0x48] sm:$0xff]
    %v1308 = vld [vmem:[#allocation6 + $0x50] sm:$0xff]
    %v1309 = vld [vmem:[#allocation6 + $0x58] sm:$0xff]
    %v1310 = vld [vmem:[#allocation6 + $0x60] sm:$0xff]
    %v1311 = vld [vmem:[#allocation6 + $0x68] sm:$0xff]
    %v1312 = vld [vmem:[#allocation6 + $0x70] sm:$0xff]
    %v1313 = vld [vmem:[#allocation6 + $0x78] sm:$0xff]
    %v1314 = vld [vmem:[#allocation6 + $0x80] sm:$0xff]
    %v1315 = vld [vmem:[#allocation6 + $0x88] sm:$0xff]
    %v1316 = vld [vmem:[#allocation6 + $0x90] sm:$0xff]
    %v1317 = vld [vmem:[#allocation6 + $0x98] sm:$0xff]
    %v1318 = vld [vmem:[#allocation6 + $0xa0] sm:$0xff]
    %v1319 = vld [vmem:[#allocation6 + $0xa8] sm:$0xff]
    %v1320 = vld [vmem:[#allocation6 + $0xb0] sm:$0xff]
    %v1321 = vld [vmem:[#allocation6 + $0xb8] sm:$0xff]
    %v1322 = vld [vmem:[#allocation6 + $0xc0] sm:$0xff]
    %v1323 = vld [vmem:[#allocation6 + $0xc8] sm:$0xff]
    %v1324 = vld [vmem:[#allocation6 + $0xd0] sm:$0xff]
    %v1325 = vld [vmem:[#allocation6 + $0xd8] sm:$0xff]
    %v1326 = vld [vmem:[#allocation6 + $0xe0] sm:$0xff]
    %v1327 = vld [vmem:[#allocation6 + $0xe8] sm:$0xff]
    %v1328 = vld [vmem:[#allocation6 + $0xf0] sm:$0xff]
    %v1329 = vld [vmem:[#allocation6 + $0xf8] sm:$0xff]
    %v1330 = vld [vmem:[#allocation6 + $0x100] sm:$0xff]
    %v1331 = vld [vmem:[#allocation6 + $0x108] sm:$0xff]
    %v1332 = vld [vmem:[#allocation6 + $0x110] sm:$0xff]
    %v1333 = vld [vmem:[#allocation6 + $0x118] sm:$0xff]
    %v1334 = vld [vmem:[#allocation6 + $0x120] sm:$0xff]
    %v1335 = vld [vmem:[#allocation6 + $0x128] sm:$0xff]
    %v1336 = vld [vmem:[#allocation6 + $0x130] sm:$0xff]
    %v1337 = vld [vmem:[#allocation6 + $0x138] sm:$0xff]
    %v1338 = vld [vmem:[#allocation6 + $0x140] sm:$0xff]
    %v1339 = vld [vmem:[#allocation6 + $0x148] sm:$0xff]
    %v1340 = vld [vmem:[#allocation6 + $0x150] sm:$0xff]
    %v1341 = vld [vmem:[#allocation6 + $0x158] sm:$0xff]
    %v1342 = vld [vmem:[#allocation6 + $0x160] sm:$0xff]
    %v1343 = vld [vmem:[#allocation6 + $0x168] sm:$0xff]
    %v1344 = vld [vmem:[#allocation6 + $0x170] sm:$0xff]
    %v1345 = vld [vmem:[#allocation6 + $0x178] sm:$0xff]
    %1346 = vmatprep.subr.mxu0 %v1344
    %1347 = vmatpush1.msra.mxu0 %v1343
    %1348 = vmatprep.subr.mxu0 %v1341
    %1349 = vmatpush1.msra.mxu0 %v1340
    %1350 = vmatprep.subr.mxu0 %v1338
    %1351 = vmatpush1.msra.mxu0 %v1337
    %1352 = vmatprep.subr.mxu0 %v1335
    %1353 = vmatpush1.msra.mxu0 %v1334
    %1354 = vmatprep.subr.mxu0 %v1332
    %1355 = vmatpush1.msra.mxu0 %v1331
    %1356 = vmatprep.subr.mxu0 %v1329
    %1357 = vmatpush1.msra.mxu0 %v1328
    %1358 = vmatprep.subr.mxu0 %v1326
    %1359 = vmatpush1.msra.mxu0 %v1325
    %1360 = vmatprep.subr.mxu0 %v1323
    %1361 = vmatpush1.msra.mxu0 %v1322
    %1362 = vmatprep.subr.mxu0 %v1320
    %1363 = vmatpush1.msra.mxu0 %v1319
    %1364 = vmatprep.subr.mxu0 %v1317
    %1365 = vmatpush1.msra.mxu0 %v1316
    %1366 = vmatprep.subr.mxu0 %v1314
    %1367 = vmatpush1.msra.mxu0 %v1313
    %1368 = vmatprep.subr.mxu0 %v1311
    %1369 = vmatpush1.msra.mxu0 %v1310
    %1370 = vmatprep.subr.mxu0 %v1308
    %1371 = vmatpush1.msra.mxu0 %v1307
    %1372 = vmatprep.subr.mxu0 %v1305
    %1373 = vmatpush1.msra.mxu0 %v1304
    %1374 = vmatprep.subr.mxu0 %v1302
    %1375 = vmatpush1.msra.mxu0 %v1301
    %1376 = vmatprep.subr.mxu0 %v1299
    %1377 = vmatpush1.msra.mxu0 %v1298
    %1378 = vmatprep.subr.mxu0 0.0
    %1379 = vmatpush2.msra.mxu0 0.0
    %1380 = vmatprep.subr.mxu0 0.0
    %1381 = vmatpush2.msra.mxu0 0.0
    %1382 = vmatprep.subr.mxu0 0.0
    %1383 = vmatpush2.msra.mxu0 0.0
    %1384 = vmatprep.subr.mxu0 0.0
    %1385 = vmatpush2.msra.mxu0 0.0
    %1386 = vmatprep.subr.mxu0 0.0
    %1387 = vmatpush2.msra.mxu0 0.0
    %1388 = vmatprep.subr.mxu0 0.0
    %1389 = vmatpush2.msra.mxu0 0.0
    %1390 = vmatprep.subr.mxu0 0.0
    %1391 = vmatpush2.msra.mxu0 0.0
    %1392 = vmatprep.subr.mxu0 0.0
    %1393 = vmatpush2.msra.mxu0 0.0
    %1394 = vmatprep.subr.mxu0 0.0
    %1395 = vmatpush2.msra.mxu0 0.0
    %1396 = vmatprep.subr.mxu0 0.0
    %1397 = vmatpush2.msra.mxu0 0.0
    %1398 = vmatprep.subr.mxu0 0.0
    %1399 = vmatpush2.msra.mxu0 0.0
    %1400 = vmatprep.subr.mxu0 0.0
    %1401 = vmatpush2.msra.mxu0 0.0
    %1402 = vmatprep.subr.mxu0 0.0
    %1403 = vmatpush2.msra.mxu0 0.0
    %1404 = vmatprep.subr.mxu0 0.0
    %1405 = vmatpush2.msra.mxu0 0.0
    %1406 = vmatprep.subr.mxu0 0.0
    %1407 = vmatpush2.msra.mxu0 0.0
    %1408 = vmatprep.subr.mxu0 0.0
    %1409 = vmatpush2.msra.mxu0 0.0
    %1410 = vmatprep.mubr.f32.mxu0 0.0
    %1411 = vmatmul.mubr.f32.gmra.mxu0 %v1295
    %v1412 = vpop.f32.mrf.mxu0
    %v1413 = vadd.f32 0.0, %v1412
    %v1414 = vpop.f32.mrf.mxu0
    %v1415 = vadd.f32 0.0, %v1414
    %1416 = vdwg.mxu0
    %1417 = vmatprep.subr.mxu0 0.0
    %1418 = vmatpush1.msra.mxu0 %v1345
    %1419 = vmatprep.subr.mxu0 0.0
    %1420 = vmatpush1.msra.mxu0 %v1342
    %1421 = vmatprep.subr.mxu0 0.0
    %1422 = vmatpush1.msra.mxu0 %v1339
    %1423 = vmatprep.subr.mxu0 0.0
    %1424 = vmatpush1.msra.mxu0 %v1336
    %1425 = vmatprep.subr.mxu0 0.0
    %1426 = vmatpush1.msra.mxu0 %v1333
    %1427 = vmatprep.subr.mxu0 0.0
    %1428 = vmatpush1.msra.mxu0 %v1330
    %1429 = vmatprep.subr.mxu0 0.0
    %1430 = vmatpush1.msra.mxu0 %v1327
    %1431 = vmatprep.subr.mxu0 0.0
    %1432 = vmatpush1.msra.mxu0 %v1324
    %1433 = vmatprep.subr.mxu0 0.0
    %1434 = vmatpush1.msra.mxu0 %v1321
    %1435 = vmatprep.subr.mxu0 0.0
    %1436 = vmatpush1.msra.mxu0 %v1318
    %1437 = vmatprep.subr.mxu0 0.0
    %1438 = vmatpush1.msra.mxu0 %v1315
    %1439 = vmatprep.subr.mxu0 0.0
    %1440 = vmatpush1.msra.mxu0 %v1312
    %1441 = vmatprep.subr.mxu0 0.0
    %1442 = vmatpush1.msra.mxu0 %v1309
    %1443 = vmatprep.subr.mxu0 0.0
    %1444 = vmatpush1.msra.mxu0 %v1306
    %1445 = vmatprep.subr.mxu0 0.0
    %1446 = vmatpush1.msra.mxu0 %v1303
    %1447 = vmatprep.subr.mxu0 0.0
    %1448 = vmatpush1.msra.mxu0 %v1300
    %1449 = vmatprep.subr.mxu0 0.0
    %1450 = vmatpush2.msra.mxu0 0.0
    %1451 = vmatprep.subr.mxu0 0.0
    %1452 = vmatpush2.msra.mxu0 0.0
    %1453 = vmatprep.subr.mxu0 0.0
    %1454 = vmatpush2.msra.mxu0 0.0
    %1455 = vmatprep.subr.mxu0 0.0
    %1456 = vmatpush2.msra.mxu0 0.0
    %1457 = vmatprep.subr.mxu0 0.0
    %1458 = vmatpush2.msra.mxu0 0.0
    %1459 = vmatprep.subr.mxu0 0.0
    %1460 = vmatpush2.msra.mxu0 0.0
    %1461 = vmatprep.subr.mxu0 0.0
    %1462 = vmatpush2.msra.mxu0 0.0
    %1463 = vmatprep.subr.mxu0 0.0
    %1464 = vmatpush2.msra.mxu0 0.0
    %1465 = vmatprep.subr.mxu0 0.0
    %1466 = vmatpush2.msra.mxu0 0.0
    %1467 = vmatprep.subr.mxu0 0.0
    %1468 = vmatpush2.msra.mxu0 0.0
    %1469 = vmatprep.subr.mxu0 0.0
    %1470 = vmatpush2.msra.mxu0 0.0
    %1471 = vmatprep.subr.mxu0 0.0
    %1472 = vmatpush2.msra.mxu0 0.0
    %1473 = vmatprep.subr.mxu0 0.0
    %1474 = vmatpush2.msra.mxu0 0.0
    %1475 = vmatprep.subr.mxu0 0.0
    %1476 = vmatpush2.msra.mxu0 0.0
    %1477 = vmatprep.subr.mxu0 0.0
    %1478 = vmatpush2.msra.mxu0 0.0
    %1479 = vmatprep.subr.mxu0 0.0
    %1480 = vmatpush2.msra.mxu0 0.0
    %1481 = vmatprep.mubr.f32.mxu0 0.0
    %1482 = vmatmul.mubr.f32.gmra.mxu0 %v1295
    %v1483 = vpop.f32.mrf.mxu0
    %v1484 = vadd.f32 0.0, %v1483
    %v1485 = vpop.f32.mrf.mxu0
    %1486 = vdwg.mxu0
    %s1487 = smul.u32 4, 3
    %s1488 = smul.addr %s1487, 8
    %s1489 = scalar_lea.vmem [#allocation2], %s1488
    %v1490 = vld [vmem:[%s1489] sm:$0xff]
    %v1491 = vld [vmem:[%s1489 + $0x8] sm:$0xff]
    %v1492 = vld [vmem:[%s1489 + $0x10] sm:$0xff]
    %v1493 = vadd.f32 %v1490, %v1413
    %v1494 = vxor.u32 %v1493, 2147483648
    %v1495 = vmul.f32 %v1494, 1.442695
    %v1496 = vpow.pop %v1495
    %v1497 = vadd.f32 %v1496, 1.0
    %v1498 = vrcp.pop %v1497
    %v1499 = vmul.f32 1.0, %v1498
    %v1500 = vadd.f32 %v1491, %v1415
    %v1501 = vxor.u32 %v1500, 2147483648
    %v1502 = vmul.f32 %v1501, 1.442695
    %v1503 = vpow.pop %v1502
    %v1504 = vadd.f32 %v1503, 1.0
    %v1505 = vrcp.pop %v1504
    %v1506 = vmul.f32 1.0, %v1505
    %v1507 = vadd.f32 %v1484, %v630
    %v1508 = vmul.f32 %v1499, %v1507
    %v1509 = vadd.f32 %v1492, %v1508
    %v1510 = vtanh.pop %v1509
    %v1511 = vsub.f32 1.0, %v1506
    %v1512 = vmul.f32 %v1511, %v1510
    %v1513 = vmul.f32 %v1506, %v1295
    %v1514 = vadd.f32 %v1512, %v1513
    %s1515 = scalar_lea.vmem %s10, 32
    %1516 = vst [vmem:[%s1515] sm:$0xff] %v1514
    %v1517 = vld [vmem:[#allocation6] sm:$0xff]
    %v1518 = vld [vmem:[#allocation6 + $0x8] sm:$0xff]
    %v1519 = vld [vmem:[#allocation6 + $0x10] sm:$0xff]
    %v1520 = vld [vmem:[#allocation6 + $0x18] sm:$0xff]
    %v1521 = vld [vmem:[#allocation6 + $0x20] sm:$0xff]
    %v1522 = vld [vmem:[#allocation6 + $0x28] sm:$0xff]
    %v1523 = vld [vmem:[#allocation6 + $0x30] sm:$0xff]
    %v1524 = vld [vmem:[#allocation6 + $0x38] sm:$0xff]
    %v1525 = vld [vmem:[#allocation6 + $0x40] sm:$0xff]
    %v1526 = vld [vmem:[#allocation6 + $0x48] sm:$0xff]
    %v1527 = vld [vmem:[#allocation6 + $0x50] sm:$0xff]
    %v1528 = vld [vmem:[#allocation6 + $0x58] sm:$0xff]
    %v1529 = vld [vmem:[#allocation6 + $0x60] sm:$0xff]
    %v1530 = vld [vmem:[#allocation6 + $0x68] sm:$0xff]
    %v1531 = vld [vmem:[#allocation6 + $0x70] sm:$0xff]
    %v1532 = vld [vmem:[#allocation6 + $0x78] sm:$0xff]
    %v1533 = vld [vmem:[#allocation6 + $0x80] sm:$0xff]
    %v1534 = vld [vmem:[#allocation6 + $0x88] sm:$0xff]
    %v1535 = vld [vmem:[#allocation6 + $0x90] sm:$0xff]
    %v1536 = vld [vmem:[#allocation6 + $0x98] sm:$0xff]
    %v1537 = vld [vmem:[#allocation6 + $0xa0] sm:$0xff]
    %v1538 = vld [vmem:[#allocation6 + $0xa8] sm:$0xff]
    %v1539 = vld [vmem:[#allocation6 + $0xb0] sm:$0xff]
    %v1540 = vld [vmem:[#allocation6 + $0xb8] sm:$0xff]
    %v1541 = vld [vmem:[#allocation6 + $0xc0] sm:$0xff]
    %v1542 = vld [vmem:[#allocation6 + $0xc8] sm:$0xff]
    %v1543 = vld [vmem:[#allocation6 + $0xd0] sm:$0xff]
    %v1544 = vld [vmem:[#allocation6 + $0xd8] sm:$0xff]
    %v1545 = vld [vmem:[#allocation6 + $0xe0] sm:$0xff]
    %v1546 = vld [vmem:[#allocation6 + $0xe8] sm:$0xff]
    %v1547 = vld [vmem:[#allocation6 + $0xf0] sm:$0xff]
    %v1548 = vld [vmem:[#allocation6 + $0xf8] sm:$0xff]
    %v1549 = vld [vmem:[#allocation6 + $0x100] sm:$0xff]
    %v1550 = vld [vmem:[#allocation6 + $0x108] sm:$0xff]
    %v1551 = vld [vmem:[#allocation6 + $0x110] sm:$0xff]
    %v1552 = vld [vmem:[#allocation6 + $0x118] sm:$0xff]
    %v1553 = vld [vmem:[#allocation6 + $0x120] sm:$0xff]
    %v1554 = vld [vmem:[#allocation6 + $0x128] sm:$0xff]
    %v1555 = vld [vmem:[#allocation6 + $0x130] sm:$0xff]
    %v1556 = vld [vmem:[#allocation6 + $0x138] sm:$0xff]
    %v1557 = vld [vmem:[#allocation6 + $0x140] sm:$0xff]
    %v1558 = vld [vmem:[#allocation6 + $0x148] sm:$0xff]
    %v1559 = vld [vmem:[#allocation6 + $0x150] sm:$0xff]
    %v1560 = vld [vmem:[#allocation6 + $0x158] sm:$0xff]
    %v1561 = vld [vmem:[#allocation6 + $0x160] sm:$0xff]
    %v1562 = vld [vmem:[#allocation6 + $0x168] sm:$0xff]
    %v1563 = vld [vmem:[#allocation6 + $0x170] sm:$0xff]
    %v1564 = vld [vmem:[#allocation6 + $0x178] sm:$0xff]
    %1565 = vmatprep.subr.mxu0 %v1563
    %1566 = vmatpush1.msra.mxu0 %v1562
    %1567 = vmatprep.subr.mxu0 %v1560
    %1568 = vmatpush1.msra.mxu0 %v1559
    %1569 = vmatprep.subr.mxu0 %v1557
    %1570 = vmatpush1.msra.mxu0 %v1556
    %1571 = vmatprep.subr.mxu0 %v1554
    %1572 = vmatpush1.msra.mxu0 %v1553
    %1573 = vmatprep.subr.mxu0 %v1551
    %1574 = vmatpush1.msra.mxu0 %v1550
    %1575 = vmatprep.subr.mxu0 %v1548
    %1576 = vmatpush1.msra.mxu0 %v1547
    %1577 = vmatprep.subr.mxu0 %v1545
    %1578 = vmatpush1.msra.mxu0 %v1544
    %1579 = vmatprep.subr.mxu0 %v1542
    %1580 = vmatpush1.msra.mxu0 %v1541
    %1581 = vmatprep.subr.mxu0 %v1539
    %1582 = vmatpush1.msra.mxu0 %v1538
    %1583 = vmatprep.subr.mxu0 %v1536
    %1584 = vmatpush1.msra.mxu0 %v1535
    %1585 = vmatprep.subr.mxu0 %v1533
    %1586 = vmatpush1.msra.mxu0 %v1532
    %1587 = vmatprep.subr.mxu0 %v1530
    %1588 = vmatpush1.msra.mxu0 %v1529
    %1589 = vmatprep.subr.mxu0 %v1527
    %1590 = vmatpush1.msra.mxu0 %v1526
    %1591 = vmatprep.subr.mxu0 %v1524
    %1592 = vmatpush1.msra.mxu0 %v1523
    %1593 = vmatprep.subr.mxu0 %v1521
    %1594 = vmatpush1.msra.mxu0 %v1520
    %1595 = vmatprep.subr.mxu0 %v1518
    %1596 = vmatpush1.msra.mxu0 %v1517
    %1597 = vmatprep.subr.mxu0 0.0
    %1598 = vmatpush2.msra.mxu0 0.0
    %1599 = vmatprep.subr.mxu0 0.0
    %1600 = vmatpush2.msra.mxu0 0.0
    %1601 = vmatprep.subr.mxu0 0.0
    %1602 = vmatpush2.msra.mxu0 0.0
    %1603 = vmatprep.subr.mxu0 0.0
    %1604 = vmatpush2.msra.mxu0 0.0
    %1605 = vmatprep.subr.mxu0 0.0
    %1606 = vmatpush2.msra.mxu0 0.0
    %1607 = vmatprep.subr.mxu0 0.0
    %1608 = vmatpush2.msra.mxu0 0.0
    %1609 = vmatprep.subr.mxu0 0.0
    %1610 = vmatpush2.msra.mxu0 0.0
    %1611 = vmatprep.subr.mxu0 0.0
    %1612 = vmatpush2.msra.mxu0 0.0
    %1613 = vmatprep.subr.mxu0 0.0
    %1614 = vmatpush2.msra.mxu0 0.0
    %1615 = vmatprep.subr.mxu0 0.0
    %1616 = vmatpush2.msra.mxu0 0.0
    %1617 = vmatprep.subr.mxu0 0.0
    %1618 = vmatpush2.msra.mxu0 0.0
    %1619 = vmatprep.subr.mxu0 0.0
    %1620 = vmatpush2.msra.mxu0 0.0
    %1621 = vmatprep.subr.mxu0 0.0
    %1622 = vmatpush2.msra.mxu0 0.0
    %1623 = vmatprep.subr.mxu0 0.0
    %1624 = vmatpush2.msra.mxu0 0.0
    %1625 = vmatprep.subr.mxu0 0.0
    %1626 = vmatpush2.msra.mxu0 0.0
    %1627 = vmatprep.subr.mxu0 0.0
    %1628 = vmatpush2.msra.mxu0 0.0
    %1629 = vmatprep.mubr.f32.mxu0 0.0
    %1630 = vmatmul.mubr.f32.gmra.mxu0 %v1514
    %v1631 = vpop.f32.mrf.mxu0
    %v1632 = vadd.f32 0.0, %v1631
    %v1633 = vpop.f32.mrf.mxu0
    %v1634 = vadd.f32 0.0, %v1633
    %1635 = vdwg.mxu0
    %1636 = vmatprep.subr.mxu0 0.0
    %1637 = vmatpush1.msra.mxu0 %v1564
    %1638 = vmatprep.subr.mxu0 0.0
    %1639 = vmatpush1.msra.mxu0 %v1561
    %1640 = vmatprep.subr.mxu0 0.0
    %1641 = vmatpush1.msra.mxu0 %v1558
    %1642 = vmatprep.subr.mxu0 0.0
    %1643 = vmatpush1.msra.mxu0 %v1555
    %1644 = vmatprep.subr.mxu0 0.0
    %1645 = vmatpush1.msra.mxu0 %v1552
    %1646 = vmatprep.subr.mxu0 0.0
    %1647 = vmatpush1.msra.mxu0 %v1549
    %1648 = vmatprep.subr.mxu0 0.0
    %1649 = vmatpush1.msra.mxu0 %v1546
    %1650 = vmatprep.subr.mxu0 0.0
    %1651 = vmatpush1.msra.mxu0 %v1543
    %1652 = vmatprep.subr.mxu0 0.0
    %1653 = vmatpush1.msra.mxu0 %v1540
    %1654 = vmatprep.subr.mxu0 0.0
    %1655 = vmatpush1.msra.mxu0 %v1537
    %1656 = vmatprep.subr.mxu0 0.0
    %1657 = vmatpush1.msra.mxu0 %v1534
    %1658 = vmatprep.subr.mxu0 0.0
    %1659 = vmatpush1.msra.mxu0 %v1531
    %1660 = vmatprep.subr.mxu0 0.0
    %1661 = vmatpush1.msra.mxu0 %v1528
    %1662 = vmatprep.subr.mxu0 0.0
    %1663 = vmatpush1.msra.mxu0 %v1525
    %1664 = vmatprep.subr.mxu0 0.0
    %1665 = vmatpush1.msra.mxu0 %v1522
    %1666 = vmatprep.subr.mxu0 0.0
    %1667 = vmatpush1.msra.mxu0 %v1519
    %1668 = vmatprep.subr.mxu0 0.0
    %1669 = vmatpush2.msra.mxu0 0.0
    %1670 = vmatprep.subr.mxu0 0.0
    %1671 = vmatpush2.msra.mxu0 0.0
    %1672 = vmatprep.subr.mxu0 0.0
    %1673 = vmatpush2.msra.mxu0 0.0
    %1674 = vmatprep.subr.mxu0 0.0
    %1675 = vmatpush2.msra.mxu0 0.0
    %1676 = vmatprep.subr.mxu0 0.0
    %1677 = vmatpush2.msra.mxu0 0.0
    %1678 = vmatprep.subr.mxu0 0.0
    %1679 = vmatpush2.msra.mxu0 0.0
    %1680 = vmatprep.subr.mxu0 0.0
    %1681 = vmatpush2.msra.mxu0 0.0
    %1682 = vmatprep.subr.mxu0 0.0
    %1683 = vmatpush2.msra.mxu0 0.0
    %1684 = vmatprep.subr.mxu0 0.0
    %1685 = vmatpush2.msra.mxu0 0.0
    %1686 = vmatprep.subr.mxu0 0.0
    %1687 = vmatpush2.msra.mxu0 0.0
    %1688 = vmatprep.subr.mxu0 0.0
    %1689 = vmatpush2.msra.mxu0 0.0
    %1690 = vmatprep.subr.mxu0 0.0
    %1691 = vmatpush2.msra.mxu0 0.0
    %1692 = vmatprep.subr.mxu0 0.0
    %1693 = vmatpush2.msra.mxu0 0.0
    %1694 = vmatprep.subr.mxu0 0.0
    %1695 = vmatpush2.msra.mxu0 0.0
    %1696 = vmatprep.subr.mxu0 0.0
    %1697 = vmatpush2.msra.mxu0 0.0
    %1698 = vmatprep.subr.mxu0 0.0
    %1699 = vmatpush2.msra.mxu0 0.0
    %1700 = vmatprep.mubr.f32.mxu0 0.0
    %1701 = vmatmul.mubr.f32.gmra.mxu0 %v1514
    %v1702 = vpop.f32.mrf.mxu0
    %v1703 = vadd.f32 0.0, %v1702
    %v1704 = vpop.f32.mrf.mxu0
    %1705 = vdwg.mxu0
    %s1706 = smul.u32 5, 3
    %s1707 = smul.addr %s1706, 8
    %s1708 = scalar_lea.vmem [#allocation2], %s1707
    %v1709 = vld [vmem:[%s1708] sm:$0xff]
    %v1710 = vld [vmem:[%s1708 + $0x8] sm:$0xff]
    %v1711 = vld [vmem:[%s1708 + $0x10] sm:$0xff]
    %v1712 = vadd.f32 %v1709, %v1632
    %v1713 = vxor.u32 %v1712, 2147483648
    %v1714 = vmul.f32 %v1713, 1.442695
    %v1715 = vpow.pop %v1714
    %v1716 = vadd.f32 %v1715, 1.0
    %v1717 = vrcp.pop %v1716
    %v1718 = vmul.f32 1.0, %v1717
    %v1719 = vadd.f32 %v1710, %v1634
    %v1720 = vxor.u32 %v1719, 2147483648
    %v1721 = vmul.f32 %v1720, 1.442695
    %v1722 = vpow.pop %v1721
    %v1723 = vadd.f32 %v1722, 1.0
    %v1724 = vrcp.pop %v1723
    %v1725 = vmul.f32 1.0, %v1724
    %v1726 = vadd.f32 %v1703, %v630
    %v1727 = vmul.f32 %v1718, %v1726
    %v1728 = vadd.f32 %v1711, %v1727
    %v1729 = vtanh.pop %v1728
    %v1730 = vsub.f32 1.0, %v1725
    %v1731 = vmul.f32 %v1730, %v1729
    %v1732 = vmul.f32 %v1725, %v1514
    %v1733 = vadd.f32 %v1731, %v1732
    %s1734 = scalar_lea.vmem %s10, 40
    %1735 = vst [vmem:[%s1734] sm:$0xff] %v1733
    %v1736 = vld [vmem:[#allocation6] sm:$0xff]
    %v1737 = vld [vmem:[#allocation6 + $0x8] sm:$0xff]
    %v1738 = vld [vmem:[#allocation6 + $0x10] sm:$0xff]
    %v1739 = vld [vmem:[#allocation6 + $0x18] sm:$0xff]
    %v1740 = vld [vmem:[#allocation6 + $0x20] sm:$0xff]
    %v1741 = vld [vmem:[#allocation6 + $0x28] sm:$0xff]
    %v1742 = vld [vmem:[#allocation6 + $0x30] sm:$0xff]
    %v1743 = vld [vmem:[#allocation6 + $0x38] sm:$0xff]
    %v1744 = vld [vmem:[#allocation6 + $0x40] sm:$0xff]
    %v1745 = vld [vmem:[#allocation6 + $0x48] sm:$0xff]
    %v1746 = vld [vmem:[#allocation6 + $0x50] sm:$0xff]
    %v1747 = vld [vmem:[#allocation6 + $0x58] sm:$0xff]
    %v1748 = vld [vmem:[#allocation6 + $0x60] sm:$0xff]
    %v1749 = vld [vmem:[#allocation6 + $0x68] sm:$0xff]
    %v1750 = vld [vmem:[#allocation6 + $0x70] sm:$0xff]
    %v1751 = vld [vmem:[#allocation6 + $0x78] sm:$0xff]
    %v1752 = vld [vmem:[#allocation6 + $0x80] sm:$0xff]
    %v1753 = vld [vmem:[#allocation6 + $0x88] sm:$0xff]
    %v1754 = vld [vmem:[#allocation6 + $0x90] sm:$0xff]
    %v1755 = vld [vmem:[#allocation6 + $0x98] sm:$0xff]
    %v1756 = vld [vmem:[#allocation6 + $0xa0] sm:$0xff]
    %v1757 = vld [vmem:[#allocation6 + $0xa8] sm:$0xff]
    %v1758 = vld [vmem:[#allocation6 + $0xb0] sm:$0xff]
    %v1759 = vld [vmem:[#allocation6 + $0xb8] sm:$0xff]
    %v1760 = vld [vmem:[#allocation6 + $0xc0] sm:$0xff]
    %v1761 = vld [vmem:[#allocation6 + $0xc8] sm:$0xff]
    %v1762 = vld [vmem:[#allocation6 + $0xd0] sm:$0xff]
    %v1763 = vld [vmem:[#allocation6 + $0xd8] sm:$0xff]
    %v1764 = vld [vmem:[#allocation6 + $0xe0] sm:$0xff]
    %v1765 = vld [vmem:[#allocation6 + $0xe8] sm:$0xff]
    %v1766 = vld [vmem:[#allocation6 + $0xf0] sm:$0xff]
    %v1767 = vld [vmem:[#allocation6 + $0xf8] sm:$0xff]
    %v1768 = vld [vmem:[#allocation6 + $0x100] sm:$0xff]
    %v1769 = vld [vmem:[#allocation6 + $0x108] sm:$0xff]
    %v1770 = vld [vmem:[#allocation6 + $0x110] sm:$0xff]
    %v1771 = vld [vmem:[#allocation6 + $0x118] sm:$0xff]
    %v1772 = vld [vmem:[#allocation6 + $0x120] sm:$0xff]
    %v1773 = vld [vmem:[#allocation6 + $0x128] sm:$0xff]
    %v1774 = vld [vmem:[#allocation6 + $0x130] sm:$0xff]
    %v1775 = vld [vmem:[#allocation6 + $0x138] sm:$0xff]
    %v1776 = vld [vmem:[#allocation6 + $0x140] sm:$0xff]
    %v1777 = vld [vmem:[#allocation6 + $0x148] sm:$0xff]
    %v1778 = vld [vmem:[#allocation6 + $0x150] sm:$0xff]
    %v1779 = vld [vmem:[#allocation6 + $0x158] sm:$0xff]
    %v1780 = vld [vmem:[#allocation6 + $0x160] sm:$0xff]
    %v1781 = vld [vmem:[#allocation6 + $0x168] sm:$0xff]
    %v1782 = vld [vmem:[#allocation6 + $0x170] sm:$0xff]
    %v1783 = vld [vmem:[#allocation6 + $0x178] sm:$0xff]
    %1784 = vmatprep.subr.mxu0 %v1782
    %1785 = vmatpush1.msra.mxu0 %v1781
    %1786 = vmatprep.subr.mxu0 %v1779
    %1787 = vmatpush1.msra.mxu0 %v1778
    %1788 = vmatprep.subr.mxu0 %v1776
    %1789 = vmatpush1.msra.mxu0 %v1775
    %1790 = vmatprep.subr.mxu0 %v1773
    %1791 = vmatpush1.msra.mxu0 %v1772
    %1792 = vmatprep.subr.mxu0 %v1770
    %1793 = vmatpush1.msra.mxu0 %v1769
    %1794 = vmatprep.subr.mxu0 %v1767
    %1795 = vmatpush1.msra.mxu0 %v1766
    %1796 = vmatprep.subr.mxu0 %v1764
    %1797 = vmatpush1.msra.mxu0 %v1763
    %1798 = vmatprep.subr.mxu0 %v1761
    %1799 = vmatpush1.msra.mxu0 %v1760
    %1800 = vmatprep.subr.mxu0 %v1758
    %1801 = vmatpush1.msra.mxu0 %v1757
    %1802 = vmatprep.subr.mxu0 %v1755
    %1803 = vmatpush1.msra.mxu0 %v1754
    %1804 = vmatprep.subr.mxu0 %v1752
    %1805 = vmatpush1.msra.mxu0 %v1751
    %1806 = vmatprep.subr.mxu0 %v1749
    %1807 = vmatpush1.msra.mxu0 %v1748
    %1808 = vmatprep.subr.mxu0 %v1746
    %1809 = vmatpush1.msra.mxu0 %v1745
    %1810 = vmatprep.subr.mxu0 %v1743
    %1811 = vmatpush1.msra.mxu0 %v1742
    %1812 = vmatprep.subr.mxu0 %v1740
    %1813 = vmatpush1.msra.mxu0 %v1739
    %1814 = vmatprep.subr.mxu0 %v1737
    %1815 = vmatpush1.msra.mxu0 %v1736
    %1816 = vmatprep.subr.mxu0 0.0
    %1817 = vmatpush2.msra.mxu0 0.0
    %1818 = vmatprep.subr.mxu0 0.0
    %1819 = vmatpush2.msra.mxu0 0.0
    %1820 = vmatprep.subr.mxu0 0.0
    %1821 = vmatpush2.msra.mxu0 0.0
    %1822 = vmatprep.subr.mxu0 0.0
    %1823 = vmatpush2.msra.mxu0 0.0
    %1824 = vmatprep.subr.mxu0 0.0
    %1825 = vmatpush2.msra.mxu0 0.0
    %1826 = vmatprep.subr.mxu0 0.0
    %1827 = vmatpush2.msra.mxu0 0.0
    %1828 = vmatprep.subr.mxu0 0.0
    %1829 = vmatpush2.msra.mxu0 0.0
    %1830 = vmatprep.subr.mxu0 0.0
    %1831 = vmatpush2.msra.mxu0 0.0
    %1832 = vmatprep.subr.mxu0 0.0
    %1833 = vmatpush2.msra.mxu0 0.0
    %1834 = vmatprep.subr.mxu0 0.0
    %1835 = vmatpush2.msra.mxu0 0.0
    %1836 = vmatprep.subr.mxu0 0.0
    %1837 = vmatpush2.msra.mxu0 0.0
    %1838 = vmatprep.subr.mxu0 0.0
    %1839 = vmatpush2.msra.mxu0 0.0
    %1840 = vmatprep.subr.mxu0 0.0
    %1841 = vmatpush2.msra.mxu0 0.0
    %1842 = vmatprep.subr.mxu0 0.0
    %1843 = vmatpush2.msra.mxu0 0.0
    %1844 = vmatprep.subr.mxu0 0.0
    %1845 = vmatpush2.msra.mxu0 0.0
    %1846 = vmatprep.subr.mxu0 0.0
    %1847 = vmatpush2.msra.mxu0 0.0
    %1848 = vmatprep.mubr.f32.mxu0 0.0
    %1849 = vmatmul.mubr.f32.gmra.mxu0 %v1733
    %v1850 = vpop.f32.mrf.mxu0
    %v1851 = vadd.f32 0.0, %v1850
    %v1852 = vpop.f32.mrf.mxu0
    %v1853 = vadd.f32 0.0, %v1852
    %1854 = vdwg.mxu0
    %1855 = vmatprep.subr.mxu0 0.0
    %1856 = vmatpush1.msra.mxu0 %v1783
    %1857 = vmatprep.subr.mxu0 0.0
    %1858 = vmatpush1.msra.mxu0 %v1780
    %1859 = vmatprep.subr.mxu0 0.0
    %1860 = vmatpush1.msra.mxu0 %v1777
    %1861 = vmatprep.subr.mxu0 0.0
    %1862 = vmatpush1.msra.mxu0 %v1774
    %1863 = vmatprep.subr.mxu0 0.0
    %1864 = vmatpush1.msra.mxu0 %v1771
    %1865 = vmatprep.subr.mxu0 0.0
    %1866 = vmatpush1.msra.mxu0 %v1768
    %1867 = vmatprep.subr.mxu0 0.0
    %1868 = vmatpush1.msra.mxu0 %v1765
    %1869 = vmatprep.subr.mxu0 0.0
    %1870 = vmatpush1.msra.mxu0 %v1762
    %1871 = vmatprep.subr.mxu0 0.0
    %1872 = vmatpush1.msra.mxu0 %v1759
    %1873 = vmatprep.subr.mxu0 0.0
    %1874 = vmatpush1.msra.mxu0 %v1756
    %1875 = vmatprep.subr.mxu0 0.0
    %1876 = vmatpush1.msra.mxu0 %v1753
    %1877 = vmatprep.subr.mxu0 0.0
    %1878 = vmatpush1.msra.mxu0 %v1750
    %1879 = vmatprep.subr.mxu0 0.0
    %1880 = vmatpush1.msra.mxu0 %v1747
    %1881 = vmatprep.subr.mxu0 0.0
    %1882 = vmatpush1.msra.mxu0 %v1744
    %1883 = vmatprep.subr.mxu0 0.0
    %1884 = vmatpush1.msra.mxu0 %v1741
    %1885 = vmatprep.subr.mxu0 0.0
    %1886 = vmatpush1.msra.mxu0 %v1738
    %1887 = vmatprep.subr.mxu0 0.0
    %1888 = vmatpush2.msra.mxu0 0.0
    %1889 = vmatprep.subr.mxu0 0.0
    %1890 = vmatpush2.msra.mxu0 0.0
    %1891 = vmatprep.subr.mxu0 0.0
    %1892 = vmatpush2.msra.mxu0 0.0
    %1893 = vmatprep.subr.mxu0 0.0
    %1894 = vmatpush2.msra.mxu0 0.0
    %1895 = vmatprep.subr.mxu0 0.0
    %1896 = vmatpush2.msra.mxu0 0.0
    %1897 = vmatprep.subr.mxu0 0.0
    %1898 = vmatpush2.msra.mxu0 0.0
    %1899 = vmatprep.subr.mxu0 0.0
    %1900 = vmatpush2.msra.mxu0 0.0
    %1901 = vmatprep.subr.mxu0 0.0
    %1902 = vmatpush2.msra.mxu0 0.0
    %1903 = vmatprep.subr.mxu0 0.0
    %1904 = vmatpush2.msra.mxu0 0.0
    %1905 = vmatprep.subr.mxu0 0.0
    %1906 = vmatpush2.msra.mxu0 0.0
    %1907 = vmatprep.subr.mxu0 0.0
    %1908 = vmatpush2.msra.mxu0 0.0
    %1909 = vmatprep.subr.mxu0 0.0
    %1910 = vmatpush2.msra.mxu0 0.0
    %1911 = vmatprep.subr.mxu0 0.0
    %1912 = vmatpush2.msra.mxu0 0.0
    %1913 = vmatprep.subr.mxu0 0.0
    %1914 = vmatpush2.msra.mxu0 0.0
    %1915 = vmatprep.subr.mxu0 0.0
    %1916 = vmatpush2.msra.mxu0 0.0
    %1917 = vmatprep.subr.mxu0 0.0
    %1918 = vmatpush2.msra.mxu0 0.0
    %1919 = vmatprep.mubr.f32.mxu0 0.0
    %1920 = vmatmul.mubr.f32.gmra.mxu0 %v1733
    %v1921 = vpop.f32.mrf.mxu0
    %v1922 = vadd.f32 0.0, %v1921
    %v1923 = vpop.f32.mrf.mxu0
    %1924 = vdwg.mxu0
    %s1925 = smul.u32 6, 3
    %s1926 = smul.addr %s1925, 8
    %s1927 = scalar_lea.vmem [#allocation2], %s1926
    %v1928 = vld [vmem:[%s1927] sm:$0xff]
    %v1929 = vld [vmem:[%s1927 + $0x8] sm:$0xff]
    %v1930 = vld [vmem:[%s1927 + $0x10] sm:$0xff]
    %v1931 = vadd.f32 %v1928, %v1851
    %v1932 = vxor.u32 %v1931, 2147483648
    %v1933 = vmul.f32 %v1932, 1.442695
    %v1934 = vpow.pop %v1933
    %v1935 = vadd.f32 %v1934, 1.0
    %v1936 = vrcp.pop %v1935
    %v1937 = vmul.f32 1.0, %v1936
    %v1938 = vadd.f32 %v1929, %v1853
    %v1939 = vxor.u32 %v1938, 2147483648
    %v1940 = vmul.f32 %v1939, 1.442695
    %v1941 = vpow.pop %v1940
    %v1942 = vadd.f32 %v1941, 1.0
    %v1943 = vrcp.pop %v1942
    %v1944 = vmul.f32 1.0, %v1943
    %v1945 = vadd.f32 %v1922, %v630
    %v1946 = vmul.f32 %v1937, %v1945
    %v1947 = vadd.f32 %v1930, %v1946
    %v1948 = vtanh.pop %v1947
    %v1949 = vsub.f32 1.0, %v1944
    %v1950 = vmul.f32 %v1949, %v1948
    %v1951 = vmul.f32 %v1944, %v1733
    %v1952 = vadd.f32 %v1950, %v1951
    %s1953 = scalar_lea.vmem %s10, 48
    %1954 = vst [vmem:[%s1953] sm:$0xff] %v1952
    %v1955 = vld [vmem:[#allocation6] sm:$0xff]
    %v1956 = vld [vmem:[#allocation6 + $0x8] sm:$0xff]
    %v1957 = vld [vmem:[#allocation6 + $0x10] sm:$0xff]
    %v1958 = vld [vmem:[#allocation6 + $0x18] sm:$0xff]
    %v1959 = vld [vmem:[#allocation6 + $0x20] sm:$0xff]
    %v1960 = vld [vmem:[#allocation6 + $0x28] sm:$0xff]
    %v1961 = vld [vmem:[#allocation6 + $0x30] sm:$0xff]
    %v1962 = vld [vmem:[#allocation6 + $0x38] sm:$0xff]
    %v1963 = vld [vmem:[#allocation6 + $0x40] sm:$0xff]
    %v1964 = vld [vmem:[#allocation6 + $0x48] sm:$0xff]
    %v1965 = vld [vmem:[#allocation6 + $0x50] sm:$0xff]
    %v1966 = vld [vmem:[#allocation6 + $0x58] sm:$0xff]
    %v1967 = vld [vmem:[#allocation6 + $0x60] sm:$0xff]
    %v1968 = vld [vmem:[#allocation6 + $0x68] sm:$0xff]
    %v1969 = vld [vmem:[#allocation6 + $0x70] sm:$0xff]
    %v1970 = vld [vmem:[#allocation6 + $0x78] sm:$0xff]
    %v1971 = vld [vmem:[#allocation6 + $0x80] sm:$0xff]
    %v1972 = vld [vmem:[#allocation6 + $0x88] sm:$0xff]
    %v1973 = vld [vmem:[#allocation6 + $0x90] sm:$0xff]
    %v1974 = vld [vmem:[#allocation6 + $0x98] sm:$0xff]
    %v1975 = vld [vmem:[#allocation6 + $0xa0] sm:$0xff]
    %v1976 = vld [vmem:[#allocation6 + $0xa8] sm:$0xff]
    %v1977 = vld [vmem:[#allocation6 + $0xb0] sm:$0xff]
    %v1978 = vld [vmem:[#allocation6 + $0xb8] sm:$0xff]
    %v1979 = vld [vmem:[#allocation6 + $0xc0] sm:$0xff]
    %v1980 = vld [vmem:[#allocation6 + $0xc8] sm:$0xff]
    %v1981 = vld [vmem:[#allocation6 + $0xd0] sm:$0xff]
    %v1982 = vld [vmem:[#allocation6 + $0xd8] sm:$0xff]
    %v1983 = vld [vmem:[#allocation6 + $0xe0] sm:$0xff]
    %v1984 = vld [vmem:[#allocation6 + $0xe8] sm:$0xff]
    %v1985 = vld [vmem:[#allocation6 + $0xf0] sm:$0xff]
    %v1986 = vld [vmem:[#allocation6 + $0xf8] sm:$0xff]
    %v1987 = vld [vmem:[#allocation6 + $0x100] sm:$0xff]
    %v1988 = vld [vmem:[#allocation6 + $0x108] sm:$0xff]
    %v1989 = vld [vmem:[#allocation6 + $0x110] sm:$0xff]
    %v1990 = vld [vmem:[#allocation6 + $0x118] sm:$0xff]
    %v1991 = vld [vmem:[#allocation6 + $0x120] sm:$0xff]
    %v1992 = vld [vmem:[#allocation6 + $0x128] sm:$0xff]
    %v1993 = vld [vmem:[#allocation6 + $0x130] sm:$0xff]
    %v1994 = vld [vmem:[#allocation6 + $0x138] sm:$0xff]
    %v1995 = vld [vmem:[#allocation6 + $0x140] sm:$0xff]
    %v1996 = vld [vmem:[#allocation6 + $0x148] sm:$0xff]
    %v1997 = vld [vmem:[#allocation6 + $0x150] sm:$0xff]
    %v1998 = vld [vmem:[#allocation6 + $0x158] sm:$0xff]
    %v1999 = vld [vmem:[#allocation6 + $0x160] sm:$0xff]
    %v2000 = vld [vmem:[#allocation6 + $0x168] sm:$0xff]
    %v2001 = vld [vmem:[#allocation6 + $0x170] sm:$0xff]
    %v2002 = vld [vmem:[#allocation6 + $0x178] sm:$0xff]
    %2003 = vmatprep.subr.mxu0 %v2001
    %2004 = vmatpush1.msra.mxu0 %v2000
    %2005 = vmatprep.subr.mxu0 %v1998
    %2006 = vmatpush1.msra.mxu0 %v1997
    %2007 = vmatprep.subr.mxu0 %v1995
    %2008 = vmatpush1.msra.mxu0 %v1994
    %2009 = vmatprep.subr.mxu0 %v1992
    %2010 = vmatpush1.msra.mxu0 %v1991
    %2011 = vmatprep.subr.mxu0 %v1989
    %2012 = vmatpush1.msra.mxu0 %v1988
    %2013 = vmatprep.subr.mxu0 %v1986
    %2014 = vmatpush1.msra.mxu0 %v1985
    %2015 = vmatprep.subr.mxu0 %v1983
    %2016 = vmatpush1.msra.mxu0 %v1982
    %2017 = vmatprep.subr.mxu0 %v1980
    %2018 = vmatpush1.msra.mxu0 %v1979
    %2019 = vmatprep.subr.mxu0 %v1977
    %2020 = vmatpush1.msra.mxu0 %v1976
    %2021 = vmatprep.subr.mxu0 %v1974
    %2022 = vmatpush1.msra.mxu0 %v1973
    %2023 = vmatprep.subr.mxu0 %v1971
    %2024 = vmatpush1.msra.mxu0 %v1970
    %2025 = vmatprep.subr.mxu0 %v1968
    %2026 = vmatpush1.msra.mxu0 %v1967
    %2027 = vmatprep.subr.mxu0 %v1965
    %2028 = vmatpush1.msra.mxu0 %v1964
    %2029 = vmatprep.subr.mxu0 %v1962
    %2030 = vmatpush1.msra.mxu0 %v1961
    %2031 = vmatprep.subr.mxu0 %v1959
    %2032 = vmatpush1.msra.mxu0 %v1958
    %2033 = vmatprep.subr.mxu0 %v1956
    %2034 = vmatpush1.msra.mxu0 %v1955
    %2035 = vmatprep.subr.mxu0 0.0
    %2036 = vmatpush2.msra.mxu0 0.0
    %2037 = vmatprep.subr.mxu0 0.0
    %2038 = vmatpush2.msra.mxu0 0.0
    %2039 = vmatprep.subr.mxu0 0.0
    %2040 = vmatpush2.msra.mxu0 0.0
    %2041 = vmatprep.subr.mxu0 0.0
    %2042 = vmatpush2.msra.mxu0 0.0
    %2043 = vmatprep.subr.mxu0 0.0
    %2044 = vmatpush2.msra.mxu0 0.0
    %2045 = vmatprep.subr.mxu0 0.0
    %2046 = vmatpush2.msra.mxu0 0.0
    %2047 = vmatprep.subr.mxu0 0.0
    %2048 = vmatpush2.msra.mxu0 0.0
    %2049 = vmatprep.subr.mxu0 0.0
    %2050 = vmatpush2.msra.mxu0 0.0
    %2051 = vmatprep.subr.mxu0 0.0
    %2052 = vmatpush2.msra.mxu0 0.0
    %2053 = vmatprep.subr.mxu0 0.0
    %2054 = vmatpush2.msra.mxu0 0.0
    %2055 = vmatprep.subr.mxu0 0.0
    %2056 = vmatpush2.msra.mxu0 0.0
    %2057 = vmatprep.subr.mxu0 0.0
    %2058 = vmatpush2.msra.mxu0 0.0
    %2059 = vmatprep.subr.mxu0 0.0
    %2060 = vmatpush2.msra.mxu0 0.0
    %2061 = vmatprep.subr.mxu0 0.0
    %2062 = vmatpush2.msra.mxu0 0.0
    %2063 = vmatprep.subr.mxu0 0.0
    %2064 = vmatpush2.msra.mxu0 0.0
    %2065 = vmatprep.subr.mxu0 0.0
    %2066 = vmatpush2.msra.mxu0 0.0
    %2067 = vmatprep.mubr.f32.mxu0 0.0
    %2068 = vmatmul.mubr.f32.gmra.mxu0 %v1952
    %v2069 = vpop.f32.mrf.mxu0
    %v2070 = vadd.f32 0.0, %v2069
    %v2071 = vpop.f32.mrf.mxu0
    %v2072 = vadd.f32 0.0, %v2071
    %2073 = vdwg.mxu0
    %2074 = vmatprep.subr.mxu0 0.0
    %2075 = vmatpush1.msra.mxu0 %v2002
    %2076 = vmatprep.subr.mxu0 0.0
    %2077 = vmatpush1.msra.mxu0 %v1999
    %2078 = vmatprep.subr.mxu0 0.0
    %2079 = vmatpush1.msra.mxu0 %v1996
    %2080 = vmatprep.subr.mxu0 0.0
    %2081 = vmatpush1.msra.mxu0 %v1993
    %2082 = vmatprep.subr.mxu0 0.0
    %2083 = vmatpush1.msra.mxu0 %v1990
    %2084 = vmatprep.subr.mxu0 0.0
    %2085 = vmatpush1.msra.mxu0 %v1987
    %2086 = vmatprep.subr.mxu0 0.0
    %2087 = vmatpush1.msra.mxu0 %v1984
    %2088 = vmatprep.subr.mxu0 0.0
    %2089 = vmatpush1.msra.mxu0 %v1981
    %2090 = vmatprep.subr.mxu0 0.0
    %2091 = vmatpush1.msra.mxu0 %v1978
    %2092 = vmatprep.subr.mxu0 0.0
    %2093 = vmatpush1.msra.mxu0 %v1975
    %2094 = vmatprep.subr.mxu0 0.0
    %2095 = vmatpush1.msra.mxu0 %v1972
    %2096 = vmatprep.subr.mxu0 0.0
    %2097 = vmatpush1.msra.mxu0 %v1969
    %2098 = vmatprep.subr.mxu0 0.0
    %2099 = vmatpush1.msra.mxu0 %v1966
    %2100 = vmatprep.subr.mxu0 0.0
    %2101 = vmatpush1.msra.mxu0 %v1963
    %2102 = vmatprep.subr.mxu0 0.0
    %2103 = vmatpush1.msra.mxu0 %v1960
    %2104 = vmatprep.subr.mxu0 0.0
    %2105 = vmatpush1.msra.mxu0 %v1957
    %2106 = vmatprep.subr.mxu0 0.0
    %2107 = vmatpush2.msra.mxu0 0.0
    %2108 = vmatprep.subr.mxu0 0.0
    %2109 = vmatpush2.msra.mxu0 0.0
    %2110 = vmatprep.subr.mxu0 0.0
    %2111 = vmatpush2.msra.mxu0 0.0
    %2112 = vmatprep.subr.mxu0 0.0
    %2113 = vmatpush2.msra.mxu0 0.0
    %2114 = vmatprep.subr.mxu0 0.0
    %2115 = vmatpush2.msra.mxu0 0.0
    %2116 = vmatprep.subr.mxu0 0.0
    %2117 = vmatpush2.msra.mxu0 0.0
    %2118 = vmatprep.subr.mxu0 0.0
    %2119 = vmatpush2.msra.mxu0 0.0
    %2120 = vmatprep.subr.mxu0 0.0
    %2121 = vmatpush2.msra.mxu0 0.0
    %2122 = vmatprep.subr.mxu0 0.0
    %2123 = vmatpush2.msra.mxu0 0.0
    %2124 = vmatprep.subr.mxu0 0.0
    %2125 = vmatpush2.msra.mxu0 0.0
    %2126 = vmatprep.subr.mxu0 0.0
    %2127 = vmatpush2.msra.mxu0 0.0
    %2128 = vmatprep.subr.mxu0 0.0
    %2129 = vmatpush2.msra.mxu0 0.0
    %2130 = vmatprep.subr.mxu0 0.0
    %2131 = vmatpush2.msra.mxu0 0.0
    %2132 = vmatprep.subr.mxu0 0.0
    %2133 = vmatpush2.msra.mxu0 0.0
    %2134 = vmatprep.subr.mxu0 0.0
    %2135 = vmatpush2.msra.mxu0 0.0
    %2136 = vmatprep.subr.mxu0 0.0
    %2137 = vmatpush2.msra.mxu0 0.0
    %2138 = vmatprep.mubr.f32.mxu0 0.0
    %2139 = vmatmul.mubr.f32.gmra.mxu0 %v1952
    %v2140 = vpop.f32.mrf.mxu0
    %v2141 = vadd.f32 0.0, %v2140
    %v2142 = vpop.f32.mrf.mxu0
    %2143 = vdwg.mxu0
    %s2144 = smul.u32 7, 3
    %s2145 = smul.addr %s2144, 8
    %s2146 = scalar_lea.vmem [#allocation2], %s2145
    %v2147 = vld [vmem:[%s2146] sm:$0xff]
    %v2148 = vld [vmem:[%s2146 + $0x8] sm:$0xff]
    %v2149 = vld [vmem:[%s2146 + $0x10] sm:$0xff]
    %v2150 = vadd.f32 %v2147, %v2070
    %v2151 = vxor.u32 %v2150, 2147483648
    %v2152 = vmul.f32 %v2151, 1.442695
    %v2153 = vpow.pop %v2152
    %v2154 = vadd.f32 %v2153, 1.0
    %v2155 = vrcp.pop %v2154
    %v2156 = vmul.f32 1.0, %v2155
    %v2157 = vadd.f32 %v2148, %v2072
    %v2158 = vxor.u32 %v2157, 2147483648
    %v2159 = vmul.f32 %v2158, 1.442695
    %v2160 = vpow.pop %v2159
    %v2161 = vadd.f32 %v2160, 1.0
    %v2162 = vrcp.pop %v2161
    %v2163 = vmul.f32 1.0, %v2162
    %v2164 = vadd.f32 %v2141, %v630
    %v2165 = vmul.f32 %v2156, %v2164
    %v2166 = vadd.f32 %v2149, %v2165
    %v2167 = vtanh.pop %v2166
    %v2168 = vsub.f32 1.0, %v2163
    %v2169 = vmul.f32 %v2168, %v2167
    %v2170 = vmul.f32 %v2163, %v1952
    %v2171 = vadd.f32 %v2169, %v2170
    %s2172 = scalar_lea.vmem %s10, 56
    %2173 = vst [vmem:[%s2172] sm:$0xff] %v2171
    %2174 = vst [vmem:[#allocation3] sm:$0xff] %v2171
    %v2175 = vld [vmem:[%s10] sm:$0xff]
    %v2176 = vld [vmem:[%s10 + $0x8] sm:$0xff]
    %v2177 = vld [vmem:[%s10 + $0x10] sm:$0xff]
    %v2178 = vld [vmem:[%s10 + $0x18] sm:$0xff]
    %v2179 = vld [vmem:[%s10 + $0x20] sm:$0xff]
    %v2180 = vld [vmem:[%s10 + $0x28] sm:$0xff]
    %v2181 = vld [vmem:[%s10 + $0x30] sm:$0xff]
    %v2182 = vld [vmem:[%s10 + $0x38] sm:$0xff]
    %v2183 = vld [vmem:[#allocation8] sm:$0xff]
    %v2184 = vld [vmem:[#allocation8 + $0x8] sm:$0xff]
    %v2185 = vld [vmem:[#allocation8 + $0x10] sm:$0xff]
    %v2186 = vld [vmem:[#allocation8 + $0x18] sm:$0xff]
    %v2187 = vld [vmem:[#allocation8 + $0x20] sm:$0xff]
    %v2188 = vld [vmem:[#allocation8 + $0x28] sm:$0xff]
    %v2189 = vld [vmem:[#allocation8 + $0x30] sm:$0xff]
    %v2190 = vld [vmem:[#allocation8 + $0x38] sm:$0xff]
    %v2191 = vld [vmem:[#allocation8 + $0x40] sm:$0xff]
    %v2192 = vld [vmem:[#allocation8 + $0x48] sm:$0xff]
    %v2193 = vld [vmem:[#allocation8 + $0x50] sm:$0xff]
    %v2194 = vld [vmem:[#allocation8 + $0x58] sm:$0xff]
    %v2195 = vld [vmem:[#allocation8 + $0x60] sm:$0xff]
    %v2196 = vld [vmem:[#allocation8 + $0x68] sm:$0xff]
    %v2197 = vld [vmem:[#allocation8 + $0x70] sm:$0xff]
    %v2198 = vld [vmem:[#allocation8 + $0x78] sm:$0xff]
    %v2199 = vld [vmem:[#allocation8 + $0x80] sm:$0xff]
    %v2200 = vld [vmem:[#allocation8 + $0x88] sm:$0xff]
    %v2201 = vld [vmem:[#allocation8 + $0x90] sm:$0xff]
    %v2202 = vld [vmem:[#allocation8 + $0x98] sm:$0xff]
    %v2203 = vld [vmem:[#allocation8 + $0xa0] sm:$0xff]
    %v2204 = vld [vmem:[#allocation8 + $0xa8] sm:$0xff]
    %v2205 = vld [vmem:[#allocation8 + $0xb0] sm:$0xff]
    %v2206 = vld [vmem:[#allocation8 + $0xb8] sm:$0xff]
    %v2207 = vld [vmem:[#allocation8 + $0xc0] sm:$0xff]
    %v2208 = vld [vmem:[#allocation8 + $0xc8] sm:$0xff]
    %v2209 = vld [vmem:[#allocation8 + $0xd0] sm:$0xff]
    %v2210 = vld [vmem:[#allocation8 + $0xd8] sm:$0xff]
    %v2211 = vld [vmem:[#allocation8 + $0xe0] sm:$0xff]
    %v2212 = vld [vmem:[#allocation8 + $0xe8] sm:$0xff]
    %v2213 = vld [vmem:[#allocation8 + $0xf0] sm:$0xff]
    %v2214 = vld [vmem:[#allocation8 + $0xf8] sm:$0xff]
    %v2215 = vld [vmem:[#allocation8 + $0x100] sm:$0xff]
    %v2216 = vld [vmem:[#allocation8 + $0x108] sm:$0xff]
    %v2217 = vld [vmem:[#allocation8 + $0x110] sm:$0xff]
    %v2218 = vld [vmem:[#allocation8 + $0x118] sm:$0xff]
    %v2219 = vld [vmem:[#allocation8 + $0x120] sm:$0xff]
    %v2220 = vld [vmem:[#allocation8 + $0x128] sm:$0xff]
    %v2221 = vld [vmem:[#allocation8 + $0x130] sm:$0xff]
    %v2222 = vld [vmem:[#allocation8 + $0x138] sm:$0xff]
    %v2223 = vld [vmem:[#allocation8 + $0x140] sm:$0xff]
    %v2224 = vld [vmem:[#allocation8 + $0x148] sm:$0xff]
    %v2225 = vld [vmem:[#allocation8 + $0x150] sm:$0xff]
    %v2226 = vld [vmem:[#allocation8 + $0x158] sm:$0xff]
    %v2227 = vld [vmem:[#allocation8 + $0x160] sm:$0xff]
    %v2228 = vld [vmem:[#allocation8 + $0x168] sm:$0xff]
    %v2229 = vld [vmem:[#allocation8 + $0x170] sm:$0xff]
    %v2230 = vld [vmem:[#allocation8 + $0x178] sm:$0xff]
    %v2231 = vld [vmem:[%s7] sm:$0x7]
    %v2233 = vlaneseq
    %v2234 = vshrl.u32 %v2233, 7
    %v2235 = vsub.s32 0, %v2234
    %v2236 = vrot.slane %v2231, %v2235
    %v2237 = vlaneseq
    %v2238 = vshrl.u32 %v2237, 7
    %v2239 = vsub.s32 1, %v2238
    %v2240 = vrot.slane %v2231, %v2239
    %v2241 = vlaneseq
    %v2242 = vshrl.u32 %v2241, 7
    %v2243 = vsub.s32 2, %v2242
    %v2244 = vrot.slane %v2231, %v2243
    %2248 = vmatprep.subr.mxu0 %v2229
    %2249 = vmatpush1.msra.mxu0 %v2228
    %2250 = vmatprep.subr.mxu0 %v2226
    %2251 = vmatpush1.msra.mxu0 %v2225
    %2252 = vmatprep.subr.mxu0 %v2223
    %2253 = vmatpush1.msra.mxu0 %v2222
    %2254 = vmatprep.subr.mxu0 %v2220
    %2255 = vmatpush1.msra.mxu0 %v2219
    %2256 = vmatprep.subr.mxu0 %v2217
    %2257 = vmatpush1.msra.mxu0 %v2216
    %2258 = vmatprep.subr.mxu0 %v2214
    %2259 = vmatpush1.msra.mxu0 %v2213
    %2260 = vmatprep.subr.mxu0 %v2211
    %2261 = vmatpush1.msra.mxu0 %v2210
    %2262 = vmatprep.subr.mxu0 %v2208
    %2263 = vmatpush1.msra.mxu0 %v2207
    %2264 = vmatprep.subr.mxu0 %v2205
    %2265 = vmatpush1.msra.mxu0 %v2204
    %2266 = vmatprep.subr.mxu0 %v2202
    %2267 = vmatpush1.msra.mxu0 %v2201
    %2268 = vmatprep.subr.mxu0 %v2199
    %2269 = vmatpush1.msra.mxu0 %v2198
    %2270 = vmatprep.subr.mxu0 %v2196
    %2271 = vmatpush1.msra.mxu0 %v2195
    %2272 = vmatprep.subr.mxu0 %v2193
    %2273 = vmatpush1.msra.mxu0 %v2192
    %2274 = vmatprep.subr.mxu0 %v2190
    %2275 = vmatpush1.msra.mxu0 %v2189
    %2276 = vmatprep.subr.mxu0 %v2187
    %2277 = vmatpush1.msra.mxu0 %v2186
    %2278 = vmatprep.subr.mxu0 %v2184
    %2279 = vmatpush1.msra.mxu0 %v2183
    %2280 = vmatprep.subr.mxu0 0.0
    %2281 = vmatpush2.msra.mxu0 0.0
    %2282 = vmatprep.subr.mxu0 0.0
    %2283 = vmatpush2.msra.mxu0 0.0
    %2284 = vmatprep.subr.mxu0 0.0
    %2285 = vmatpush2.msra.mxu0 0.0
    %2286 = vmatprep.subr.mxu0 0.0
    %2287 = vmatpush2.msra.mxu0 0.0
    %2288 = vmatprep.subr.mxu0 0.0
    %2289 = vmatpush2.msra.mxu0 0.0
    %2290 = vmatprep.subr.mxu0 0.0
    %2291 = vmatpush2.msra.mxu0 0.0
    %2292 = vmatprep.subr.mxu0 0.0
    %2293 = vmatpush2.msra.mxu0 0.0
    %2294 = vmatprep.subr.mxu0 0.0
    %2295 = vmatpush2.msra.mxu0 0.0
    %2296 = vmatprep.subr.mxu0 0.0
    %2297 = vmatpush2.msra.mxu0 0.0
    %2298 = vmatprep.subr.mxu0 0.0
    %2299 = vmatpush2.msra.mxu0 0.0
    %2300 = vmatprep.subr.mxu0 0.0
    %2301 = vmatpush2.msra.mxu0 0.0
    %2302 = vmatprep.subr.mxu0 0.0
    %2303 = vmatpush2.msra.mxu0 0.0
    %2304 = vmatprep.subr.mxu0 0.0
    %2305 = vmatpush2.msra.mxu0 0.0
    %2306 = vmatprep.subr.mxu0 0.0
    %2307 = vmatpush2.msra.mxu0 0.0
    %2308 = vmatprep.subr.mxu0 0.0
    %2309 = vmatpush2.msra.mxu0 0.0
    %2310 = vmatprep.subr.mxu0 0.0
    %2311 = vmatpush2.msra.mxu0 0.0
    %2312 = vmatprep.mubr.f32.mxu0 0.0
    %2313 = vmatmul.mubr.f32.gmra.mxu0 %v2175
    %v2314 = vpop.f32.mrf.mxu0
    %v2315 = vadd.f32 %v2236, %v2314
    %v2316 = vpop.f32.mrf.mxu0
    %v2317 = vadd.f32 %v2240, %v2316
    %2318 = vmatprep.mubr.f32.mxu0 0.0
    %2319 = vmatmul.mubr.f32.gmra.mxu0 %v2176
    %v2320 = vpop.f32.mrf.mxu0
    %v2321 = vadd.f32 %v2236, %v2320
    %v2322 = vpop.f32.mrf.mxu0
    %v2323 = vadd.f32 %v2240, %v2322
    %2324 = vmatprep.mubr.f32.mxu0 0.0
    %2325 = vmatmul.mubr.f32.gmra.mxu0 %v2177
    %v2326 = vpop.f32.mrf.mxu0
    %v2327 = vadd.f32 %v2236, %v2326
    %v2328 = vpop.f32.mrf.mxu0
    %v2329 = vadd.f32 %v2240, %v2328
    %2330 = vmatprep.mubr.f32.mxu0 0.0
    %2331 = vmatmul.mubr.f32.gmra.mxu0 %v2178
    %v2332 = vpop.f32.mrf.mxu0
    %v2333 = vadd.f32 %v2236, %v2332
    %v2334 = vpop.f32.mrf.mxu0
    %v2335 = vadd.f32 %v2240, %v2334
    %2336 = vmatprep.mubr.f32.mxu0 0.0
    %2337 = vmatmul.mubr.f32.gmra.mxu0 %v2179
    %v2338 = vpop.f32.mrf.mxu0
    %v2339 = vadd.f32 %v2236, %v2338
    %v2340 = vpop.f32.mrf.mxu0
    %v2341 = vadd.f32 %v2240, %v2340
    %2342 = vmatprep.mubr.f32.mxu0 0.0
    %2343 = vmatmul.mubr.f32.gmra.mxu0 %v2180
    %v2344 = vpop.f32.mrf.mxu0
    %v2345 = vadd.f32 %v2236, %v2344
    %v2346 = vpop.f32.mrf.mxu0
    %v2347 = vadd.f32 %v2240, %v2346
    %2348 = vmatprep.mubr.f32.mxu0 0.0
    %2349 = vmatmul.mubr.f32.gmra.mxu0 %v2181
    %v2350 = vpop.f32.mrf.mxu0
    %v2351 = vadd.f32 %v2236, %v2350
    %v2352 = vpop.f32.mrf.mxu0
    %v2353 = vadd.f32 %v2240, %v2352
    %2354 = vmatprep.mubr.f32.mxu0 0.0
    %2355 = vmatmul.mubr.f32.gmra.mxu0 %v2182
    %v2356 = vpop.f32.mrf.mxu0
    %v2357 = vadd.f32 %v2236, %v2356
    %v2358 = vpop.f32.mrf.mxu0
    %v2359 = vadd.f32 %v2240, %v2358
    %2360 = vdwg.mxu0
    %2361 = vmatprep.subr.mxu0 0.0
    %2362 = vmatpush1.msra.mxu0 %v2230
    %2363 = vmatprep.subr.mxu0 0.0
    %2364 = vmatpush1.msra.mxu0 %v2227
    %2365 = vmatprep.subr.mxu0 0.0
    %2366 = vmatpush1.msra.mxu0 %v2224
    %2367 = vmatprep.subr.mxu0 0.0
    %2368 = vmatpush1.msra.mxu0 %v2221
    %2369 = vmatprep.subr.mxu0 0.0
    %2370 = vmatpush1.msra.mxu0 %v2218
    %2371 = vmatprep.subr.mxu0 0.0
    %2372 = vmatpush1.msra.mxu0 %v2215
    %2373 = vmatprep.subr.mxu0 0.0
    %2374 = vmatpush1.msra.mxu0 %v2212
    %2375 = vmatprep.subr.mxu0 0.0
    %2376 = vmatpush1.msra.mxu0 %v2209
    %2377 = vmatprep.subr.mxu0 0.0
    %2378 = vmatpush1.msra.mxu0 %v2206
    %2379 = vmatprep.subr.mxu0 0.0
    %2380 = vmatpush1.msra.mxu0 %v2203
    %2381 = vmatprep.subr.mxu0 0.0
    %2382 = vmatpush1.msra.mxu0 %v2200
    %2383 = vmatprep.subr.mxu0 0.0
    %2384 = vmatpush1.msra.mxu0 %v2197
    %2385 = vmatprep.subr.mxu0 0.0
    %2386 = vmatpush1.msra.mxu0 %v2194
    %2387 = vmatprep.subr.mxu0 0.0
    %2388 = vmatpush1.msra.mxu0 %v2191
    %2389 = vmatprep.subr.mxu0 0.0
    %2390 = vmatpush1.msra.mxu0 %v2188
    %2391 = vmatprep.subr.mxu0 0.0
    %2392 = vmatpush1.msra.mxu0 %v2185
    %2393 = vmatprep.subr.mxu0 0.0
    %2394 = vmatpush2.msra.mxu0 0.0
    %2395 = vmatprep.subr.mxu0 0.0
    %2396 = vmatpush2.msra.mxu0 0.0
    %2397 = vmatprep.subr.mxu0 0.0
    %2398 = vmatpush2.msra.mxu0 0.0
    %2399 = vmatprep.subr.mxu0 0.0
    %2400 = vmatpush2.msra.mxu0 0.0
    %2401 = vmatprep.subr.mxu0 0.0
    %2402 = vmatpush2.msra.mxu0 0.0
    %2403 = vmatprep.subr.mxu0 0.0
    %2404 = vmatpush2.msra.mxu0 0.0
    %2405 = vmatprep.subr.mxu0 0.0
    %2406 = vmatpush2.msra.mxu0 0.0
    %2407 = vmatprep.subr.mxu0 0.0
    %2408 = vmatpush2.msra.mxu0 0.0
    %2409 = vmatprep.subr.mxu0 0.0
    %2410 = vmatpush2.msra.mxu0 0.0
    %2411 = vmatprep.subr.mxu0 0.0
    %2412 = vmatpush2.msra.mxu0 0.0
    %2413 = vmatprep.subr.mxu0 0.0
    %2414 = vmatpush2.msra.mxu0 0.0
    %2415 = vmatprep.subr.mxu0 0.0
    %2416 = vmatpush2.msra.mxu0 0.0
    %2417 = vmatprep.subr.mxu0 0.0
    %2418 = vmatpush2.msra.mxu0 0.0
    %2419 = vmatprep.subr.mxu0 0.0
    %2420 = vmatpush2.msra.mxu0 0.0
    %2421 = vmatprep.subr.mxu0 0.0
    %2422 = vmatpush2.msra.mxu0 0.0
    %2423 = vmatprep.subr.mxu0 0.0
    %2424 = vmatpush2.msra.mxu0 0.0
    %2425 = vmatprep.mubr.f32.mxu0 0.0
    %2426 = vmatmul.mubr.f32.gmra.mxu0 %v2175
    %v2427 = vpop.f32.mrf.mxu0
    %v2428 = vadd.f32 %v2244, %v2427
    %v2429 = vpop.f32.mrf.mxu0
    %2430 = vmatprep.mubr.f32.mxu0 0.0
    %2431 = vmatmul.mubr.f32.gmra.mxu0 %v2176
    %v2432 = vpop.f32.mrf.mxu0
    %v2433 = vadd.f32 %v2244, %v2432
    %v2434 = vpop.f32.mrf.mxu0
    %2435 = vmatprep.mubr.f32.mxu0 0.0
    %2436 = vmatmul.mubr.f32.gmra.mxu0 %v2177
    %v2437 = vpop.f32.mrf.mxu0
    %v2438 = vadd.f32 %v2244, %v2437
    %v2439 = vpop.f32.mrf.mxu0
    %2440 = vmatprep.mubr.f32.mxu0 0.0
    %2441 = vmatmul.mubr.f32.gmra.mxu0 %v2178
    %v2442 = vpop.f32.mrf.mxu0
    %v2443 = vadd.f32 %v2244, %v2442
    %v2444 = vpop.f32.mrf.mxu0
    %2445 = vmatprep.mubr.f32.mxu0 0.0
    %2446 = vmatmul.mubr.f32.gmra.mxu0 %v2179
    %v2447 = vpop.f32.mrf.mxu0
    %v2448 = vadd.f32 %v2244, %v2447
    %v2449 = vpop.f32.mrf.mxu0
    %2450 = vmatprep.mubr.f32.mxu0 0.0
    %2451 = vmatmul.mubr.f32.gmra.mxu0 %v2180
    %v2452 = vpop.f32.mrf.mxu0
    %v2453 = vadd.f32 %v2244, %v2452
    %v2454 = vpop.f32.mrf.mxu0
    %2455 = vmatprep.mubr.f32.mxu0 0.0
    %2456 = vmatmul.mubr.f32.gmra.mxu0 %v2181
    %v2457 = vpop.f32.mrf.mxu0
    %v2458 = vadd.f32 %v2244, %v2457
    %v2459 = vpop.f32.mrf.mxu0
    %2460 = vmatprep.mubr.f32.mxu0 0.0
    %2461 = vmatmul.mubr.f32.gmra.mxu0 %v2182
    %v2462 = vpop.f32.mrf.mxu0
    %v2463 = vadd.f32 %v2244, %v2462
    %v2464 = vpop.f32.mrf.mxu0
    %2465 = vdwg.mxu0
    %2466 = vst [vmem:[#allocation2] sm:$0xff] %v2315
    %2467 = vst [vmem:[#allocation2 + $0x8] sm:$0xff] %v2317
    %2468 = vst [vmem:[#allocation2 + $0x10] sm:$0xff] %v2428
    %2469 = vst [vmem:[#allocation2 + $0x18] sm:$0xff] %v2321
    %2470 = vst [vmem:[#allocation2 + $0x20] sm:$0xff] %v2323
    %2471 = vst [vmem:[#allocation2 + $0x28] sm:$0xff] %v2433
    %2472 = vst [vmem:[#allocation2 + $0x30] sm:$0xff] %v2327
    %2473 = vst [vmem:[#allocation2 + $0x38] sm:$0xff] %v2329
    %2474 = vst [vmem:[#allocation2 + $0x40] sm:$0xff] %v2438
    %2475 = vst [vmem:[#allocation2 + $0x48] sm:$0xff] %v2333
    %2476 = vst [vmem:[#allocation2 + $0x50] sm:$0xff] %v2335
    %2477 = vst [vmem:[#allocation2 + $0x58] sm:$0xff] %v2443
    %2478 = vst [vmem:[#allocation2 + $0x60] sm:$0xff] %v2339
    %2479 = vst [vmem:[#allocation2 + $0x68] sm:$0xff] %v2341
    %2480 = vst [vmem:[#allocation2 + $0x70] sm:$0xff] %v2448
    %2481 = vst [vmem:[#allocation2 + $0x78] sm:$0xff] %v2345
    %2482 = vst [vmem:[#allocation2 + $0x80] sm:$0xff] %v2347
    %2483 = vst [vmem:[#allocation2 + $0x88] sm:$0xff] %v2453
    %2484 = vst [vmem:[#allocation2 + $0x90] sm:$0xff] %v2351
    %2485 = vst [vmem:[#allocation2 + $0x98] sm:$0xff] %v2353
    %2486 = vst [vmem:[#allocation2 + $0xa0] sm:$0xff] %v2458
    %2487 = vst [vmem:[#allocation2 + $0xa8] sm:$0xff] %v2357
    %2488 = vst [vmem:[#allocation2 + $0xb0] sm:$0xff] %v2359
    %2489 = vst [vmem:[#allocation2 + $0xb8] sm:$0xff] %v2463
    %v2490 = vld [vmem:[%s8] sm:$0x1]
    %s2491 = scalar_lea.vmem [#allocation3], 8
    %v2492 = vld [vmem:[%s2491] sm:$0xff]
    %v2493 = vld [vmem:[#allocation9] sm:$0xff]
    %v2494 = vld [vmem:[#allocation9 + $0x8] sm:$0xff]
    %v2495 = vld [vmem:[#allocation9 + $0x10] sm:$0xff]
    %v2496 = vld [vmem:[#allocation9 + $0x18] sm:$0xff]
    %v2497 = vld [vmem:[#allocation9 + $0x20] sm:$0xff]
    %v2498 = vld [vmem:[#allocation9 + $0x28] sm:$0xff]
    %v2499 = vld [vmem:[#allocation9 + $0x30] sm:$0xff]
    %v2500 = vld [vmem:[#allocation9 + $0x38] sm:$0xff]
    %v2501 = vld [vmem:[#allocation9 + $0x40] sm:$0xff]
    %v2502 = vld [vmem:[#allocation9 + $0x48] sm:$0xff]
    %v2503 = vld [vmem:[#allocation9 + $0x50] sm:$0xff]
    %v2504 = vld [vmem:[#allocation9 + $0x58] sm:$0xff]
    %v2505 = vld [vmem:[#allocation9 + $0x60] sm:$0xff]
    %v2506 = vld [vmem:[#allocation9 + $0x68] sm:$0xff]
    %v2507 = vld [vmem:[#allocation9 + $0x70] sm:$0xff]
    %v2508 = vld [vmem:[#allocation9 + $0x78] sm:$0xff]
    %v2509 = vld [vmem:[#allocation9 + $0x80] sm:$0xff]
    %v2510 = vld [vmem:[#allocation9 + $0x88] sm:$0xff]
    %v2511 = vld [vmem:[#allocation9 + $0x90] sm:$0xff]
    %v2512 = vld [vmem:[#allocation9 + $0x98] sm:$0xff]
    %v2513 = vld [vmem:[#allocation9 + $0xa0] sm:$0xff]
    %v2514 = vld [vmem:[#allocation9 + $0xa8] sm:$0xff]
    %v2515 = vld [vmem:[#allocation9 + $0xb0] sm:$0xff]
    %v2516 = vld [vmem:[#allocation9 + $0xb8] sm:$0xff]
    %v2517 = vld [vmem:[#allocation9 + $0xc0] sm:$0xff]
    %v2518 = vld [vmem:[#allocation9 + $0xc8] sm:$0xff]
    %v2519 = vld [vmem:[#allocation9 + $0xd0] sm:$0xff]
    %v2520 = vld [vmem:[#allocation9 + $0xd8] sm:$0xff]
    %v2521 = vld [vmem:[#allocation9 + $0xe0] sm:$0xff]
    %v2522 = vld [vmem:[#allocation9 + $0xe8] sm:$0xff]
    %v2523 = vld [vmem:[#allocation9 + $0xf0] sm:$0xff]
    %v2524 = vld [vmem:[#allocation9 + $0xf8] sm:$0xff]
    %v2525 = vld [vmem:[#allocation9 + $0x100] sm:$0xff]
    %v2526 = vld [vmem:[#allocation9 + $0x108] sm:$0xff]
    %v2527 = vld [vmem:[#allocation9 + $0x110] sm:$0xff]
    %v2528 = vld [vmem:[#allocation9 + $0x118] sm:$0xff]
    %v2529 = vld [vmem:[#allocation9 + $0x120] sm:$0xff]
    %v2530 = vld [vmem:[#allocation9 + $0x128] sm:$0xff]
    %v2531 = vld [vmem:[#allocation9 + $0x130] sm:$0xff]
    %v2532 = vld [vmem:[#allocation9 + $0x138] sm:$0xff]
    %v2533 = vld [vmem:[#allocation9 + $0x140] sm:$0xff]
    %v2534 = vld [vmem:[#allocation9 + $0x148] sm:$0xff]
    %v2535 = vld [vmem:[#allocation9 + $0x150] sm:$0xff]
    %v2536 = vld [vmem:[#allocation9 + $0x158] sm:$0xff]
    %v2537 = vld [vmem:[#allocation9 + $0x160] sm:$0xff]
    %v2538 = vld [vmem:[#allocation9 + $0x168] sm:$0xff]
    %v2539 = vld [vmem:[#allocation9 + $0x170] sm:$0xff]
    %v2540 = vld [vmem:[#allocation9 + $0x178] sm:$0xff]
    %2541 = vmatprep.subr.mxu0 %v2539
    %2542 = vmatpush1.msra.mxu0 %v2538
    %2543 = vmatprep.subr.mxu0 %v2536
    %2544 = vmatpush1.msra.mxu0 %v2535
    %2545 = vmatprep.subr.mxu0 %v2533
    %2546 = vmatpush1.msra.mxu0 %v2532
    %2547 = vmatprep.subr.mxu0 %v2530
    %2548 = vmatpush1.msra.mxu0 %v2529
    %2549 = vmatprep.subr.mxu0 %v2527
    %2550 = vmatpush1.msra.mxu0 %v2526
    %2551 = vmatprep.subr.mxu0 %v2524
    %2552 = vmatpush1.msra.mxu0 %v2523
    %2553 = vmatprep.subr.mxu0 %v2521
    %2554 = vmatpush1.msra.mxu0 %v2520
    %2555 = vmatprep.subr.mxu0 %v2518
    %2556 = vmatpush1.msra.mxu0 %v2517
    %2557 = vmatprep.subr.mxu0 %v2515
    %2558 = vmatpush1.msra.mxu0 %v2514
    %2559 = vmatprep.subr.mxu0 %v2512
    %2560 = vmatpush1.msra.mxu0 %v2511
    %2561 = vmatprep.subr.mxu0 %v2509
    %2562 = vmatpush1.msra.mxu0 %v2508
    %2563 = vmatprep.subr.mxu0 %v2506
    %2564 = vmatpush1.msra.mxu0 %v2505
    %2565 = vmatprep.subr.mxu0 %v2503
    %2566 = vmatpush1.msra.mxu0 %v2502
    %2567 = vmatprep.subr.mxu0 %v2500
    %2568 = vmatpush1.msra.mxu0 %v2499
    %2569 = vmatprep.subr.mxu0 %v2497
    %2570 = vmatpush1.msra.mxu0 %v2496
    %2571 = vmatprep.subr.mxu0 %v2494
    %2572 = vmatpush1.msra.mxu0 %v2493
    %2573 = vmatprep.subr.mxu0 0.0
    %2574 = vmatpush2.msra.mxu0 0.0
    %2575 = vmatprep.subr.mxu0 0.0
    %2576 = vmatpush2.msra.mxu0 0.0
    %2577 = vmatprep.subr.mxu0 0.0
    %2578 = vmatpush2.msra.mxu0 0.0
    %2579 = vmatprep.subr.mxu0 0.0
    %2580 = vmatpush2.msra.mxu0 0.0
    %2581 = vmatprep.subr.mxu0 0.0
    %2582 = vmatpush2.msra.mxu0 0.0
    %2583 = vmatprep.subr.mxu0 0.0
    %2584 = vmatpush2.msra.mxu0 0.0
    %2585 = vmatprep.subr.mxu0 0.0
    %2586 = vmatpush2.msra.mxu0 0.0
    %2587 = vmatprep.subr.mxu0 0.0
    %2588 = vmatpush2.msra.mxu0 0.0
    %2589 = vmatprep.subr.mxu0 0.0
    %2590 = vmatpush2.msra.mxu0 0.0
    %2591 = vmatprep.subr.mxu0 0.0
    %2592 = vmatpush2.msra.mxu0 0.0
    %2593 = vmatprep.subr.mxu0 0.0
    %2594 = vmatpush2.msra.mxu0 0.0
    %2595 = vmatprep.subr.mxu0 0.0
    %2596 = vmatpush2.msra.mxu0 0.0
    %2597 = vmatprep.subr.mxu0 0.0
    %2598 = vmatpush2.msra.mxu0 0.0
    %2599 = vmatprep.subr.mxu0 0.0
    %2600 = vmatpush2.msra.mxu0 0.0
    %2601 = vmatprep.subr.mxu0 0.0
    %2602 = vmatpush2.msra.mxu0 0.0
    %2603 = vmatprep.subr.mxu0 0.0
    %2604 = vmatpush2.msra.mxu0 0.0
    %2605 = vmatprep.mubr.f32.mxu0 0.0
    %2606 = vmatmul.mubr.f32.gmra.mxu0 %v2492
    %v2607 = vpop.f32.mrf.mxu0
    %v2608 = vadd.f32 0.0, %v2607
    %v2609 = vpop.f32.mrf.mxu0
    %v2610 = vadd.f32 0.0, %v2609
    %2611 = vdwg.mxu0
    %2612 = vmatprep.subr.mxu0 0.0
    %2613 = vmatpush1.msra.mxu0 %v2540
    %2614 = vmatprep.subr.mxu0 0.0
    %2615 = vmatpush1.msra.mxu0 %v2537
    %2616 = vmatprep.subr.mxu0 0.0
    %2617 = vmatpush1.msra.mxu0 %v2534
    %2618 = vmatprep.subr.mxu0 0.0
    %2619 = vmatpush1.msra.mxu0 %v2531
    %2620 = vmatprep.subr.mxu0 0.0
    %2621 = vmatpush1.msra.mxu0 %v2528
    %2622 = vmatprep.subr.mxu0 0.0
    %2623 = vmatpush1.msra.mxu0 %v2525
    %2624 = vmatprep.subr.mxu0 0.0
    %2625 = vmatpush1.msra.mxu0 %v2522
    %2626 = vmatprep.subr.mxu0 0.0
    %2627 = vmatpush1.msra.mxu0 %v2519
    %2628 = vmatprep.subr.mxu0 0.0
    %2629 = vmatpush1.msra.mxu0 %v2516
    %2630 = vmatprep.subr.mxu0 0.0
    %2631 = vmatpush1.msra.mxu0 %v2513
    %2632 = vmatprep.subr.mxu0 0.0
    %2633 = vmatpush1.msra.mxu0 %v2510
    %2634 = vmatprep.subr.mxu0 0.0
    %2635 = vmatpush1.msra.mxu0 %v2507
    %2636 = vmatprep.subr.mxu0 0.0
    %2637 = vmatpush1.msra.mxu0 %v2504
    %2638 = vmatprep.subr.mxu0 0.0
    %2639 = vmatpush1.msra.mxu0 %v2501
    %2640 = vmatprep.subr.mxu0 0.0
    %2641 = vmatpush1.msra.mxu0 %v2498
    %2642 = vmatprep.subr.mxu0 0.0
    %2643 = vmatpush1.msra.mxu0 %v2495
    %2644 = vmatprep.subr.mxu0 0.0
    %2645 = vmatpush2.msra.mxu0 0.0
    %2646 = vmatprep.subr.mxu0 0.0
    %2647 = vmatpush2.msra.mxu0 0.0
    %2648 = vmatprep.subr.mxu0 0.0
    %2649 = vmatpush2.msra.mxu0 0.0
    %2650 = vmatprep.subr.mxu0 0.0
    %2651 = vmatpush2.msra.mxu0 0.0
    %2652 = vmatprep.subr.mxu0 0.0
    %2653 = vmatpush2.msra.mxu0 0.0
    %2654 = vmatprep.subr.mxu0 0.0
    %2655 = vmatpush2.msra.mxu0 0.0
    %2656 = vmatprep.subr.mxu0 0.0
    %2657 = vmatpush2.msra.mxu0 0.0
    %2658 = vmatprep.subr.mxu0 0.0
    %2659 = vmatpush2.msra.mxu0 0.0
    %2660 = vmatprep.subr.mxu0 0.0
    %2661 = vmatpush2.msra.mxu0 0.0
    %2662 = vmatprep.subr.mxu0 0.0
    %2663 = vmatpush2.msra.mxu0 0.0
    %2664 = vmatprep.subr.mxu0 0.0
    %2665 = vmatpush2.msra.mxu0 0.0
    %2666 = vmatprep.subr.mxu0 0.0
    %2667 = vmatpush2.msra.mxu0 0.0
    %2668 = vmatprep.subr.mxu0 0.0
    %2669 = vmatpush2.msra.mxu0 0.0
    %2670 = vmatprep.subr.mxu0 0.0
    %2671 = vmatpush2.msra.mxu0 0.0
    %2672 = vmatprep.subr.mxu0 0.0
    %2673 = vmatpush2.msra.mxu0 0.0
    %2674 = vmatprep.subr.mxu0 0.0
    %2675 = vmatpush2.msra.mxu0 0.0
    %2676 = vmatprep.mubr.f32.mxu0 0.0
    %2677 = vmatmul.mubr.f32.gmra.mxu0 %v2492
    %v2678 = vpop.f32.mrf.mxu0
    %v2679 = vadd.f32 0.0, %v2678
    %v2680 = vpop.f32.mrf.mxu0
    %2681 = vdwg.mxu0
    %v2682 = vld [vmem:[%s608] sm:$0xff]
    %v2683 = vld [vmem:[%s608 + $0x8] sm:$0xff]
    %v2684 = vld [vmem:[%s608 + $0x10] sm:$0xff]
    %v2685 = vadd.f32 %v2682, %v2608
    %v2686 = vxor.u32 %v2685, 2147483648
    %v2687 = vmul.f32 %v2686, 1.442695
    %v2688 = vpow.pop %v2687
    %v2689 = vadd.f32 %v2688, 1.0
    %v2690 = vrcp.pop %v2689
    %v2691 = vmul.f32 1.0, %v2690
    %v2692 = vadd.f32 %v2683, %v2610
    %v2693 = vxor.u32 %v2692, 2147483648
    %v2694 = vmul.f32 %v2693, 1.442695
    %v2695 = vpow.pop %v2694
    %v2696 = vadd.f32 %v2695, 1.0
    %v2697 = vrcp.pop %v2696
    %v2698 = vmul.f32 1.0, %v2697
    %v2700 = vlaneseq
    %v2701 = vshrl.u32 %v2700, 7
    %v2702 = vsub.s32 0, %v2701
    %v2703 = vrot.slane %v2490, %v2702
    %v2705 = vadd.f32 %v2679, %v2703
    %v2706 = vmul.f32 %v2691, %v2705
    %v2707 = vadd.f32 %v2684, %v2706
    %v2708 = vtanh.pop %v2707
    %v2709 = vsub.f32 1.0, %v2698
    %v2710 = vmul.f32 %v2709, %v2708
    %v2711 = vmul.f32 %v2698, %v2492
    %v2712 = vadd.f32 %v2710, %v2711
    %2713 = vst [vmem:[%s10] sm:$0xff] %v2712
    %v2714 = vld [vmem:[#allocation9] sm:$0xff]
    %v2715 = vld [vmem:[#allocation9 + $0x8] sm:$0xff]
    %v2716 = vld [vmem:[#allocation9 + $0x10] sm:$0xff]
    %v2717 = vld [vmem:[#allocation9 + $0x18] sm:$0xff]
    %v2718 = vld [vmem:[#allocation9 + $0x20] sm:$0xff]
    %v2719 = vld [vmem:[#allocation9 + $0x28] sm:$0xff]
    %v2720 = vld [vmem:[#allocation9 + $0x30] sm:$0xff]
    %v2721 = vld [vmem:[#allocation9 + $0x38] sm:$0xff]
    %v2722 = vld [vmem:[#allocation9 + $0x40] sm:$0xff]
    %v2723 = vld [vmem:[#allocation9 + $0x48] sm:$0xff]
    %v2724 = vld [vmem:[#allocation9 + $0x50] sm:$0xff]
    %v2725 = vld [vmem:[#allocation9 + $0x58] sm:$0xff]
    %v2726 = vld [vmem:[#allocation9 + $0x60] sm:$0xff]
    %v2727 = vld [vmem:[#allocation9 + $0x68] sm:$0xff]
    %v2728 = vld [vmem:[#allocation9 + $0x70] sm:$0xff]
    %v2729 = vld [vmem:[#allocation9 + $0x78] sm:$0xff]
    %v2730 = vld [vmem:[#allocation9 + $0x80] sm:$0xff]
    %v2731 = vld [vmem:[#allocation9 + $0x88] sm:$0xff]
    %v2732 = vld [vmem:[#allocation9 + $0x90] sm:$0xff]
    %v2733 = vld [vmem:[#allocation9 + $0x98] sm:$0xff]
    %v2734 = vld [vmem:[#allocation9 + $0xa0] sm:$0xff]
    %v2735 = vld [vmem:[#allocation9 + $0xa8] sm:$0xff]
    %v2736 = vld [vmem:[#allocation9 + $0xb0] sm:$0xff]
    %v2737 = vld [vmem:[#allocation9 + $0xb8] sm:$0xff]
    %v2738 = vld [vmem:[#allocation9 + $0xc0] sm:$0xff]
    %v2739 = vld [vmem:[#allocation9 + $0xc8] sm:$0xff]
    %v2740 = vld [vmem:[#allocation9 + $0xd0] sm:$0xff]
    %v2741 = vld [vmem:[#allocation9 + $0xd8] sm:$0xff]
    %v2742 = vld [vmem:[#allocation9 + $0xe0] sm:$0xff]
    %v2743 = vld [vmem:[#allocation9 + $0xe8] sm:$0xff]
    %v2744 = vld [vmem:[#allocation9 + $0xf0] sm:$0xff]
    %v2745 = vld [vmem:[#allocation9 + $0xf8] sm:$0xff]
    %v2746 = vld [vmem:[#allocation9 + $0x100] sm:$0xff]
    %v2747 = vld [vmem:[#allocation9 + $0x108] sm:$0xff]
    %v2748 = vld [vmem:[#allocation9 + $0x110] sm:$0xff]
    %v2749 = vld [vmem:[#allocation9 + $0x118] sm:$0xff]
    %v2750 = vld [vmem:[#allocation9 + $0x120] sm:$0xff]
    %v2751 = vld [vmem:[#allocation9 + $0x128] sm:$0xff]
    %v2752 = vld [vmem:[#allocation9 + $0x130] sm:$0xff]
    %v2753 = vld [vmem:[#allocation9 + $0x138] sm:$0xff]
    %v2754 = vld [vmem:[#allocation9 + $0x140] sm:$0xff]
    %v2755 = vld [vmem:[#allocation9 + $0x148] sm:$0xff]
    %v2756 = vld [vmem:[#allocation9 + $0x150] sm:$0xff]
    %v2757 = vld [vmem:[#allocation9 + $0x158] sm:$0xff]
    %v2758 = vld [vmem:[#allocation9 + $0x160] sm:$0xff]
    %v2759 = vld [vmem:[#allocation9 + $0x168] sm:$0xff]
    %v2760 = vld [vmem:[#allocation9 + $0x170] sm:$0xff]
    %v2761 = vld [vmem:[#allocation9 + $0x178] sm:$0xff]
    %2762 = vmatprep.subr.mxu0 %v2760
    %2763 = vmatpush1.msra.mxu0 %v2759
    %2764 = vmatprep.subr.mxu0 %v2757
    %2765 = vmatpush1.msra.mxu0 %v2756
    %2766 = vmatprep.subr.mxu0 %v2754
    %2767 = vmatpush1.msra.mxu0 %v2753
    %2768 = vmatprep.subr.mxu0 %v2751
    %2769 = vmatpush1.msra.mxu0 %v2750
    %2770 = vmatprep.subr.mxu0 %v2748
    %2771 = vmatpush1.msra.mxu0 %v2747
    %2772 = vmatprep.subr.mxu0 %v2745
    %2773 = vmatpush1.msra.mxu0 %v2744
    %2774 = vmatprep.subr.mxu0 %v2742
    %2775 = vmatpush1.msra.mxu0 %v2741
    %2776 = vmatprep.subr.mxu0 %v2739
    %2777 = vmatpush1.msra.mxu0 %v2738
    %2778 = vmatprep.subr.mxu0 %v2736
    %2779 = vmatpush1.msra.mxu0 %v2735
    %2780 = vmatprep.subr.mxu0 %v2733
    %2781 = vmatpush1.msra.mxu0 %v2732
    %2782 = vmatprep.subr.mxu0 %v2730
    %2783 = vmatpush1.msra.mxu0 %v2729
    %2784 = vmatprep.subr.mxu0 %v2727
    %2785 = vmatpush1.msra.mxu0 %v2726
    %2786 = vmatprep.subr.mxu0 %v2724
    %2787 = vmatpush1.msra.mxu0 %v2723
    %2788 = vmatprep.subr.mxu0 %v2721
    %2789 = vmatpush1.msra.mxu0 %v2720
    %2790 = vmatprep.subr.mxu0 %v2718
    %2791 = vmatpush1.msra.mxu0 %v2717
    %2792 = vmatprep.subr.mxu0 %v2715
    %2793 = vmatpush1.msra.mxu0 %v2714
    %2794 = vmatprep.subr.mxu0 0.0
    %2795 = vmatpush2.msra.mxu0 0.0
    %2796 = vmatprep.subr.mxu0 0.0
    %2797 = vmatpush2.msra.mxu0 0.0
    %2798 = vmatprep.subr.mxu0 0.0
    %2799 = vmatpush2.msra.mxu0 0.0
    %2800 = vmatprep.subr.mxu0 0.0
    %2801 = vmatpush2.msra.mxu0 0.0
    %2802 = vmatprep.subr.mxu0 0.0
    %2803 = vmatpush2.msra.mxu0 0.0
    %2804 = vmatprep.subr.mxu0 0.0
    %2805 = vmatpush2.msra.mxu0 0.0
    %2806 = vmatprep.subr.mxu0 0.0
    %2807 = vmatpush2.msra.mxu0 0.0
    %2808 = vmatprep.subr.mxu0 0.0
    %2809 = vmatpush2.msra.mxu0 0.0
    %2810 = vmatprep.subr.mxu0 0.0
    %2811 = vmatpush2.msra.mxu0 0.0
    %2812 = vmatprep.subr.mxu0 0.0
    %2813 = vmatpush2.msra.mxu0 0.0
    %2814 = vmatprep.subr.mxu0 0.0
    %2815 = vmatpush2.msra.mxu0 0.0
    %2816 = vmatprep.subr.mxu0 0.0
    %2817 = vmatpush2.msra.mxu0 0.0
    %2818 = vmatprep.subr.mxu0 0.0
    %2819 = vmatpush2.msra.mxu0 0.0
    %2820 = vmatprep.subr.mxu0 0.0
    %2821 = vmatpush2.msra.mxu0 0.0
    %2822 = vmatprep.subr.mxu0 0.0
    %2823 = vmatpush2.msra.mxu0 0.0
    %2824 = vmatprep.subr.mxu0 0.0
    %2825 = vmatpush2.msra.mxu0 0.0
    %2826 = vmatprep.mubr.f32.mxu0 0.0
    %2827 = vmatmul.mubr.f32.gmra.mxu0 %v2712
    %v2828 = vpop.f32.mrf.mxu0
    %v2829 = vadd.f32 0.0, %v2828
    %v2830 = vpop.f32.mrf.mxu0
    %v2831 = vadd.f32 0.0, %v2830
    %2832 = vdwg.mxu0
    %2833 = vmatprep.subr.mxu0 0.0
    %2834 = vmatpush1.msra.mxu0 %v2761
    %2835 = vmatprep.subr.mxu0 0.0
    %2836 = vmatpush1.msra.mxu0 %v2758
    %2837 = vmatprep.subr.mxu0 0.0
    %2838 = vmatpush1.msra.mxu0 %v2755
    %2839 = vmatprep.subr.mxu0 0.0
    %2840 = vmatpush1.msra.mxu0 %v2752
    %2841 = vmatprep.subr.mxu0 0.0
    %2842 = vmatpush1.msra.mxu0 %v2749
    %2843 = vmatprep.subr.mxu0 0.0
    %2844 = vmatpush1.msra.mxu0 %v2746
    %2845 = vmatprep.subr.mxu0 0.0
    %2846 = vmatpush1.msra.mxu0 %v2743
    %2847 = vmatprep.subr.mxu0 0.0
    %2848 = vmatpush1.msra.mxu0 %v2740
    %2849 = vmatprep.subr.mxu0 0.0
    %2850 = vmatpush1.msra.mxu0 %v2737
    %2851 = vmatprep.subr.mxu0 0.0
    %2852 = vmatpush1.msra.mxu0 %v2734
    %2853 = vmatprep.subr.mxu0 0.0
    %2854 = vmatpush1.msra.mxu0 %v2731
    %2855 = vmatprep.subr.mxu0 0.0
    %2856 = vmatpush1.msra.mxu0 %v2728
    %2857 = vmatprep.subr.mxu0 0.0
    %2858 = vmatpush1.msra.mxu0 %v2725
    %2859 = vmatprep.subr.mxu0 0.0
    %2860 = vmatpush1.msra.mxu0 %v2722
    %2861 = vmatprep.subr.mxu0 0.0
    %2862 = vmatpush1.msra.mxu0 %v2719
    %2863 = vmatprep.subr.mxu0 0.0
    %2864 = vmatpush1.msra.mxu0 %v2716
    %2865 = vmatprep.subr.mxu0 0.0
    %2866 = vmatpush2.msra.mxu0 0.0
    %2867 = vmatprep.subr.mxu0 0.0
    %2868 = vmatpush2.msra.mxu0 0.0
    %2869 = vmatprep.subr.mxu0 0.0
    %2870 = vmatpush2.msra.mxu0 0.0
    %2871 = vmatprep.subr.mxu0 0.0
    %2872 = vmatpush2.msra.mxu0 0.0
    %2873 = vmatprep.subr.mxu0 0.0
    %2874 = vmatpush2.msra.mxu0 0.0
    %2875 = vmatprep.subr.mxu0 0.0
    %2876 = vmatpush2.msra.mxu0 0.0
    %2877 = vmatprep.subr.mxu0 0.0
    %2878 = vmatpush2.msra.mxu0 0.0
    %2879 = vmatprep.subr.mxu0 0.0
    %2880 = vmatpush2.msra.mxu0 0.0
    %2881 = vmatprep.subr.mxu0 0.0
    %2882 = vmatpush2.msra.mxu0 0.0
    %2883 = vmatprep.subr.mxu0 0.0
    %2884 = vmatpush2.msra.mxu0 0.0
    %2885 = vmatprep.subr.mxu0 0.0
    %2886 = vmatpush2.msra.mxu0 0.0
    %2887 = vmatprep.subr.mxu0 0.0
    %2888 = vmatpush2.msra.mxu0 0.0
    %2889 = vmatprep.subr.mxu0 0.0
    %2890 = vmatpush2.msra.mxu0 0.0
    %2891 = vmatprep.subr.mxu0 0.0
    %2892 = vmatpush2.msra.mxu0 0.0
    %2893 = vmatprep.subr.mxu0 0.0
    %2894 = vmatpush2.msra.mxu0 0.0
    %2895 = vmatprep.subr.mxu0 0.0
    %2896 = vmatpush2.msra.mxu0 0.0
    %2897 = vmatprep.mubr.f32.mxu0 0.0
    %2898 = vmatmul.mubr.f32.gmra.mxu0 %v2712
    %v2899 = vpop.f32.mrf.mxu0
    %v2900 = vadd.f32 0.0, %v2899
    %v2901 = vpop.f32.mrf.mxu0
    %2902 = vdwg.mxu0
    %v2903 = vld [vmem:[%s832] sm:$0xff]
    %v2904 = vld [vmem:[%s832 + $0x8] sm:$0xff]
    %v2905 = vld [vmem:[%s832 + $0x10] sm:$0xff]
    %v2906 = vadd.f32 %v2903, %v2829
    %v2907 = vxor.u32 %v2906, 2147483648
    %v2908 = vmul.f32 %v2907, 1.442695
    %v2909 = vpow.pop %v2908
    %v2910 = vadd.f32 %v2909, 1.0
    %v2911 = vrcp.pop %v2910
    %v2912 = vmul.f32 1.0, %v2911
    %v2913 = vadd.f32 %v2904, %v2831
    %v2914 = vxor.u32 %v2913, 2147483648
    %v2915 = vmul.f32 %v2914, 1.442695
    %v2916 = vpow.pop %v2915
    %v2917 = vadd.f32 %v2916, 1.0
    %v2918 = vrcp.pop %v2917
    %v2919 = vmul.f32 1.0, %v2918
    %v2920 = vadd.f32 %v2900, %v2703
    %v2921 = vmul.f32 %v2912, %v2920
    %v2922 = vadd.f32 %v2905, %v2921
    %v2923 = vtanh.pop %v2922
    %v2924 = vsub.f32 1.0, %v2919
    %v2925 = vmul.f32 %v2924, %v2923
    %v2926 = vmul.f32 %v2919, %v2712
    %v2927 = vadd.f32 %v2925, %v2926
    %2928 = vst [vmem:[%s858] sm:$0xff] %v2927
    %v2929 = vld [vmem:[#allocation9] sm:$0xff]
    %v2930 = vld [vmem:[#allocation9 + $0x8] sm:$0xff]
    %v2931 = vld [vmem:[#allocation9 + $0x10] sm:$0xff]
    %v2932 = vld [vmem:[#allocation9 + $0x18] sm:$0xff]
    %v2933 = vld [vmem:[#allocation9 + $0x20] sm:$0xff]
    %v2934 = vld [vmem:[#allocation9 + $0x28] sm:$0xff]
    %v2935 = vld [vmem:[#allocation9 + $0x30] sm:$0xff]
    %v2936 = vld [vmem:[#allocation9 + $0x38] sm:$0xff]
    %v2937 = vld [vmem:[#allocation9 + $0x40] sm:$0xff]
    %v2938 = vld [vmem:[#allocation9 + $0x48] sm:$0xff]
    %v2939 = vld [vmem:[#allocation9 + $0x50] sm:$0xff]
    %v2940 = vld [vmem:[#allocation9 + $0x58] sm:$0xff]
    %v2941 = vld [vmem:[#allocation9 + $0x60] sm:$0xff]
    %v2942 = vld [vmem:[#allocation9 + $0x68] sm:$0xff]
    %v2943 = vld [vmem:[#allocation9 + $0x70] sm:$0xff]
    %v2944 = vld [vmem:[#allocation9 + $0x78] sm:$0xff]
    %v2945 = vld [vmem:[#allocation9 + $0x80] sm:$0xff]
    %v2946 = vld [vmem:[#allocation9 + $0x88] sm:$0xff]
    %v2947 = vld [vmem:[#allocation9 + $0x90] sm:$0xff]
    %v2948 = vld [vmem:[#allocation9 + $0x98] sm:$0xff]
    %v2949 = vld [vmem:[#allocation9 + $0xa0] sm:$0xff]
    %v2950 = vld [vmem:[#allocation9 + $0xa8] sm:$0xff]
    %v2951 = vld [vmem:[#allocation9 + $0xb0] sm:$0xff]
    %v2952 = vld [vmem:[#allocation9 + $0xb8] sm:$0xff]
    %v2953 = vld [vmem:[#allocation9 + $0xc0] sm:$0xff]
    %v2954 = vld [vmem:[#allocation9 + $0xc8] sm:$0xff]
    %v2955 = vld [vmem:[#allocation9 + $0xd0] sm:$0xff]
    %v2956 = vld [vmem:[#allocation9 + $0xd8] sm:$0xff]
    %v2957 = vld [vmem:[#allocation9 + $0xe0] sm:$0xff]
    %v2958 = vld [vmem:[#allocation9 + $0xe8] sm:$0xff]
    %v2959 = vld [vmem:[#allocation9 + $0xf0] sm:$0xff]
    %v2960 = vld [vmem:[#allocation9 + $0xf8] sm:$0xff]
    %v2961 = vld [vmem:[#allocation9 + $0x100] sm:$0xff]
    %v2962 = vld [vmem:[#allocation9 + $0x108] sm:$0xff]
    %v2963 = vld [vmem:[#allocation9 + $0x110] sm:$0xff]
    %v2964 = vld [vmem:[#allocation9 + $0x118] sm:$0xff]
    %v2965 = vld [vmem:[#allocation9 + $0x120] sm:$0xff]
    %v2966 = vld [vmem:[#allocation9 + $0x128] sm:$0xff]
    %v2967 = vld [vmem:[#allocation9 + $0x130] sm:$0xff]
    %v2968 = vld [vmem:[#allocation9 + $0x138] sm:$0xff]
    %v2969 = vld [vmem:[#allocation9 + $0x140] sm:$0xff]
    %v2970 = vld [vmem:[#allocation9 + $0x148] sm:$0xff]
    %v2971 = vld [vmem:[#allocation9 + $0x150] sm:$0xff]
    %v2972 = vld [vmem:[#allocation9 + $0x158] sm:$0xff]
    %v2973 = vld [vmem:[#allocation9 + $0x160] sm:$0xff]
    %v2974 = vld [vmem:[#allocation9 + $0x168] sm:$0xff]
    %v2975 = vld [vmem:[#allocation9 + $0x170] sm:$0xff]
    %v2976 = vld [vmem:[#allocation9 + $0x178] sm:$0xff]
    %2977 = vmatprep.subr.mxu0 %v2975
    %2978 = vmatpush1.msra.mxu0 %v2974
    %2979 = vmatprep.subr.mxu0 %v2972
    %2980 = vmatpush1.msra.mxu0 %v2971
    %2981 = vmatprep.subr.mxu0 %v2969
    %2982 = vmatpush1.msra.mxu0 %v2968
    %2983 = vmatprep.subr.mxu0 %v2966
    %2984 = vmatpush1.msra.mxu0 %v2965
    %2985 = vmatprep.subr.mxu0 %v2963
    %2986 = vmatpush1.msra.mxu0 %v2962
    %2987 = vmatprep.subr.mxu0 %v2960
    %2988 = vmatpush1.msra.mxu0 %v2959
    %2989 = vmatprep.subr.mxu0 %v2957
    %2990 = vmatpush1.msra.mxu0 %v2956
    %2991 = vmatprep.subr.mxu0 %v2954
    %2992 = vmatpush1.msra.mxu0 %v2953
    %2993 = vmatprep.subr.mxu0 %v2951
    %2994 = vmatpush1.msra.mxu0 %v2950
    %2995 = vmatprep.subr.mxu0 %v2948
    %2996 = vmatpush1.msra.mxu0 %v2947
    %2997 = vmatprep.subr.mxu0 %v2945
    %2998 = vmatpush1.msra.mxu0 %v2944
    %2999 = vmatprep.subr.mxu0 %v2942
    %3000 = vmatpush1.msra.mxu0 %v2941
    %3001 = vmatprep.subr.mxu0 %v2939
    %3002 = vmatpush1.msra.mxu0 %v2938
    %3003 = vmatprep.subr.mxu0 %v2936
    %3004 = vmatpush1.msra.mxu0 %v2935
    %3005 = vmatprep.subr.mxu0 %v2933
    %3006 = vmatpush1.msra.mxu0 %v2932
    %3007 = vmatprep.subr.mxu0 %v2930
    %3008 = vmatpush1.msra.mxu0 %v2929
    %3009 = vmatprep.subr.mxu0 0.0
    %3010 = vmatpush2.msra.mxu0 0.0
    %3011 = vmatprep.subr.mxu0 0.0
    %3012 = vmatpush2.msra.mxu0 0.0
    %3013 = vmatprep.subr.mxu0 0.0
    %3014 = vmatpush2.msra.mxu0 0.0
    %3015 = vmatprep.subr.mxu0 0.0
    %3016 = vmatpush2.msra.mxu0 0.0
    %3017 = vmatprep.subr.mxu0 0.0
    %3018 = vmatpush2.msra.mxu0 0.0
    %3019 = vmatprep.subr.mxu0 0.0
    %3020 = vmatpush2.msra.mxu0 0.0
    %3021 = vmatprep.subr.mxu0 0.0
    %3022 = vmatpush2.msra.mxu0 0.0
    %3023 = vmatprep.subr.mxu0 0.0
    %3024 = vmatpush2.msra.mxu0 0.0
    %3025 = vmatprep.subr.mxu0 0.0
    %3026 = vmatpush2.msra.mxu0 0.0
    %3027 = vmatprep.subr.mxu0 0.0
    %3028 = vmatpush2.msra.mxu0 0.0
    %3029 = vmatprep.subr.mxu0 0.0
    %3030 = vmatpush2.msra.mxu0 0.0
    %3031 = vmatprep.subr.mxu0 0.0
    %3032 = vmatpush2.msra.mxu0 0.0
    %3033 = vmatprep.subr.mxu0 0.0
    %3034 = vmatpush2.msra.mxu0 0.0
    %3035 = vmatprep.subr.mxu0 0.0
    %3036 = vmatpush2.msra.mxu0 0.0
    %3037 = vmatprep.subr.mxu0 0.0
    %3038 = vmatpush2.msra.mxu0 0.0
    %3039 = vmatprep.subr.mxu0 0.0
    %3040 = vmatpush2.msra.mxu0 0.0
    %3041 = vmatprep.mubr.f32.mxu0 0.0
    %3042 = vmatmul.mubr.f32.gmra.mxu0 %v2927
    %v3043 = vpop.f32.mrf.mxu0
    %v3044 = vadd.f32 0.0, %v3043
    %v3045 = vpop.f32.mrf.mxu0
    %v3046 = vadd.f32 0.0, %v3045
    %3047 = vdwg.mxu0
    %3048 = vmatprep.subr.mxu0 0.0
    %3049 = vmatpush1.msra.mxu0 %v2976
    %3050 = vmatprep.subr.mxu0 0.0
    %3051 = vmatpush1.msra.mxu0 %v2973
    %3052 = vmatprep.subr.mxu0 0.0
    %3053 = vmatpush1.msra.mxu0 %v2970
    %3054 = vmatprep.subr.mxu0 0.0
    %3055 = vmatpush1.msra.mxu0 %v2967
    %3056 = vmatprep.subr.mxu0 0.0
    %3057 = vmatpush1.msra.mxu0 %v2964
    %3058 = vmatprep.subr.mxu0 0.0
    %3059 = vmatpush1.msra.mxu0 %v2961
    %3060 = vmatprep.subr.mxu0 0.0
    %3061 = vmatpush1.msra.mxu0 %v2958
    %3062 = vmatprep.subr.mxu0 0.0
    %3063 = vmatpush1.msra.mxu0 %v2955
    %3064 = vmatprep.subr.mxu0 0.0
    %3065 = vmatpush1.msra.mxu0 %v2952
    %3066 = vmatprep.subr.mxu0 0.0
    %3067 = vmatpush1.msra.mxu0 %v2949
    %3068 = vmatprep.subr.mxu0 0.0
    %3069 = vmatpush1.msra.mxu0 %v2946
    %3070 = vmatprep.subr.mxu0 0.0
    %3071 = vmatpush1.msra.mxu0 %v2943
    %3072 = vmatprep.subr.mxu0 0.0
    %3073 = vmatpush1.msra.mxu0 %v2940
    %3074 = vmatprep.subr.mxu0 0.0
    %3075 = vmatpush1.msra.mxu0 %v2937
    %3076 = vmatprep.subr.mxu0 0.0
    %3077 = vmatpush1.msra.mxu0 %v2934
    %3078 = vmatprep.subr.mxu0 0.0
    %3079 = vmatpush1.msra.mxu0 %v2931
    %3080 = vmatprep.subr.mxu0 0.0
    %3081 = vmatpush2.msra.mxu0 0.0
    %3082 = vmatprep.subr.mxu0 0.0
    %3083 = vmatpush2.msra.mxu0 0.0
    %3084 = vmatprep.subr.mxu0 0.0
    %3085 = vmatpush2.msra.mxu0 0.0
    %3086 = vmatprep.subr.mxu0 0.0
    %3087 = vmatpush2.msra.mxu0 0.0
    %3088 = vmatprep.subr.mxu0 0.0
    %3089 = vmatpush2.msra.mxu0 0.0
    %3090 = vmatprep.subr.mxu0 0.0
    %3091 = vmatpush2.msra.mxu0 0.0
    %3092 = vmatprep.subr.mxu0 0.0
    %3093 = vmatpush2.msra.mxu0 0.0
    %3094 = vmatprep.subr.mxu0 0.0
    %3095 = vmatpush2.msra.mxu0 0.0
    %3096 = vmatprep.subr.mxu0 0.0
    %3097 = vmatpush2.msra.mxu0 0.0
    %3098 = vmatprep.subr.mxu0 0.0
    %3099 = vmatpush2.msra.mxu0 0.0
    %3100 = vmatprep.subr.mxu0 0.0
    %3101 = vmatpush2.msra.mxu0 0.0
    %3102 = vmatprep.subr.mxu0 0.0
    %3103 = vmatpush2.msra.mxu0 0.0
    %3104 = vmatprep.subr.mxu0 0.0
    %3105 = vmatpush2.msra.mxu0 0.0
    %3106 = vmatprep.subr.mxu0 0.0
    %3107 = vmatpush2.msra.mxu0 0.0
    %3108 = vmatprep.subr.mxu0 0.0
    %3109 = vmatpush2.msra.mxu0 0.0
    %3110 = vmatprep.subr.mxu0 0.0
    %3111 = vmatpush2.msra.mxu0 0.0
    %3112 = vmatprep.mubr.f32.mxu0 0.0
    %3113 = vmatmul.mubr.f32.gmra.mxu0 %v2927
    %v3114 = vpop.f32.mrf.mxu0
    %v3115 = vadd.f32 0.0, %v3114
    %v3116 = vpop.f32.mrf.mxu0
    %3117 = vdwg.mxu0
    %v3118 = vld [vmem:[%s1051] sm:$0xff]
    %v3119 = vld [vmem:[%s1051 + $0x8] sm:$0xff]
    %v3120 = vld [vmem:[%s1051 + $0x10] sm:$0xff]
    %v3121 = vadd.f32 %v3118, %v3044
    %v3122 = vxor.u32 %v3121, 2147483648
    %v3123 = vmul.f32 %v3122, 1.442695
    %v3124 = vpow.pop %v3123
    %v3125 = vadd.f32 %v3124, 1.0
    %v3126 = vrcp.pop %v3125
    %v3127 = vmul.f32 1.0, %v3126
    %v3128 = vadd.f32 %v3119, %v3046
    %v3129 = vxor.u32 %v3128, 2147483648
    %v3130 = vmul.f32 %v3129, 1.442695
    %v3131 = vpow.pop %v3130
    %v3132 = vadd.f32 %v3131, 1.0
    %v3133 = vrcp.pop %v3132
    %v3134 = vmul.f32 1.0, %v3133
    %v3135 = vadd.f32 %v3115, %v2703
    %v3136 = vmul.f32 %v3127, %v3135
    %v3137 = vadd.f32 %v3120, %v3136
    %v3138 = vtanh.pop %v3137
    %v3139 = vsub.f32 1.0, %v3134
    %v3140 = vmul.f32 %v3139, %v3138
    %v3141 = vmul.f32 %v3134, %v2927
    %v3142 = vadd.f32 %v3140, %v3141
    %3143 = vst [vmem:[%s1077] sm:$0xff] %v3142
    %v3144 = vld [vmem:[#allocation9] sm:$0xff]
    %v3145 = vld [vmem:[#allocation9 + $0x8] sm:$0xff]
    %v3146 = vld [vmem:[#allocation9 + $0x10] sm:$0xff]
    %v3147 = vld [vmem:[#allocation9 + $0x18] sm:$0xff]
    %v3148 = vld [vmem:[#allocation9 + $0x20] sm:$0xff]
    %v3149 = vld [vmem:[#allocation9 + $0x28] sm:$0xff]
    %v3150 = vld [vmem:[#allocation9 + $0x30] sm:$0xff]
    %v3151 = vld [vmem:[#allocation9 + $0x38] sm:$0xff]
    %v3152 = vld [vmem:[#allocation9 + $0x40] sm:$0xff]
    %v3153 = vld [vmem:[#allocation9 + $0x48] sm:$0xff]
    %v3154 = vld [vmem:[#allocation9 + $0x50] sm:$0xff]
    %v3155 = vld [vmem:[#allocation9 + $0x58] sm:$0xff]
    %v3156 = vld [vmem:[#allocation9 + $0x60] sm:$0xff]
    %v3157 = vld [vmem:[#allocation9 + $0x68] sm:$0xff]
    %v3158 = vld [vmem:[#allocation9 + $0x70] sm:$0xff]
    %v3159 = vld [vmem:[#allocation9 + $0x78] sm:$0xff]
    %v3160 = vld [vmem:[#allocation9 + $0x80] sm:$0xff]
    %v3161 = vld [vmem:[#allocation9 + $0x88] sm:$0xff]
    %v3162 = vld [vmem:[#allocation9 + $0x90] sm:$0xff]
    %v3163 = vld [vmem:[#allocation9 + $0x98] sm:$0xff]
    %v3164 = vld [vmem:[#allocation9 + $0xa0] sm:$0xff]
    %v3165 = vld [vmem:[#allocation9 + $0xa8] sm:$0xff]
    %v3166 = vld [vmem:[#allocation9 + $0xb0] sm:$0xff]
    %v3167 = vld [vmem:[#allocation9 + $0xb8] sm:$0xff]
    %v3168 = vld [vmem:[#allocation9 + $0xc0] sm:$0xff]
    %v3169 = vld [vmem:[#allocation9 + $0xc8] sm:$0xff]
    %v3170 = vld [vmem:[#allocation9 + $0xd0] sm:$0xff]
    %v3171 = vld [vmem:[#allocation9 + $0xd8] sm:$0xff]
    %v3172 = vld [vmem:[#allocation9 + $0xe0] sm:$0xff]
    %v3173 = vld [vmem:[#allocation9 + $0xe8] sm:$0xff]
    %v3174 = vld [vmem:[#allocation9 + $0xf0] sm:$0xff]
    %v3175 = vld [vmem:[#allocation9 + $0xf8] sm:$0xff]
    %v3176 = vld [vmem:[#allocation9 + $0x100] sm:$0xff]
    %v3177 = vld [vmem:[#allocation9 + $0x108] sm:$0xff]
    %v3178 = vld [vmem:[#allocation9 + $0x110] sm:$0xff]
    %v3179 = vld [vmem:[#allocation9 + $0x118] sm:$0xff]
    %v3180 = vld [vmem:[#allocation9 + $0x120] sm:$0xff]
    %v3181 = vld [vmem:[#allocation9 + $0x128] sm:$0xff]
    %v3182 = vld [vmem:[#allocation9 + $0x130] sm:$0xff]
    %v3183 = vld [vmem:[#allocation9 + $0x138] sm:$0xff]
    %v3184 = vld [vmem:[#allocation9 + $0x140] sm:$0xff]
    %v3185 = vld [vmem:[#allocation9 + $0x148] sm:$0xff]
    %v3186 = vld [vmem:[#allocation9 + $0x150] sm:$0xff]
    %v3187 = vld [vmem:[#allocation9 + $0x158] sm:$0xff]
    %v3188 = vld [vmem:[#allocation9 + $0x160] sm:$0xff]
    %v3189 = vld [vmem:[#allocation9 + $0x168] sm:$0xff]
    %v3190 = vld [vmem:[#allocation9 + $0x170] sm:$0xff]
    %v3191 = vld [vmem:[#allocation9 + $0x178] sm:$0xff]
    %3192 = vmatprep.subr.mxu0 %v3190
    %3193 = vmatpush1.msra.mxu0 %v3189
    %3194 = vmatprep.subr.mxu0 %v3187
    %3195 = vmatpush1.msra.mxu0 %v3186
    %3196 = vmatprep.subr.mxu0 %v3184
    %3197 = vmatpush1.msra.mxu0 %v3183
    %3198 = vmatprep.subr.mxu0 %v3181
    %3199 = vmatpush1.msra.mxu0 %v3180
    %3200 = vmatprep.subr.mxu0 %v3178
    %3201 = vmatpush1.msra.mxu0 %v3177
    %3202 = vmatprep.subr.mxu0 %v3175
    %3203 = vmatpush1.msra.mxu0 %v3174
    %3204 = vmatprep.subr.mxu0 %v3172
    %3205 = vmatpush1.msra.mxu0 %v3171
    %3206 = vmatprep.subr.mxu0 %v3169
    %3207 = vmatpush1.msra.mxu0 %v3168
    %3208 = vmatprep.subr.mxu0 %v3166
    %3209 = vmatpush1.msra.mxu0 %v3165
    %3210 = vmatprep.subr.mxu0 %v3163
    %3211 = vmatpush1.msra.mxu0 %v3162
    %3212 = vmatprep.subr.mxu0 %v3160
    %3213 = vmatpush1.msra.mxu0 %v3159
    %3214 = vmatprep.subr.mxu0 %v3157
    %3215 = vmatpush1.msra.mxu0 %v3156
    %3216 = vmatprep.subr.mxu0 %v3154
    %3217 = vmatpush1.msra.mxu0 %v3153
    %3218 = vmatprep.subr.mxu0 %v3151
    %3219 = vmatpush1.msra.mxu0 %v3150
    %3220 = vmatprep.subr.mxu0 %v3148
    %3221 = vmatpush1.msra.mxu0 %v3147
    %3222 = vmatprep.subr.mxu0 %v3145
    %3223 = vmatpush1.msra.mxu0 %v3144
    %3224 = vmatprep.subr.mxu0 0.0
    %3225 = vmatpush2.msra.mxu0 0.0
    %3226 = vmatprep.subr.mxu0 0.0
    %3227 = vmatpush2.msra.mxu0 0.0
    %3228 = vmatprep.subr.mxu0 0.0
    %3229 = vmatpush2.msra.mxu0 0.0
    %3230 = vmatprep.subr.mxu0 0.0
    %3231 = vmatpush2.msra.mxu0 0.0
    %3232 = vmatprep.subr.mxu0 0.0
    %3233 = vmatpush2.msra.mxu0 0.0
    %3234 = vmatprep.subr.mxu0 0.0
    %3235 = vmatpush2.msra.mxu0 0.0
    %3236 = vmatprep.subr.mxu0 0.0
    %3237 = vmatpush2.msra.mxu0 0.0
    %3238 = vmatprep.subr.mxu0 0.0
    %3239 = vmatpush2.msra.mxu0 0.0
    %3240 = vmatprep.subr.mxu0 0.0
    %3241 = vmatpush2.msra.mxu0 0.0
    %3242 = vmatprep.subr.mxu0 0.0
    %3243 = vmatpush2.msra.mxu0 0.0
    %3244 = vmatprep.subr.mxu0 0.0
    %3245 = vmatpush2.msra.mxu0 0.0
    %3246 = vmatprep.subr.mxu0 0.0
    %3247 = vmatpush2.msra.mxu0 0.0
    %3248 = vmatprep.subr.mxu0 0.0
    %3249 = vmatpush2.msra.mxu0 0.0
    %3250 = vmatprep.subr.mxu0 0.0
    %3251 = vmatpush2.msra.mxu0 0.0
    %3252 = vmatprep.subr.mxu0 0.0
    %3253 = vmatpush2.msra.mxu0 0.0
    %3254 = vmatprep.subr.mxu0 0.0
    %3255 = vmatpush2.msra.mxu0 0.0
    %3256 = vmatprep.mubr.f32.mxu0 0.0
    %3257 = vmatmul.mubr.f32.gmra.mxu0 %v3142
    %v3258 = vpop.f32.mrf.mxu0
    %v3259 = vadd.f32 0.0, %v3258
    %v3260 = vpop.f32.mrf.mxu0
    %v3261 = vadd.f32 0.0, %v3260
    %3262 = vdwg.mxu0
    %3263 = vmatprep.subr.mxu0 0.0
    %3264 = vmatpush1.msra.mxu0 %v3191
    %3265 = vmatprep.subr.mxu0 0.0
    %3266 = vmatpush1.msra.mxu0 %v3188
    %3267 = vmatprep.subr.mxu0 0.0
    %3268 = vmatpush1.msra.mxu0 %v3185
    %3269 = vmatprep.subr.mxu0 0.0
    %3270 = vmatpush1.msra.mxu0 %v3182
    %3271 = vmatprep.subr.mxu0 0.0
    %3272 = vmatpush1.msra.mxu0 %v3179
    %3273 = vmatprep.subr.mxu0 0.0
    %3274 = vmatpush1.msra.mxu0 %v3176
    %3275 = vmatprep.subr.mxu0 0.0
    %3276 = vmatpush1.msra.mxu0 %v3173
    %3277 = vmatprep.subr.mxu0 0.0
    %3278 = vmatpush1.msra.mxu0 %v3170
    %3279 = vmatprep.subr.mxu0 0.0
    %3280 = vmatpush1.msra.mxu0 %v3167
    %3281 = vmatprep.subr.mxu0 0.0
    %3282 = vmatpush1.msra.mxu0 %v3164
    %3283 = vmatprep.subr.mxu0 0.0
    %3284 = vmatpush1.msra.mxu0 %v3161
    %3285 = vmatprep.subr.mxu0 0.0
    %3286 = vmatpush1.msra.mxu0 %v3158
    %3287 = vmatprep.subr.mxu0 0.0
    %3288 = vmatpush1.msra.mxu0 %v3155
    %3289 = vmatprep.subr.mxu0 0.0
    %3290 = vmatpush1.msra.mxu0 %v3152
    %3291 = vmatprep.subr.mxu0 0.0
    %3292 = vmatpush1.msra.mxu0 %v3149
    %3293 = vmatprep.subr.mxu0 0.0
    %3294 = vmatpush1.msra.mxu0 %v3146
    %3295 = vmatprep.subr.mxu0 0.0
    %3296 = vmatpush2.msra.mxu0 0.0
    %3297 = vmatprep.subr.mxu0 0.0
    %3298 = vmatpush2.msra.mxu0 0.0
    %3299 = vmatprep.subr.mxu0 0.0
    %3300 = vmatpush2.msra.mxu0 0.0
    %3301 = vmatprep.subr.mxu0 0.0
    %3302 = vmatpush2.msra.mxu0 0.0
    %3303 = vmatprep.subr.mxu0 0.0
    %3304 = vmatpush2.msra.mxu0 0.0
    %3305 = vmatprep.subr.mxu0 0.0
    %3306 = vmatpush2.msra.mxu0 0.0
    %3307 = vmatprep.subr.mxu0 0.0
    %3308 = vmatpush2.msra.mxu0 0.0
    %3309 = vmatprep.subr.mxu0 0.0
    %3310 = vmatpush2.msra.mxu0 0.0
    %3311 = vmatprep.subr.mxu0 0.0
    %3312 = vmatpush2.msra.mxu0 0.0
    %3313 = vmatprep.subr.mxu0 0.0
    %3314 = vmatpush2.msra.mxu0 0.0
    %3315 = vmatprep.subr.mxu0 0.0
    %3316 = vmatpush2.msra.mxu0 0.0
    %3317 = vmatprep.subr.mxu0 0.0
    %3318 = vmatpush2.msra.mxu0 0.0
    %3319 = vmatprep.subr.mxu0 0.0
    %3320 = vmatpush2.msra.mxu0 0.0
    %3321 = vmatprep.subr.mxu0 0.0
    %3322 = vmatpush2.msra.mxu0 0.0
    %3323 = vmatprep.subr.mxu0 0.0
    %3324 = vmatpush2.msra.mxu0 0.0
    %3325 = vmatprep.subr.mxu0 0.0
    %3326 = vmatpush2.msra.mxu0 0.0
    %3327 = vmatprep.mubr.f32.mxu0 0.0
    %3328 = vmatmul.mubr.f32.gmra.mxu0 %v3142
    %v3329 = vpop.f32.mrf.mxu0
    %v3330 = vadd.f32 0.0, %v3329
    %v3331 = vpop.f32.mrf.mxu0
    %3332 = vdwg.mxu0
    %v3333 = vld [vmem:[%s1270] sm:$0xff]
    %v3334 = vld [vmem:[%s1270 + $0x8] sm:$0xff]
    %v3335 = vld [vmem:[%s1270 + $0x10] sm:$0xff]
    %v3336 = vadd.f32 %v3333, %v3259
    %v3337 = vxor.u32 %v3336, 2147483648
    %v3338 = vmul.f32 %v3337, 1.442695
    %v3339 = vpow.pop %v3338
    %v3340 = vadd.f32 %v3339, 1.0
    %v3341 = vrcp.pop %v3340
    %v3342 = vmul.f32 1.0, %v3341
    %v3343 = vadd.f32 %v3334, %v3261
    %v3344 = vxor.u32 %v3343, 2147483648
    %v3345 = vmul.f32 %v3344, 1.442695
    %v3346 = vpow.pop %v3345
    %v3347 = vadd.f32 %v3346, 1.0
    %v3348 = vrcp.pop %v3347
    %v3349 = vmul.f32 1.0, %v3348
    %v3350 = vadd.f32 %v3330, %v2703
    %v3351 = vmul.f32 %v3342, %v3350
    %v3352 = vadd.f32 %v3335, %v3351
    %v3353 = vtanh.pop %v3352
    %v3354 = vsub.f32 1.0, %v3349
    %v3355 = vmul.f32 %v3354, %v3353
    %v3356 = vmul.f32 %v3349, %v3142
    %v3357 = vadd.f32 %v3355, %v3356
    %3358 = vst [vmem:[%s1296] sm:$0xff] %v3357
    %v3359 = vld [vmem:[#allocation9] sm:$0xff]
    %v3360 = vld [vmem:[#allocation9 + $0x8] sm:$0xff]
    %v3361 = vld [vmem:[#allocation9 + $0x10] sm:$0xff]
    %v3362 = vld [vmem:[#allocation9 + $0x18] sm:$0xff]
    %v3363 = vld [vmem:[#allocation9 + $0x20] sm:$0xff]
    %v3364 = vld [vmem:[#allocation9 + $0x28] sm:$0xff]
    %v3365 = vld [vmem:[#allocation9 + $0x30] sm:$0xff]
    %v3366 = vld [vmem:[#allocation9 + $0x38] sm:$0xff]
    %v3367 = vld [vmem:[#allocation9 + $0x40] sm:$0xff]
    %v3368 = vld [vmem:[#allocation9 + $0x48] sm:$0xff]
    %v3369 = vld [vmem:[#allocation9 + $0x50] sm:$0xff]
    %v3370 = vld [vmem:[#allocation9 + $0x58] sm:$0xff]
    %v3371 = vld [vmem:[#allocation9 + $0x60] sm:$0xff]
    %v3372 = vld [vmem:[#allocation9 + $0x68] sm:$0xff]
    %v3373 = vld [vmem:[#allocation9 + $0x70] sm:$0xff]
    %v3374 = vld [vmem:[#allocation9 + $0x78] sm:$0xff]
    %v3375 = vld [vmem:[#allocation9 + $0x80] sm:$0xff]
    %v3376 = vld [vmem:[#allocation9 + $0x88] sm:$0xff]
    %v3377 = vld [vmem:[#allocation9 + $0x90] sm:$0xff]
    %v3378 = vld [vmem:[#allocation9 + $0x98] sm:$0xff]
    %v3379 = vld [vmem:[#allocation9 + $0xa0] sm:$0xff]
    %v3380 = vld [vmem:[#allocation9 + $0xa8] sm:$0xff]
    %v3381 = vld [vmem:[#allocation9 + $0xb0] sm:$0xff]
    %v3382 = vld [vmem:[#allocation9 + $0xb8] sm:$0xff]
    %v3383 = vld [vmem:[#allocation9 + $0xc0] sm:$0xff]
    %v3384 = vld [vmem:[#allocation9 + $0xc8] sm:$0xff]
    %v3385 = vld [vmem:[#allocation9 + $0xd0] sm:$0xff]
    %v3386 = vld [vmem:[#allocation9 + $0xd8] sm:$0xff]
    %v3387 = vld [vmem:[#allocation9 + $0xe0] sm:$0xff]
    %v3388 = vld [vmem:[#allocation9 + $0xe8] sm:$0xff]
    %v3389 = vld [vmem:[#allocation9 + $0xf0] sm:$0xff]
    %v3390 = vld [vmem:[#allocation9 + $0xf8] sm:$0xff]
    %v3391 = vld [vmem:[#allocation9 + $0x100] sm:$0xff]
    %v3392 = vld [vmem:[#allocation9 + $0x108] sm:$0xff]
    %v3393 = vld [vmem:[#allocation9 + $0x110] sm:$0xff]
    %v3394 = vld [vmem:[#allocation9 + $0x118] sm:$0xff]
    %v3395 = vld [vmem:[#allocation9 + $0x120] sm:$0xff]
    %v3396 = vld [vmem:[#allocation9 + $0x128] sm:$0xff]
    %v3397 = vld [vmem:[#allocation9 + $0x130] sm:$0xff]
    %v3398 = vld [vmem:[#allocation9 + $0x138] sm:$0xff]
    %v3399 = vld [vmem:[#allocation9 + $0x140] sm:$0xff]
    %v3400 = vld [vmem:[#allocation9 + $0x148] sm:$0xff]
    %v3401 = vld [vmem:[#allocation9 + $0x150] sm:$0xff]
    %v3402 = vld [vmem:[#allocation9 + $0x158] sm:$0xff]
    %v3403 = vld [vmem:[#allocation9 + $0x160] sm:$0xff]
    %v3404 = vld [vmem:[#allocation9 + $0x168] sm:$0xff]
    %v3405 = vld [vmem:[#allocation9 + $0x170] sm:$0xff]
    %v3406 = vld [vmem:[#allocation9 + $0x178] sm:$0xff]
    %3407 = vmatprep.subr.mxu0 %v3405
    %3408 = vmatpush1.msra.mxu0 %v3404
    %3409 = vmatprep.subr.mxu0 %v3402
    %3410 = vmatpush1.msra.mxu0 %v3401
    %3411 = vmatprep.subr.mxu0 %v3399
    %3412 = vmatpush1.msra.mxu0 %v3398
    %3413 = vmatprep.subr.mxu0 %v3396
    %3414 = vmatpush1.msra.mxu0 %v3395
    %3415 = vmatprep.subr.mxu0 %v3393
    %3416 = vmatpush1.msra.mxu0 %v3392
    %3417 = vmatprep.subr.mxu0 %v3390
    %3418 = vmatpush1.msra.mxu0 %v3389
    %3419 = vmatprep.subr.mxu0 %v3387
    %3420 = vmatpush1.msra.mxu0 %v3386
    %3421 = vmatprep.subr.mxu0 %v3384
    %3422 = vmatpush1.msra.mxu0 %v3383
    %3423 = vmatprep.subr.mxu0 %v3381
    %3424 = vmatpush1.msra.mxu0 %v3380
    %3425 = vmatprep.subr.mxu0 %v3378
    %3426 = vmatpush1.msra.mxu0 %v3377
    %3427 = vmatprep.subr.mxu0 %v3375
    %3428 = vmatpush1.msra.mxu0 %v3374
    %3429 = vmatprep.subr.mxu0 %v3372
    %3430 = vmatpush1.msra.mxu0 %v3371
    %3431 = vmatprep.subr.mxu0 %v3369
    %3432 = vmatpush1.msra.mxu0 %v3368
    %3433 = vmatprep.subr.mxu0 %v3366
    %3434 = vmatpush1.msra.mxu0 %v3365
    %3435 = vmatprep.subr.mxu0 %v3363
    %3436 = vmatpush1.msra.mxu0 %v3362
    %3437 = vmatprep.subr.mxu0 %v3360
    %3438 = vmatpush1.msra.mxu0 %v3359
    %3439 = vmatprep.subr.mxu0 0.0
    %3440 = vmatpush2.msra.mxu0 0.0
    %3441 = vmatprep.subr.mxu0 0.0
    %3442 = vmatpush2.msra.mxu0 0.0
    %3443 = vmatprep.subr.mxu0 0.0
    %3444 = vmatpush2.msra.mxu0 0.0
    %3445 = vmatprep.subr.mxu0 0.0
    %3446 = vmatpush2.msra.mxu0 0.0
    %3447 = vmatprep.subr.mxu0 0.0
    %3448 = vmatpush2.msra.mxu0 0.0
    %3449 = vmatprep.subr.mxu0 0.0
    %3450 = vmatpush2.msra.mxu0 0.0
    %3451 = vmatprep.subr.mxu0 0.0
    %3452 = vmatpush2.msra.mxu0 0.0
    %3453 = vmatprep.subr.mxu0 0.0
    %3454 = vmatpush2.msra.mxu0 0.0
    %3455 = vmatprep.subr.mxu0 0.0
    %3456 = vmatpush2.msra.mxu0 0.0
    %3457 = vmatprep.subr.mxu0 0.0
    %3458 = vmatpush2.msra.mxu0 0.0
    %3459 = vmatprep.subr.mxu0 0.0
    %3460 = vmatpush2.msra.mxu0 0.0
    %3461 = vmatprep.subr.mxu0 0.0
    %3462 = vmatpush2.msra.mxu0 0.0
    %3463 = vmatprep.subr.mxu0 0.0
    %3464 = vmatpush2.msra.mxu0 0.0
    %3465 = vmatprep.subr.mxu0 0.0
    %3466 = vmatpush2.msra.mxu0 0.0
    %3467 = vmatprep.subr.mxu0 0.0
    %3468 = vmatpush2.msra.mxu0 0.0
    %3469 = vmatprep.subr.mxu0 0.0
    %3470 = vmatpush2.msra.mxu0 0.0
    %3471 = vmatprep.mubr.f32.mxu0 0.0
    %3472 = vmatmul.mubr.f32.gmra.mxu0 %v3357
    %v3473 = vpop.f32.mrf.mxu0
    %v3474 = vadd.f32 0.0, %v3473
    %v3475 = vpop.f32.mrf.mxu0
    %v3476 = vadd.f32 0.0, %v3475
    %3477 = vdwg.mxu0
    %3478 = vmatprep.subr.mxu0 0.0
    %3479 = vmatpush1.msra.mxu0 %v3406
    %3480 = vmatprep.subr.mxu0 0.0
    %3481 = vmatpush1.msra.mxu0 %v3403
    %3482 = vmatprep.subr.mxu0 0.0
    %3483 = vmatpush1.msra.mxu0 %v3400
    %3484 = vmatprep.subr.mxu0 0.0
    %3485 = vmatpush1.msra.mxu0 %v3397
    %3486 = vmatprep.subr.mxu0 0.0
    %3487 = vmatpush1.msra.mxu0 %v3394
    %3488 = vmatprep.subr.mxu0 0.0
    %3489 = vmatpush1.msra.mxu0 %v3391
    %3490 = vmatprep.subr.mxu0 0.0
    %3491 = vmatpush1.msra.mxu0 %v3388
    %3492 = vmatprep.subr.mxu0 0.0
    %3493 = vmatpush1.msra.mxu0 %v3385
    %3494 = vmatprep.subr.mxu0 0.0
    %3495 = vmatpush1.msra.mxu0 %v3382
    %3496 = vmatprep.subr.mxu0 0.0
    %3497 = vmatpush1.msra.mxu0 %v3379
    %3498 = vmatprep.subr.mxu0 0.0
    %3499 = vmatpush1.msra.mxu0 %v3376
    %3500 = vmatprep.subr.mxu0 0.0
    %3501 = vmatpush1.msra.mxu0 %v3373
    %3502 = vmatprep.subr.mxu0 0.0
    %3503 = vmatpush1.msra.mxu0 %v3370
    %3504 = vmatprep.subr.mxu0 0.0
    %3505 = vmatpush1.msra.mxu0 %v3367
    %3506 = vmatprep.subr.mxu0 0.0
    %3507 = vmatpush1.msra.mxu0 %v3364
    %3508 = vmatprep.subr.mxu0 0.0
    %3509 = vmatpush1.msra.mxu0 %v3361
    %3510 = vmatprep.subr.mxu0 0.0
    %3511 = vmatpush2.msra.mxu0 0.0
    %3512 = vmatprep.subr.mxu0 0.0
    %3513 = vmatpush2.msra.mxu0 0.0
    %3514 = vmatprep.subr.mxu0 0.0
    %3515 = vmatpush2.msra.mxu0 0.0
    %3516 = vmatprep.subr.mxu0 0.0
    %3517 = vmatpush2.msra.mxu0 0.0
    %3518 = vmatprep.subr.mxu0 0.0
    %3519 = vmatpush2.msra.mxu0 0.0
    %3520 = vmatprep.subr.mxu0 0.0
    %3521 = vmatpush2.msra.mxu0 0.0
    %3522 = vmatprep.subr.mxu0 0.0
    %3523 = vmatpush2.msra.mxu0 0.0
    %3524 = vmatprep.subr.mxu0 0.0
    %3525 = vmatpush2.msra.mxu0 0.0
    %3526 = vmatprep.subr.mxu0 0.0
    %3527 = vmatpush2.msra.mxu0 0.0
    %3528 = vmatprep.subr.mxu0 0.0
    %3529 = vmatpush2.msra.mxu0 0.0
    %3530 = vmatprep.subr.mxu0 0.0
    %3531 = vmatpush2.msra.mxu0 0.0
    %3532 = vmatprep.subr.mxu0 0.0
    %3533 = vmatpush2.msra.mxu0 0.0
    %3534 = vmatprep.subr.mxu0 0.0
    %3535 = vmatpush2.msra.mxu0 0.0
    %3536 = vmatprep.subr.mxu0 0.0
    %3537 = vmatpush2.msra.mxu0 0.0
    %3538 = vmatprep.subr.mxu0 0.0
    %3539 = vmatpush2.msra.mxu0 0.0
    %3540 = vmatprep.subr.mxu0 0.0
    %3541 = vmatpush2.msra.mxu0 0.0
    %3542 = vmatprep.mubr.f32.mxu0 0.0
    %3543 = vmatmul.mubr.f32.gmra.mxu0 %v3357
    %v3544 = vpop.f32.mrf.mxu0
    %v3545 = vadd.f32 0.0, %v3544
    %v3546 = vpop.f32.mrf.mxu0
    %3547 = vdwg.mxu0
    %v3548 = vld [vmem:[%s1489] sm:$0xff]
    %v3549 = vld [vmem:[%s1489 + $0x8] sm:$0xff]
    %v3550 = vld [vmem:[%s1489 + $0x10] sm:$0xff]
    %v3551 = vadd.f32 %v3548, %v3474
    %v3552 = vxor.u32 %v3551, 2147483648
    %v3553 = vmul.f32 %v3552, 1.442695
    %v3554 = vpow.pop %v3553
    %v3555 = vadd.f32 %v3554, 1.0
    %v3556 = vrcp.pop %v3555
    %v3557 = vmul.f32 1.0, %v3556
    %v3558 = vadd.f32 %v3549, %v3476
    %v3559 = vxor.u32 %v3558, 2147483648
    %v3560 = vmul.f32 %v3559, 1.442695
    %v3561 = vpow.pop %v3560
    %v3562 = vadd.f32 %v3561, 1.0
    %v3563 = vrcp.pop %v3562
    %v3564 = vmul.f32 1.0, %v3563
    %v3565 = vadd.f32 %v3545, %v2703
    %v3566 = vmul.f32 %v3557, %v3565
    %v3567 = vadd.f32 %v3550, %v3566
    %v3568 = vtanh.pop %v3567
    %v3569 = vsub.f32 1.0, %v3564
    %v3570 = vmul.f32 %v3569, %v3568
    %v3571 = vmul.f32 %v3564, %v3357
    %v3572 = vadd.f32 %v3570, %v3571
    %3573 = vst [vmem:[%s1515] sm:$0xff] %v3572
    %v3574 = vld [vmem:[#allocation9] sm:$0xff]
    %v3575 = vld [vmem:[#allocation9 + $0x8] sm:$0xff]
    %v3576 = vld [vmem:[#allocation9 + $0x10] sm:$0xff]
    %v3577 = vld [vmem:[#allocation9 + $0x18] sm:$0xff]
    %v3578 = vld [vmem:[#allocation9 + $0x20] sm:$0xff]
    %v3579 = vld [vmem:[#allocation9 + $0x28] sm:$0xff]
    %v3580 = vld [vmem:[#allocation9 + $0x30] sm:$0xff]
    %v3581 = vld [vmem:[#allocation9 + $0x38] sm:$0xff]
    %v3582 = vld [vmem:[#allocation9 + $0x40] sm:$0xff]
    %v3583 = vld [vmem:[#allocation9 + $0x48] sm:$0xff]
    %v3584 = vld [vmem:[#allocation9 + $0x50] sm:$0xff]
    %v3585 = vld [vmem:[#allocation9 + $0x58] sm:$0xff]
    %v3586 = vld [vmem:[#allocation9 + $0x60] sm:$0xff]
    %v3587 = vld [vmem:[#allocation9 + $0x68] sm:$0xff]
    %v3588 = vld [vmem:[#allocation9 + $0x70] sm:$0xff]
    %v3589 = vld [vmem:[#allocation9 + $0x78] sm:$0xff]
    %v3590 = vld [vmem:[#allocation9 + $0x80] sm:$0xff]
    %v3591 = vld [vmem:[#allocation9 + $0x88] sm:$0xff]
    %v3592 = vld [vmem:[#allocation9 + $0x90] sm:$0xff]
    %v3593 = vld [vmem:[#allocation9 + $0x98] sm:$0xff]
    %v3594 = vld [vmem:[#allocation9 + $0xa0] sm:$0xff]
    %v3595 = vld [vmem:[#allocation9 + $0xa8] sm:$0xff]
    %v3596 = vld [vmem:[#allocation9 + $0xb0] sm:$0xff]
    %v3597 = vld [vmem:[#allocation9 + $0xb8] sm:$0xff]
    %v3598 = vld [vmem:[#allocation9 + $0xc0] sm:$0xff]
    %v3599 = vld [vmem:[#allocation9 + $0xc8] sm:$0xff]
    %v3600 = vld [vmem:[#allocation9 + $0xd0] sm:$0xff]
    %v3601 = vld [vmem:[#allocation9 + $0xd8] sm:$0xff]
    %v3602 = vld [vmem:[#allocation9 + $0xe0] sm:$0xff]
    %v3603 = vld [vmem:[#allocation9 + $0xe8] sm:$0xff]
    %v3604 = vld [vmem:[#allocation9 + $0xf0] sm:$0xff]
    %v3605 = vld [vmem:[#allocation9 + $0xf8] sm:$0xff]
    %v3606 = vld [vmem:[#allocation9 + $0x100] sm:$0xff]
    %v3607 = vld [vmem:[#allocation9 + $0x108] sm:$0xff]
    %v3608 = vld [vmem:[#allocation9 + $0x110] sm:$0xff]
    %v3609 = vld [vmem:[#allocation9 + $0x118] sm:$0xff]
    %v3610 = vld [vmem:[#allocation9 + $0x120] sm:$0xff]
    %v3611 = vld [vmem:[#allocation9 + $0x128] sm:$0xff]
    %v3612 = vld [vmem:[#allocation9 + $0x130] sm:$0xff]
    %v3613 = vld [vmem:[#allocation9 + $0x138] sm:$0xff]
    %v3614 = vld [vmem:[#allocation9 + $0x140] sm:$0xff]
    %v3615 = vld [vmem:[#allocation9 + $0x148] sm:$0xff]
    %v3616 = vld [vmem:[#allocation9 + $0x150] sm:$0xff]
    %v3617 = vld [vmem:[#allocation9 + $0x158] sm:$0xff]
    %v3618 = vld [vmem:[#allocation9 + $0x160] sm:$0xff]
    %v3619 = vld [vmem:[#allocation9 + $0x168] sm:$0xff]
    %v3620 = vld [vmem:[#allocation9 + $0x170] sm:$0xff]
    %v3621 = vld [vmem:[#allocation9 + $0x178] sm:$0xff]
    %3622 = vmatprep.subr.mxu0 %v3620
    %3623 = vmatpush1.msra.mxu0 %v3619
    %3624 = vmatprep.subr.mxu0 %v3617
    %3625 = vmatpush1.msra.mxu0 %v3616
    %3626 = vmatprep.subr.mxu0 %v3614
    %3627 = vmatpush1.msra.mxu0 %v3613
    %3628 = vmatprep.subr.mxu0 %v3611
    %3629 = vmatpush1.msra.mxu0 %v3610
    %3630 = vmatprep.subr.mxu0 %v3608
    %3631 = vmatpush1.msra.mxu0 %v3607
    %3632 = vmatprep.subr.mxu0 %v3605
    %3633 = vmatpush1.msra.mxu0 %v3604
    %3634 = vmatprep.subr.mxu0 %v3602
    %3635 = vmatpush1.msra.mxu0 %v3601
    %3636 = vmatprep.subr.mxu0 %v3599
    %3637 = vmatpush1.msra.mxu0 %v3598
    %3638 = vmatprep.subr.mxu0 %v3596
    %3639 = vmatpush1.msra.mxu0 %v3595
    %3640 = vmatprep.subr.mxu0 %v3593
    %3641 = vmatpush1.msra.mxu0 %v3592
    %3642 = vmatprep.subr.mxu0 %v3590
    %3643 = vmatpush1.msra.mxu0 %v3589
    %3644 = vmatprep.subr.mxu0 %v3587
    %3645 = vmatpush1.msra.mxu0 %v3586
    %3646 = vmatprep.subr.mxu0 %v3584
    %3647 = vmatpush1.msra.mxu0 %v3583
    %3648 = vmatprep.subr.mxu0 %v3581
    %3649 = vmatpush1.msra.mxu0 %v3580
    %3650 = vmatprep.subr.mxu0 %v3578
    %3651 = vmatpush1.msra.mxu0 %v3577
    %3652 = vmatprep.subr.mxu0 %v3575
    %3653 = vmatpush1.msra.mxu0 %v3574
    %3654 = vmatprep.subr.mxu0 0.0
    %3655 = vmatpush2.msra.mxu0 0.0
    %3656 = vmatprep.subr.mxu0 0.0
    %3657 = vmatpush2.msra.mxu0 0.0
    %3658 = vmatprep.subr.mxu0 0.0
    %3659 = vmatpush2.msra.mxu0 0.0
    %3660 = vmatprep.subr.mxu0 0.0
    %3661 = vmatpush2.msra.mxu0 0.0
    %3662 = vmatprep.subr.mxu0 0.0
    %3663 = vmatpush2.msra.mxu0 0.0
    %3664 = vmatprep.subr.mxu0 0.0
    %3665 = vmatpush2.msra.mxu0 0.0
    %3666 = vmatprep.subr.mxu0 0.0
    %3667 = vmatpush2.msra.mxu0 0.0
    %3668 = vmatprep.subr.mxu0 0.0
    %3669 = vmatpush2.msra.mxu0 0.0
    %3670 = vmatprep.subr.mxu0 0.0
    %3671 = vmatpush2.msra.mxu0 0.0
    %3672 = vmatprep.subr.mxu0 0.0
    %3673 = vmatpush2.msra.mxu0 0.0
    %3674 = vmatprep.subr.mxu0 0.0
    %3675 = vmatpush2.msra.mxu0 0.0
    %3676 = vmatprep.subr.mxu0 0.0
    %3677 = vmatpush2.msra.mxu0 0.0
    %3678 = vmatprep.subr.mxu0 0.0
    %3679 = vmatpush2.msra.mxu0 0.0
    %3680 = vmatprep.subr.mxu0 0.0
    %3681 = vmatpush2.msra.mxu0 0.0
    %3682 = vmatprep.subr.mxu0 0.0
    %3683 = vmatpush2.msra.mxu0 0.0
    %3684 = vmatprep.subr.mxu0 0.0
    %3685 = vmatpush2.msra.mxu0 0.0
    %3686 = vmatprep.mubr.f32.mxu0 0.0
    %3687 = vmatmul.mubr.f32.gmra.mxu0 %v3572
    %v3688 = vpop.f32.mrf.mxu0
    %v3689 = vadd.f32 0.0, %v3688
    %v3690 = vpop.f32.mrf.mxu0
    %v3691 = vadd.f32 0.0, %v3690
    %3692 = vdwg.mxu0
    %3693 = vmatprep.subr.mxu0 0.0
    %3694 = vmatpush1.msra.mxu0 %v3621
    %3695 = vmatprep.subr.mxu0 0.0
    %3696 = vmatpush1.msra.mxu0 %v3618
    %3697 = vmatprep.subr.mxu0 0.0
    %3698 = vmatpush1.msra.mxu0 %v3615
    %3699 = vmatprep.subr.mxu0 0.0
    %3700 = vmatpush1.msra.mxu0 %v3612
    %3701 = vmatprep.subr.mxu0 0.0
    %3702 = vmatpush1.msra.mxu0 %v3609
    %3703 = vmatprep.subr.mxu0 0.0
    %3704 = vmatpush1.msra.mxu0 %v3606
    %3705 = vmatprep.subr.mxu0 0.0
    %3706 = vmatpush1.msra.mxu0 %v3603
    %3707 = vmatprep.subr.mxu0 0.0
    %3708 = vmatpush1.msra.mxu0 %v3600
    %3709 = vmatprep.subr.mxu0 0.0
    %3710 = vmatpush1.msra.mxu0 %v3597
    %3711 = vmatprep.subr.mxu0 0.0
    %3712 = vmatpush1.msra.mxu0 %v3594
    %3713 = vmatprep.subr.mxu0 0.0
    %3714 = vmatpush1.msra.mxu0 %v3591
    %3715 = vmatprep.subr.mxu0 0.0
    %3716 = vmatpush1.msra.mxu0 %v3588
    %3717 = vmatprep.subr.mxu0 0.0
    %3718 = vmatpush1.msra.mxu0 %v3585
    %3719 = vmatprep.subr.mxu0 0.0
    %3720 = vmatpush1.msra.mxu0 %v3582
    %3721 = vmatprep.subr.mxu0 0.0
    %3722 = vmatpush1.msra.mxu0 %v3579
    %3723 = vmatprep.subr.mxu0 0.0
    %3724 = vmatpush1.msra.mxu0 %v3576
    %3725 = vmatprep.subr.mxu0 0.0
    %3726 = vmatpush2.msra.mxu0 0.0
    %3727 = vmatprep.subr.mxu0 0.0
    %3728 = vmatpush2.msra.mxu0 0.0
    %3729 = vmatprep.subr.mxu0 0.0
    %3730 = vmatpush2.msra.mxu0 0.0
    %3731 = vmatprep.subr.mxu0 0.0
    %3732 = vmatpush2.msra.mxu0 0.0
    %3733 = vmatprep.subr.mxu0 0.0
    %3734 = vmatpush2.msra.mxu0 0.0
    %3735 = vmatprep.subr.mxu0 0.0
    %3736 = vmatpush2.msra.mxu0 0.0
    %3737 = vmatprep.subr.mxu0 0.0
    %3738 = vmatpush2.msra.mxu0 0.0
    %3739 = vmatprep.subr.mxu0 0.0
    %3740 = vmatpush2.msra.mxu0 0.0
    %3741 = vmatprep.subr.mxu0 0.0
    %3742 = vmatpush2.msra.mxu0 0.0
    %3743 = vmatprep.subr.mxu0 0.0
    %3744 = vmatpush2.msra.mxu0 0.0
    %3745 = vmatprep.subr.mxu0 0.0
    %3746 = vmatpush2.msra.mxu0 0.0
    %3747 = vmatprep.subr.mxu0 0.0
    %3748 = vmatpush2.msra.mxu0 0.0
    %3749 = vmatprep.subr.mxu0 0.0
    %3750 = vmatpush2.msra.mxu0 0.0
    %3751 = vmatprep.subr.mxu0 0.0
    %3752 = vmatpush2.msra.mxu0 0.0
    %3753 = vmatprep.subr.mxu0 0.0
    %3754 = vmatpush2.msra.mxu0 0.0
    %3755 = vmatprep.subr.mxu0 0.0
    %3756 = vmatpush2.msra.mxu0 0.0
    %3757 = vmatprep.mubr.f32.mxu0 0.0
    %3758 = vmatmul.mubr.f32.gmra.mxu0 %v3572
    %v3759 = vpop.f32.mrf.mxu0
    %v3760 = vadd.f32 0.0, %v3759
    %v3761 = vpop.f32.mrf.mxu0
    %3762 = vdwg.mxu0
    %v3763 = vld [vmem:[%s1708] sm:$0xff]
    %v3764 = vld [vmem:[%s1708 + $0x8] sm:$0xff]
    %v3765 = vld [vmem:[%s1708 + $0x10] sm:$0xff]
    %v3766 = vadd.f32 %v3763, %v3689
    %v3767 = vxor.u32 %v3766, 2147483648
    %v3768 = vmul.f32 %v3767, 1.442695
    %v3769 = vpow.pop %v3768
    %v3770 = vadd.f32 %v3769, 1.0
    %v3771 = vrcp.pop %v3770
    %v3772 = vmul.f32 1.0, %v3771
    %v3773 = vadd.f32 %v3764, %v3691
    %v3774 = vxor.u32 %v3773, 2147483648
    %v3775 = vmul.f32 %v3774, 1.442695
    %v3776 = vpow.pop %v3775
    %v3777 = vadd.f32 %v3776, 1.0
    %v3778 = vrcp.pop %v3777
    %v3779 = vmul.f32 1.0, %v3778
    %v3780 = vadd.f32 %v3760, %v2703
    %v3781 = vmul.f32 %v3772, %v3780
    %v3782 = vadd.f32 %v3765, %v3781
    %v3783 = vtanh.pop %v3782
    %v3784 = vsub.f32 1.0, %v3779
    %v3785 = vmul.f32 %v3784, %v3783
    %v3786 = vmul.f32 %v3779, %v3572
    %v3787 = vadd.f32 %v3785, %v3786
    %3788 = vst [vmem:[%s1734] sm:$0xff] %v3787
    %v3789 = vld [vmem:[#allocation9] sm:$0xff]
    %v3790 = vld [vmem:[#allocation9 + $0x8] sm:$0xff]
    %v3791 = vld [vmem:[#allocation9 + $0x10] sm:$0xff]
    %v3792 = vld [vmem:[#allocation9 + $0x18] sm:$0xff]
    %v3793 = vld [vmem:[#allocation9 + $0x20] sm:$0xff]
    %v3794 = vld [vmem:[#allocation9 + $0x28] sm:$0xff]
    %v3795 = vld [vmem:[#allocation9 + $0x30] sm:$0xff]
    %v3796 = vld [vmem:[#allocation9 + $0x38] sm:$0xff]
    %v3797 = vld [vmem:[#allocation9 + $0x40] sm:$0xff]
    %v3798 = vld [vmem:[#allocation9 + $0x48] sm:$0xff]
    %v3799 = vld [vmem:[#allocation9 + $0x50] sm:$0xff]
    %v3800 = vld [vmem:[#allocation9 + $0x58] sm:$0xff]
    %v3801 = vld [vmem:[#allocation9 + $0x60] sm:$0xff]
    %v3802 = vld [vmem:[#allocation9 + $0x68] sm:$0xff]
    %v3803 = vld [vmem:[#allocation9 + $0x70] sm:$0xff]
    %v3804 = vld [vmem:[#allocation9 + $0x78] sm:$0xff]
    %v3805 = vld [vmem:[#allocation9 + $0x80] sm:$0xff]
    %v3806 = vld [vmem:[#allocation9 + $0x88] sm:$0xff]
    %v3807 = vld [vmem:[#allocation9 + $0x90] sm:$0xff]
    %v3808 = vld [vmem:[#allocation9 + $0x98] sm:$0xff]
    %v3809 = vld [vmem:[#allocation9 + $0xa0] sm:$0xff]
    %v3810 = vld [vmem:[#allocation9 + $0xa8] sm:$0xff]
    %v3811 = vld [vmem:[#allocation9 + $0xb0] sm:$0xff]
    %v3812 = vld [vmem:[#allocation9 + $0xb8] sm:$0xff]
    %v3813 = vld [vmem:[#allocation9 + $0xc0] sm:$0xff]
    %v3814 = vld [vmem:[#allocation9 + $0xc8] sm:$0xff]
    %v3815 = vld [vmem:[#allocation9 + $0xd0] sm:$0xff]
    %v3816 = vld [vmem:[#allocation9 + $0xd8] sm:$0xff]
    %v3817 = vld [vmem:[#allocation9 + $0xe0] sm:$0xff]
    %v3818 = vld [vmem:[#allocation9 + $0xe8] sm:$0xff]
    %v3819 = vld [vmem:[#allocation9 + $0xf0] sm:$0xff]
    %v3820 = vld [vmem:[#allocation9 + $0xf8] sm:$0xff]
    %v3821 = vld [vmem:[#allocation9 + $0x100] sm:$0xff]
    %v3822 = vld [vmem:[#allocation9 + $0x108] sm:$0xff]
    %v3823 = vld [vmem:[#allocation9 + $0x110] sm:$0xff]
    %v3824 = vld [vmem:[#allocation9 + $0x118] sm:$0xff]
    %v3825 = vld [vmem:[#allocation9 + $0x120] sm:$0xff]
    %v3826 = vld [vmem:[#allocation9 + $0x128] sm:$0xff]
    %v3827 = vld [vmem:[#allocation9 + $0x130] sm:$0xff]
    %v3828 = vld [vmem:[#allocation9 + $0x138] sm:$0xff]
    %v3829 = vld [vmem:[#allocation9 + $0x140] sm:$0xff]
    %v3830 = vld [vmem:[#allocation9 + $0x148] sm:$0xff]
    %v3831 = vld [vmem:[#allocation9 + $0x150] sm:$0xff]
    %v3832 = vld [vmem:[#allocation9 + $0x158] sm:$0xff]
    %v3833 = vld [vmem:[#allocation9 + $0x160] sm:$0xff]
    %v3834 = vld [vmem:[#allocation9 + $0x168] sm:$0xff]
    %v3835 = vld [vmem:[#allocation9 + $0x170] sm:$0xff]
    %v3836 = vld [vmem:[#allocation9 + $0x178] sm:$0xff]
    %3837 = vmatprep.subr.mxu0 %v3835
    %3838 = vmatpush1.msra.mxu0 %v3834
    %3839 = vmatprep.subr.mxu0 %v3832
    %3840 = vmatpush1.msra.mxu0 %v3831
    %3841 = vmatprep.subr.mxu0 %v3829
    %3842 = vmatpush1.msra.mxu0 %v3828
    %3843 = vmatprep.subr.mxu0 %v3826
    %3844 = vmatpush1.msra.mxu0 %v3825
    %3845 = vmatprep.subr.mxu0 %v3823
    %3846 = vmatpush1.msra.mxu0 %v3822
    %3847 = vmatprep.subr.mxu0 %v3820
    %3848 = vmatpush1.msra.mxu0 %v3819
    %3849 = vmatprep.subr.mxu0 %v3817
    %3850 = vmatpush1.msra.mxu0 %v3816
    %3851 = vmatprep.subr.mxu0 %v3814
    %3852 = vmatpush1.msra.mxu0 %v3813
    %3853 = vmatprep.subr.mxu0 %v3811
    %3854 = vmatpush1.msra.mxu0 %v3810
    %3855 = vmatprep.subr.mxu0 %v3808
    %3856 = vmatpush1.msra.mxu0 %v3807
    %3857 = vmatprep.subr.mxu0 %v3805
    %3858 = vmatpush1.msra.mxu0 %v3804
    %3859 = vmatprep.subr.mxu0 %v3802
    %3860 = vmatpush1.msra.mxu0 %v3801
    %3861 = vmatprep.subr.mxu0 %v3799
    %3862 = vmatpush1.msra.mxu0 %v3798
    %3863 = vmatprep.subr.mxu0 %v3796
    %3864 = vmatpush1.msra.mxu0 %v3795
    %3865 = vmatprep.subr.mxu0 %v3793
    %3866 = vmatpush1.msra.mxu0 %v3792
    %3867 = vmatprep.subr.mxu0 %v3790
    %3868 = vmatpush1.msra.mxu0 %v3789
    %3869 = vmatprep.subr.mxu0 0.0
    %3870 = vmatpush2.msra.mxu0 0.0
    %3871 = vmatprep.subr.mxu0 0.0
    %3872 = vmatpush2.msra.mxu0 0.0
    %3873 = vmatprep.subr.mxu0 0.0
    %3874 = vmatpush2.msra.mxu0 0.0
    %3875 = vmatprep.subr.mxu0 0.0
    %3876 = vmatpush2.msra.mxu0 0.0
    %3877 = vmatprep.subr.mxu0 0.0
    %3878 = vmatpush2.msra.mxu0 0.0
    %3879 = vmatprep.subr.mxu0 0.0
    %3880 = vmatpush2.msra.mxu0 0.0
    %3881 = vmatprep.subr.mxu0 0.0
    %3882 = vmatpush2.msra.mxu0 0.0
    %3883 = vmatprep.subr.mxu0 0.0
    %3884 = vmatpush2.msra.mxu0 0.0
    %3885 = vmatprep.subr.mxu0 0.0
    %3886 = vmatpush2.msra.mxu0 0.0
    %3887 = vmatprep.subr.mxu0 0.0
    %3888 = vmatpush2.msra.mxu0 0.0
    %3889 = vmatprep.subr.mxu0 0.0
    %3890 = vmatpush2.msra.mxu0 0.0
    %3891 = vmatprep.subr.mxu0 0.0
    %3892 = vmatpush2.msra.mxu0 0.0
    %3893 = vmatprep.subr.mxu0 0.0
    %3894 = vmatpush2.msra.mxu0 0.0
    %3895 = vmatprep.subr.mxu0 0.0
    %3896 = vmatpush2.msra.mxu0 0.0
    %3897 = vmatprep.subr.mxu0 0.0
    %3898 = vmatpush2.msra.mxu0 0.0
    %3899 = vmatprep.subr.mxu0 0.0
    %3900 = vmatpush2.msra.mxu0 0.0
    %3901 = vmatprep.mubr.f32.mxu0 0.0
    %3902 = vmatmul.mubr.f32.gmra.mxu0 %v3787
    %v3903 = vpop.f32.mrf.mxu0
    %v3904 = vadd.f32 0.0, %v3903
    %v3905 = vpop.f32.mrf.mxu0
    %v3906 = vadd.f32 0.0, %v3905
    %3907 = vdwg.mxu0
    %3908 = vmatprep.subr.mxu0 0.0
    %3909 = vmatpush1.msra.mxu0 %v3836
    %3910 = vmatprep.subr.mxu0 0.0
    %3911 = vmatpush1.msra.mxu0 %v3833
    %3912 = vmatprep.subr.mxu0 0.0
    %3913 = vmatpush1.msra.mxu0 %v3830
    %3914 = vmatprep.subr.mxu0 0.0
    %3915 = vmatpush1.msra.mxu0 %v3827
    %3916 = vmatprep.subr.mxu0 0.0
    %3917 = vmatpush1.msra.mxu0 %v3824
    %3918 = vmatprep.subr.mxu0 0.0
    %3919 = vmatpush1.msra.mxu0 %v3821
    %3920 = vmatprep.subr.mxu0 0.0
    %3921 = vmatpush1.msra.mxu0 %v3818
    %3922 = vmatprep.subr.mxu0 0.0
    %3923 = vmatpush1.msra.mxu0 %v3815
    %3924 = vmatprep.subr.mxu0 0.0
    %3925 = vmatpush1.msra.mxu0 %v3812
    %3926 = vmatprep.subr.mxu0 0.0
    %3927 = vmatpush1.msra.mxu0 %v3809
    %3928 = vmatprep.subr.mxu0 0.0
    %3929 = vmatpush1.msra.mxu0 %v3806
    %3930 = vmatprep.subr.mxu0 0.0
    %3931 = vmatpush1.msra.mxu0 %v3803
    %3932 = vmatprep.subr.mxu0 0.0
    %3933 = vmatpush1.msra.mxu0 %v3800
    %3934 = vmatprep.subr.mxu0 0.0
    %3935 = vmatpush1.msra.mxu0 %v3797
    %3936 = vmatprep.subr.mxu0 0.0
    %3937 = vmatpush1.msra.mxu0 %v3794
    %3938 = vmatprep.subr.mxu0 0.0
    %3939 = vmatpush1.msra.mxu0 %v3791
    %3940 = vmatprep.subr.mxu0 0.0
    %3941 = vmatpush2.msra.mxu0 0.0
    %3942 = vmatprep.subr.mxu0 0.0
    %3943 = vmatpush2.msra.mxu0 0.0
    %3944 = vmatprep.subr.mxu0 0.0
    %3945 = vmatpush2.msra.mxu0 0.0
    %3946 = vmatprep.subr.mxu0 0.0
    %3947 = vmatpush2.msra.mxu0 0.0
    %3948 = vmatprep.subr.mxu0 0.0
    %3949 = vmatpush2.msra.mxu0 0.0
    %3950 = vmatprep.subr.mxu0 0.0
    %3951 = vmatpush2.msra.mxu0 0.0
    %3952 = vmatprep.subr.mxu0 0.0
    %3953 = vmatpush2.msra.mxu0 0.0
    %3954 = vmatprep.subr.mxu0 0.0
    %3955 = vmatpush2.msra.mxu0 0.0
    %3956 = vmatprep.subr.mxu0 0.0
    %3957 = vmatpush2.msra.mxu0 0.0
    %3958 = vmatprep.subr.mxu0 0.0
    %3959 = vmatpush2.msra.mxu0 0.0
    %3960 = vmatprep.subr.mxu0 0.0
    %3961 = vmatpush2.msra.mxu0 0.0
    %3962 = vmatprep.subr.mxu0 0.0
    %3963 = vmatpush2.msra.mxu0 0.0
    %3964 = vmatprep.subr.mxu0 0.0
    %3965 = vmatpush2.msra.mxu0 0.0
    %3966 = vmatprep.subr.mxu0 0.0
    %3967 = vmatpush2.msra.mxu0 0.0
    %3968 = vmatprep.subr.mxu0 0.0
    %3969 = vmatpush2.msra.mxu0 0.0
    %3970 = vmatprep.subr.mxu0 0.0
    %3971 = vmatpush2.msra.mxu0 0.0
    %3972 = vmatprep.mubr.f32.mxu0 0.0
    %3973 = vmatmul.mubr.f32.gmra.mxu0 %v3787
    %v3974 = vpop.f32.mrf.mxu0
    %v3975 = vadd.f32 0.0, %v3974
    %v3976 = vpop.f32.mrf.mxu0
    %3977 = vdwg.mxu0
    %v3978 = vld [vmem:[%s1927] sm:$0xff]
    %v3979 = vld [vmem:[%s1927 + $0x8] sm:$0xff]
    %v3980 = vld [vmem:[%s1927 + $0x10] sm:$0xff]
    %v3981 = vadd.f32 %v3978, %v3904
    %v3982 = vxor.u32 %v3981, 2147483648
    %v3983 = vmul.f32 %v3982, 1.442695
    %v3984 = vpow.pop %v3983
    %v3985 = vadd.f32 %v3984, 1.0
    %v3986 = vrcp.pop %v3985
    %v3987 = vmul.f32 1.0, %v3986
    %v3988 = vadd.f32 %v3979, %v3906
    %v3989 = vxor.u32 %v3988, 2147483648
    %v3990 = vmul.f32 %v3989, 1.442695
    %v3991 = vpow.pop %v3990
    %v3992 = vadd.f32 %v3991, 1.0
    %v3993 = vrcp.pop %v3992
    %v3994 = vmul.f32 1.0, %v3993
    %v3995 = vadd.f32 %v3975, %v2703
    %v3996 = vmul.f32 %v3987, %v3995
    %v3997 = vadd.f32 %v3980, %v3996
    %v3998 = vtanh.pop %v3997
    %v3999 = vsub.f32 1.0, %v3994
    %v4000 = vmul.f32 %v3999, %v3998
    %v4001 = vmul.f32 %v3994, %v3787
    %v4002 = vadd.f32 %v4000, %v4001
    %4003 = vst [vmem:[%s1953] sm:$0xff] %v4002
    %v4004 = vld [vmem:[#allocation9] sm:$0xff]
    %v4005 = vld [vmem:[#allocation9 + $0x8] sm:$0xff]
    %v4006 = vld [vmem:[#allocation9 + $0x10] sm:$0xff]
    %v4007 = vld [vmem:[#allocation9 + $0x18] sm:$0xff]
    %v4008 = vld [vmem:[#allocation9 + $0x20] sm:$0xff]
    %v4009 = vld [vmem:[#allocation9 + $0x28] sm:$0xff]
    %v4010 = vld [vmem:[#allocation9 + $0x30] sm:$0xff]
    %v4011 = vld [vmem:[#allocation9 + $0x38] sm:$0xff]
    %v4012 = vld [vmem:[#allocation9 + $0x40] sm:$0xff]
    %v4013 = vld [vmem:[#allocation9 + $0x48] sm:$0xff]
    %v4014 = vld [vmem:[#allocation9 + $0x50] sm:$0xff]
    %v4015 = vld [vmem:[#allocation9 + $0x58] sm:$0xff]
    %v4016 = vld [vmem:[#allocation9 + $0x60] sm:$0xff]
    %v4017 = vld [vmem:[#allocation9 + $0x68] sm:$0xff]
    %v4018 = vld [vmem:[#allocation9 + $0x70] sm:$0xff]
    %v4019 = vld [vmem:[#allocation9 + $0x78] sm:$0xff]
    %v4020 = vld [vmem:[#allocation9 + $0x80] sm:$0xff]
    %v4021 = vld [vmem:[#allocation9 + $0x88] sm:$0xff]
    %v4022 = vld [vmem:[#allocation9 + $0x90] sm:$0xff]
    %v4023 = vld [vmem:[#allocation9 + $0x98] sm:$0xff]
    %v4024 = vld [vmem:[#allocation9 + $0xa0] sm:$0xff]
    %v4025 = vld [vmem:[#allocation9 + $0xa8] sm:$0xff]
    %v4026 = vld [vmem:[#allocation9 + $0xb0] sm:$0xff]
    %v4027 = vld [vmem:[#allocation9 + $0xb8] sm:$0xff]
    %v4028 = vld [vmem:[#allocation9 + $0xc0] sm:$0xff]
    %v4029 = vld [vmem:[#allocation9 + $0xc8] sm:$0xff]
    %v4030 = vld [vmem:[#allocation9 + $0xd0] sm:$0xff]
    %v4031 = vld [vmem:[#allocation9 + $0xd8] sm:$0xff]
    %v4032 = vld [vmem:[#allocation9 + $0xe0] sm:$0xff]
    %v4033 = vld [vmem:[#allocation9 + $0xe8] sm:$0xff]
    %v4034 = vld [vmem:[#allocation9 + $0xf0] sm:$0xff]
    %v4035 = vld [vmem:[#allocation9 + $0xf8] sm:$0xff]
    %v4036 = vld [vmem:[#allocation9 + $0x100] sm:$0xff]
    %v4037 = vld [vmem:[#allocation9 + $0x108] sm:$0xff]
    %v4038 = vld [vmem:[#allocation9 + $0x110] sm:$0xff]
    %v4039 = vld [vmem:[#allocation9 + $0x118] sm:$0xff]
    %v4040 = vld [vmem:[#allocation9 + $0x120] sm:$0xff]
    %v4041 = vld [vmem:[#allocation9 + $0x128] sm:$0xff]
    %v4042 = vld [vmem:[#allocation9 + $0x130] sm:$0xff]
    %v4043 = vld [vmem:[#allocation9 + $0x138] sm:$0xff]
    %v4044 = vld [vmem:[#allocation9 + $0x140] sm:$0xff]
    %v4045 = vld [vmem:[#allocation9 + $0x148] sm:$0xff]
    %v4046 = vld [vmem:[#allocation9 + $0x150] sm:$0xff]
    %v4047 = vld [vmem:[#allocation9 + $0x158] sm:$0xff]
    %v4048 = vld [vmem:[#allocation9 + $0x160] sm:$0xff]
    %v4049 = vld [vmem:[#allocation9 + $0x168] sm:$0xff]
    %v4050 = vld [vmem:[#allocation9 + $0x170] sm:$0xff]
    %v4051 = vld [vmem:[#allocation9 + $0x178] sm:$0xff]
    %4052 = vmatprep.subr.mxu0 %v4050
    %4053 = vmatpush1.msra.mxu0 %v4049
    %4054 = vmatprep.subr.mxu0 %v4047
    %4055 = vmatpush1.msra.mxu0 %v4046
    %4056 = vmatprep.subr.mxu0 %v4044
    %4057 = vmatpush1.msra.mxu0 %v4043
    %4058 = vmatprep.subr.mxu0 %v4041
    %4059 = vmatpush1.msra.mxu0 %v4040
    %4060 = vmatprep.subr.mxu0 %v4038
    %4061 = vmatpush1.msra.mxu0 %v4037
    %4062 = vmatprep.subr.mxu0 %v4035
    %4063 = vmatpush1.msra.mxu0 %v4034
    %4064 = vmatprep.subr.mxu0 %v4032
    %4065 = vmatpush1.msra.mxu0 %v4031
    %4066 = vmatprep.subr.mxu0 %v4029
    %4067 = vmatpush1.msra.mxu0 %v4028
    %4068 = vmatprep.subr.mxu0 %v4026
    %4069 = vmatpush1.msra.mxu0 %v4025
    %4070 = vmatprep.subr.mxu0 %v4023
    %4071 = vmatpush1.msra.mxu0 %v4022
    %4072 = vmatprep.subr.mxu0 %v4020
    %4073 = vmatpush1.msra.mxu0 %v4019
    %4074 = vmatprep.subr.mxu0 %v4017
    %4075 = vmatpush1.msra.mxu0 %v4016
    %4076 = vmatprep.subr.mxu0 %v4014
    %4077 = vmatpush1.msra.mxu0 %v4013
    %4078 = vmatprep.subr.mxu0 %v4011
    %4079 = vmatpush1.msra.mxu0 %v4010
    %4080 = vmatprep.subr.mxu0 %v4008
    %4081 = vmatpush1.msra.mxu0 %v4007
    %4082 = vmatprep.subr.mxu0 %v4005
    %4083 = vmatpush1.msra.mxu0 %v4004
    %4084 = vmatprep.subr.mxu0 0.0
    %4085 = vmatpush2.msra.mxu0 0.0
    %4086 = vmatprep.subr.mxu0 0.0
    %4087 = vmatpush2.msra.mxu0 0.0
    %4088 = vmatprep.subr.mxu0 0.0
    %4089 = vmatpush2.msra.mxu0 0.0
    %4090 = vmatprep.subr.mxu0 0.0
    %4091 = vmatpush2.msra.mxu0 0.0
    %4092 = vmatprep.subr.mxu0 0.0
    %4093 = vmatpush2.msra.mxu0 0.0
    %4094 = vmatprep.subr.mxu0 0.0
    %4095 = vmatpush2.msra.mxu0 0.0
    %4096 = vmatprep.subr.mxu0 0.0
    %4097 = vmatpush2.msra.mxu0 0.0
    %4098 = vmatprep.subr.mxu0 0.0
    %4099 = vmatpush2.msra.mxu0 0.0
    %4100 = vmatprep.subr.mxu0 0.0
    %4101 = vmatpush2.msra.mxu0 0.0
    %4102 = vmatprep.subr.mxu0 0.0
    %4103 = vmatpush2.msra.mxu0 0.0
    %4104 = vmatprep.subr.mxu0 0.0
    %4105 = vmatpush2.msra.mxu0 0.0
    %4106 = vmatprep.subr.mxu0 0.0
    %4107 = vmatpush2.msra.mxu0 0.0
    %4108 = vmatprep.subr.mxu0 0.0
    %4109 = vmatpush2.msra.mxu0 0.0
    %4110 = vmatprep.subr.mxu0 0.0
    %4111 = vmatpush2.msra.mxu0 0.0
    %4112 = vmatprep.subr.mxu0 0.0
    %4113 = vmatpush2.msra.mxu0 0.0
    %4114 = vmatprep.subr.mxu0 0.0
    %4115 = vmatpush2.msra.mxu0 0.0
    %4116 = vmatprep.mubr.f32.mxu0 0.0
    %4117 = vmatmul.mubr.f32.gmra.mxu0 %v4002
    %v4118 = vpop.f32.mrf.mxu0
    %v4119 = vadd.f32 0.0, %v4118
    %v4120 = vpop.f32.mrf.mxu0
    %v4121 = vadd.f32 0.0, %v4120
    %4122 = vdwg.mxu0
    %4123 = vmatprep.subr.mxu0 0.0
    %4124 = vmatpush1.msra.mxu0 %v4051
    %4125 = vmatprep.subr.mxu0 0.0
    %4126 = vmatpush1.msra.mxu0 %v4048
    %4127 = vmatprep.subr.mxu0 0.0
    %4128 = vmatpush1.msra.mxu0 %v4045
    %4129 = vmatprep.subr.mxu0 0.0
    %4130 = vmatpush1.msra.mxu0 %v4042
    %4131 = vmatprep.subr.mxu0 0.0
    %4132 = vmatpush1.msra.mxu0 %v4039
    %4133 = vmatprep.subr.mxu0 0.0
    %4134 = vmatpush1.msra.mxu0 %v4036
    %4135 = vmatprep.subr.mxu0 0.0
    %4136 = vmatpush1.msra.mxu0 %v4033
    %4137 = vmatprep.subr.mxu0 0.0
    %4138 = vmatpush1.msra.mxu0 %v4030
    %4139 = vmatprep.subr.mxu0 0.0
    %4140 = vmatpush1.msra.mxu0 %v4027
    %4141 = vmatprep.subr.mxu0 0.0
    %4142 = vmatpush1.msra.mxu0 %v4024
    %4143 = vmatprep.subr.mxu0 0.0
    %4144 = vmatpush1.msra.mxu0 %v4021
    %4145 = vmatprep.subr.mxu0 0.0
    %4146 = vmatpush1.msra.mxu0 %v4018
    %4147 = vmatprep.subr.mxu0 0.0
    %4148 = vmatpush1.msra.mxu0 %v4015
    %4149 = vmatprep.subr.mxu0 0.0
    %4150 = vmatpush1.msra.mxu0 %v4012
    %4151 = vmatprep.subr.mxu0 0.0
    %4152 = vmatpush1.msra.mxu0 %v4009
    %4153 = vmatprep.subr.mxu0 0.0
    %4154 = vmatpush1.msra.mxu0 %v4006
    %4155 = vmatprep.subr.mxu0 0.0
    %4156 = vmatpush2.msra.mxu0 0.0
    %4157 = vmatprep.subr.mxu0 0.0
    %4158 = vmatpush2.msra.mxu0 0.0
    %4159 = vmatprep.subr.mxu0 0.0
    %4160 = vmatpush2.msra.mxu0 0.0
    %4161 = vmatprep.subr.mxu0 0.0
    %4162 = vmatpush2.msra.mxu0 0.0
    %4163 = vmatprep.subr.mxu0 0.0
    %4164 = vmatpush2.msra.mxu0 0.0
    %4165 = vmatprep.subr.mxu0 0.0
    %4166 = vmatpush2.msra.mxu0 0.0
    %4167 = vmatprep.subr.mxu0 0.0
    %4168 = vmatpush2.msra.mxu0 0.0
    %4169 = vmatprep.subr.mxu0 0.0
    %4170 = vmatpush2.msra.mxu0 0.0
    %4171 = vmatprep.subr.mxu0 0.0
    %4172 = vmatpush2.msra.mxu0 0.0
    %4173 = vmatprep.subr.mxu0 0.0
    %4174 = vmatpush2.msra.mxu0 0.0
    %4175 = vmatprep.subr.mxu0 0.0
    %4176 = vmatpush2.msra.mxu0 0.0
    %4177 = vmatprep.subr.mxu0 0.0
    %4178 = vmatpush2.msra.mxu0 0.0
    %4179 = vmatprep.subr.mxu0 0.0
    %4180 = vmatpush2.msra.mxu0 0.0
    %4181 = vmatprep.subr.mxu0 0.0
    %4182 = vmatpush2.msra.mxu0 0.0
    %4183 = vmatprep.subr.mxu0 0.0
    %4184 = vmatpush2.msra.mxu0 0.0
    %4185 = vmatprep.subr.mxu0 0.0
    %4186 = vmatpush2.msra.mxu0 0.0
    %4187 = vmatprep.mubr.f32.mxu0 0.0
    %4188 = vmatmul.mubr.f32.gmra.mxu0 %v4002
    %v4189 = vpop.f32.mrf.mxu0
    %v4190 = vadd.f32 0.0, %v4189
    %v4191 = vpop.f32.mrf.mxu0
    %4192 = vdwg.mxu0
    %v4193 = vld [vmem:[%s2146] sm:$0xff]
    %v4194 = vld [vmem:[%s2146 + $0x8] sm:$0xff]
    %v4195 = vld [vmem:[%s2146 + $0x10] sm:$0xff]
    %v4196 = vadd.f32 %v4193, %v4119
    %v4197 = vxor.u32 %v4196, 2147483648
    %v4198 = vmul.f32 %v4197, 1.442695
    %v4199 = vpow.pop %v4198
    %v4200 = vadd.f32 %v4199, 1.0
    %v4201 = vrcp.pop %v4200
    %v4202 = vmul.f32 1.0, %v4201
    %v4203 = vadd.f32 %v4194, %v4121
    %v4204 = vxor.u32 %v4203, 2147483648
    %v4205 = vmul.f32 %v4204, 1.442695
    %v4206 = vpow.pop %v4205
    %v4207 = vadd.f32 %v4206, 1.0
    %v4208 = vrcp.pop %v4207
    %v4209 = vmul.f32 1.0, %v4208
    %v4210 = vadd.f32 %v4190, %v2703
    %v4211 = vmul.f32 %v4202, %v4210
    %v4212 = vadd.f32 %v4195, %v4211
    %v4213 = vtanh.pop %v4212
    %v4214 = vsub.f32 1.0, %v4209
    %v4215 = vmul.f32 %v4214, %v4213
    %v4216 = vmul.f32 %v4209, %v4002
    %v4217 = vadd.f32 %v4215, %v4216
    %4218 = vst [vmem:[%s2172] sm:$0xff] %v4217
    %4219 = vst [vmem:[%s2491] sm:$0xff] %v4217
    // Predicated region
    $region62: #{rnn_model_forward.1} parent=1 // pred_check
      %p4220 = pneg %p92
    $region63: #{rnn_model_forward.1} parent=1 // pred_check_branch
      %4222 = sbr.rel (%p4220) target = $region65
    $region64: #{rnn_model_forward.1} parent=1 // pred_region
      %v4223 = vld [vmem:[#allocation3] sm:$0xff]
      %v4224 = vld [vmem:[#allocation3 + $0x8] sm:$0xff]
      %4225 = vst [vmem:[%s11] sm:$0xff] %v4223
      %4226 = vst [vmem:[%s11 + $0x8] sm:$0xff] %v4224
    $region65: #{rnn_model_forward.1} parent=1 // pred_fallthru
      _
    // Predicated region
    $region66: #{rnn_model_forward.1} parent=1 // pred_check
      _
    $region67: #{rnn_model_forward.1} parent=1 // pred_check_branch
      %4228 = sbr.rel (0) target = $region69
    $region68: #{rnn_model_forward.1} parent=1 // pred_region
      _
    $region69: #{rnn_model_forward.1} parent=1 // pred_fallthru
      _
    // Predicated region
    $region70: #{rnn_model_forward.1} parent=1 // pred_check
      _
    $region71: #{rnn_model_forward.1} parent=1 // pred_check_branch
      %4230 = sbr.rel (0) target = $region73
    $region72: #{rnn_model_forward.1} parent=1 // pred_region
      _
    $region73: #{rnn_model_forward.1} parent=1 // pred_fallthru
      _
    // Predicated region
    $region74: #{rnn_model_forward.1} parent=1 // pred_check
      _
    $region75: #{rnn_model_forward.1} parent=1 // pred_check_branch
      %4232 = sbr.rel (0) target = $region77
    $region76: #{rnn_model_forward.1} parent=1 // pred_region
      _
    $region77: #{rnn_model_forward.1} parent=1 // pred_fallthru
      _
    // Predicated region
    $region78: #{rnn_model_forward.1} parent=1 // pred_check
      _
    $region79: #{rnn_model_forward.1} parent=1 // pred_check_branch
      %4234 = sbr.rel (0) target = $region81
    $region80: #{rnn_model_forward.1} parent=1 // pred_region
      _
    $region81: #{rnn_model_forward.1} parent=1 // pred_fallthru
      _
    %4235 = vsyncpa [#allocation5], 1
    %4236 = vsyncpa [#allocation7], 1
    %4237 = vsyncpa [#allocation10], 1

</llo_original>
